<compile_context>
chip_gen: v6e
topology: v6e:2x2x1
jax: 0.10.0
libtpu: 0.0.40
codegen_flags: <defaults>
</compile_context>

<pallas_src>
import numpy as np
import jax
import jax.numpy as jnp
from jax.experimental import pallas as pl
from jax.experimental.pallas import tpu as pltpu


_SUBLANE = 16  # bf16 packed-sublane alignment for flat-layout band starts


def _gelu(x):
    # TODO(synk): PyTorch nn.GELU() default is the exact erf formulation; the
    # tanh approximation is used for guaranteed Mosaic lowering (~1e-3 diff).
    return jax.nn.gelu(x, approximate=True)


def _tap_shifts(num_kernels, Wp):
    """Flat row-shifts for every (branch, kh, kw) tap, in weight-fusion order."""
    shifts = []
    for i in range(num_kernels):
        ks, p = 2 * i + 1, i
        for kh in range(ks):
            for kw in range(ks):
                shifts.append((kh - p) * Wp + (kw - p))
    return tuple(shifts)


def _pad_layout(H, W, P):
    """Geometry of the zero-padded grid.  The [H, W] grid gets P zeros on every
    side (-> [Hp, Wp]) and is flattened row-major; `front`/`back` extra flat
    zeros keep every shifted read in bounds and sublane-align the band start."""
    Wp, Hp = W + 2 * P, H + 2 * P
    grid = Hp * Wp
    front = P + (-(P + P * Wp)) % _SUBLANE    # (front + P*Wp) % 16 == 0
    back = P + (-(front + grid + P)) % _SUBLANE
    return Wp, Hp, grid, front, back


# ----------------------------------------------------------------------------
# Pallas kernel: Inception_Block_V1 -> GELU -> Inception_Block_V1 per batch,
# with the softmax-weighted combine + residual fused into the epilogue.
# ----------------------------------------------------------------------------
def make_inception_combine_kernel(*, shifts, bands, band_x, band_m, Lband,
                                  n_low, n_high, Wp, W, P, H, T,
                                  Cin, Cff, Cout):
    def kernel(x_ref, w1_ref, b1_ref, w2_ref, b2_ref, mask_ref, pw_ref,
               acc_ref, out_ref, mid_ref, slab1_ref, slab2_ref, y_ref):
        # Re-zero only the mid halo rows; the band rows are fully overwritten
        # every grid step (safe under "parallel" / megacore splitting).
        if n_low > 0:
            mid_ref[0:n_low, :] = jnp.zeros((n_low, Cff), jnp.bfloat16)
        if n_high > 0:
            mid_ref[band_m + Lband:band_m + Lband + n_high, :] = jnp.zeros(
                (n_high, Cff), jnp.bfloat16)

        # ---- Inception block 1 (Cin -> Cff): banded fused im2col matmul.
        # Taps are staged into a bf16 VMEM slab (bounds vreg live ranges);
        # every shifted read is a plain slice (input is zero padded in H, W
        # and flat direction on the host), so no per-tap masking is needed.
        for r0, nr in bands:
            for t, d in enumerate(shifts):
                s = band_x + r0 + d
                slab1_ref[0:nr, t * Cin:(t + 1) * Cin] = x_ref[0, s:s + nr, :]
            h = jnp.dot(slab1_ref[0:nr, :], w1_ref[...],
                        preferred_element_type=jnp.float32)
            h = _gelu(h + b1_ref[...])
            # Hoisted W-halo mask: re-zero the halo columns so block 2 sees
            # exact zero 'same' padding.
            h = h.astype(jnp.bfloat16) * mask_ref[r0:r0 + nr, :]
            mid_ref[band_m + r0:band_m + r0 + nr, :] = h

        # ---- Inception block 2 (Cff -> Cout): same banded im2col matmul.
        for r0, nr in bands:
            for t, d in enumerate(shifts):
                s = band_m + r0 + d
                slab2_ref[0:nr, t * Cff:(t + 1) * Cff] = mid_ref[s:s + nr, :]
            y = jnp.dot(slab2_ref[0:nr, :], w2_ref[...],
                        preferred_element_type=jnp.float32)
            y_ref[r0:r0 + nr, :] = y + b2_ref[...]

        # ---- Fused combine epilogue: acc += softmax_weight * valid(y).
        # Valid grid rows (W-halo columns stripped, padded tail rows dropped)
        # map in order onto the first T sequence positions.
        pieces = []
        for hh in range(H):
            n = min(W, T - hh * W)           # only the last row can be partial
            pieces.append(y_ref[hh * Wp + P:hh * Wp + P + n, :])
        yv = pieces[0] if len(pieces) == 1 else jnp.concatenate(pieces, axis=0)
        out_ref[0] = acc_ref[0] + pw_ref[0] * yv

    return kernel


def run_period_accumulate(x_flat, period, fused, num_kernels, pw_i, acc, T,
                          mtile=512):
    """One TimesNet period branch:  acc += pw_i * Inception(GELU(Inception(x)))
    restricted to the first T sequence positions.

    x_flat: [B, L, Cin] with L a multiple of `period`; acc: [B, T, Cin] f32
    (updated in place via input_output_aliases); pw_i: [B] softmax weights."""
    B, L, Cin = x_flat.shape
    W, H, P = period, L // period, num_kernels - 1
    Wp, _, grid_len, Fx, Ex = _pad_layout(H, W, P)
    Lband = H * Wp                        # valid-row band, all Wp columns
    band_x = band_m = Fx + P * Wp         # band start in padded input / mid
    Lx = Ls = Fx + grid_len + Ex
    n_low, n_high = band_m, Ls - band_m - Lband

    Cff = fused["w1"].shape[-1]
    Cout = fused["w2"].shape[-1]
    assert acc.shape == (B, T, Cout) and Cout == Cin

    # Host-side layout plumbing (XLA): zero pad both spatial dims, flatten,
    # add the flat halo pads, cast to bf16 (kernel carries bf16 throughout).
    xg = x_flat.reshape(B, H, W, Cin)
    xg = jnp.pad(xg, ((0, 0), (P, P), (P, P), (0, 0))).reshape(B, grid_len, Cin)
    xpad = jnp.pad(xg, ((0, 0), (Fx, Ex), (0, 0))).astype(jnp.bfloat16)

    # Hoisted W-halo column mask (stays resident: constant index_map).
    col = np.arange(Lband) % Wp
    mask = jnp.asarray(((col >= P) & (col < P + W)).astype(np.float32),
                       dtype=jnp.bfloat16).reshape(Lband, 1)

    pw3 = pw_i.astype(jnp.float32).reshape(B, 1, 1)

    # M-band tiling of the im2col slabs: the live slab is at most mtile x 35*C.
    mtile = max(_SUBLANE, (mtile // _SUBLANE) * _SUBLANE)
    if Lband <= mtile:
        bands = ((0, Lband),)
    else:
        bands = tuple((r0, min(mtile, Lband - r0))
                      for r0 in range(0, Lband, mtile))
    slab_rows = bands[0][1]

    shifts = _tap_shifts(num_kernels, Wp)
    taps = len(shifts)
    kernel = make_inception_combine_kernel(
        shifts=shifts, bands=bands, band_x=band_x, band_m=band_m,
        Lband=Lband, n_low=n_low, n_high=n_high, Wp=Wp, W=W, P=P, H=H, T=T,
        Cin=Cin, Cff=Cff, Cout=Cout)

    return pl.pallas_call(
        kernel,
        out_shape=jax.ShapeDtypeStruct((B, T, Cout), jnp.float32),
        grid_spec=pltpu.PrefetchScalarGridSpec(
            num_scalar_prefetch=0,
            grid=(B,),
            in_specs=[
                pl.BlockSpec((1, Lx, Cin), lambda b: (b, 0, 0)),
                # Weights / biases / mask: constant index_map -> VMEM resident.
                pl.BlockSpec(fused["w1"].shape, lambda b: (0, 0)),
                pl.BlockSpec(fused["b1"].shape, lambda b: (0, 0)),
                pl.BlockSpec(fused["w2"].shape, lambda b: (0, 0)),
                pl.BlockSpec(fused["b2"].shape, lambda b: (0, 0)),
                pl.BlockSpec((Lband, 1), lambda b: (0, 0)),
                pl.BlockSpec((1, 1, 1), lambda b: (b, 0, 0)),
                pl.BlockSpec((1, T, Cout), lambda b: (b, 0, 0)),
            ],
            out_specs=pl.BlockSpec((1, T, Cout), lambda b: (b, 0, 0)),
            scratch_shapes=[
                pltpu.VMEM((Ls, Cff), jnp.bfloat16),                # mid grid
                pltpu.VMEM((slab_rows, taps * Cin), jnp.bfloat16),  # slab 1
                pltpu.VMEM((slab_rows, taps * Cff), jnp.bfloat16),  # slab 2
                pltpu.VMEM((Lband, Cout), jnp.float32),             # block-2 y
            ],
        ),
        # acc (last input) is updated in place: no extra HBM round trip and no
        # per-period [B, Lband, Cout] result / restack / combine kernel.
        input_output_aliases={7: 0},
        # "parallel": v7x's two TensorCores split the batch grid; neutral on
        # v5e/v6e.  (Tiny demo config -> default scoped VMEM limit is plenty;
        # set vmem_limit_bytes when scaling d_ff / seq_len.)
        compiler_params=pltpu.CompilerParams(
            dimension_semantics=("parallel",)),
    )(xpad, fused["w1"], fused["b1"], fused["w2"], fused["b2"], mask, pw3, acc)


# ----------------------------------------------------------------------------
# FFT_for_Period: plain JAX / host NumPy.  Period selection drives static
# kernel shapes, so it must be concrete (host sync).
# TODO(synk): rfft + top-k has no clean Pallas equivalent; kept outside kernel.
# ----------------------------------------------------------------------------
def fft_for_period(x, k=2):
    xf = jnp.fft.rfft(x, axis=1)
    amp = jnp.abs(xf)                            # [B, F, N]
    freq = amp.mean(axis=0).mean(axis=-1)        # [F]
    freq = freq.at[0].set(0.0)
    _, top = jax.lax.top_k(freq, k)
    top = np.asarray(jax.device_get(top))
    top = np.where(top == 0, 1, top)             # guard degenerate spectra
    period = x.shape[1] // top
    return period, amp.mean(axis=-1)[:, top]     # periods (np), weights [B, k]


# ----------------------------------------------------------------------------
# TimesBlock forward.
# ----------------------------------------------------------------------------
def times_block_forward(x, fused, seq_len, pred_len, top_k, num_kernels):
    B, T, N = x.shape
    assert T == seq_len + pred_len
    period_list, period_weight = fft_for_period(x, top_k)
    pw = jax.nn.softmax(period_weight, axis=1)   # [B, k]

    # Residual-initialized accumulator.  Explicit copy: acc is aliased and
    # updated in place by the kernels below; the caller-visible x stays intact.
    acc = jnp.copy(x).astype(jnp.float32)
    for i in range(top_k):
        period = int(period_list[i])
        if T % period != 0:
            length = (T // period + 1) * period
            xi = jnp.concatenate(
                [x, jnp.zeros((B, length - T, N), x.dtype)], axis=1)
        else:
            xi = x
        acc = run_period_accumulate(xi, period, fused, num_kernels,
                                    pw[:, i], acc, T)
    return acc


# ----------------------------------------------------------------------------
# Parameters: synthetic per-branch Conv2d-equivalent weights + im2col fusion.
# Branch i (kernel size ks=2i+1) weight layout [ks*ks, Cin, Cout] with
# w[kh*ks+kw, ci, co] == torch_conv.weight[co, ci, kh, kw].
# ----------------------------------------------------------------------------
def init_params(key, d_model, d_ff, num_kernels):
    keys = jax.random.split(key, 4 * num_kernels)
    w1, w2, b1, b2 = [], [], [], []
    idx = 0
    for i in range(num_kernels):
        ks = 2 * i + 1
        w1.append(0.1 * jax.random.normal(keys[idx], (ks * ks, d_model, d_ff),
                                          jnp.float32)); idx += 1
        b1.append(0.1 * jax.random.normal(keys[idx], (d_ff,), jnp.float32)); idx += 1
        w2.append(0.1 * jax.random.normal(keys[idx], (ks * ks, d_ff, d_model),
                                          jnp.float32)); idx += 1
        b2.append(0.1 * jax.random.normal(keys[idx], (d_model,), jnp.float32)); idx += 1
    return {"w1": w1, "b1": b1, "w2": w2, "b2": b2}


def fuse_params(raw, num_kernels):
    """Pre-fuse for the im2col kernel: concat all branch weights along the
    contraction dim, fold the 1/K branch average in, cast to bf16 for the MXU.
    Averaging per-branch (conv_i + b_i) == fused conv + mean(b_i)."""
    K = float(num_kernels)

    def fuse(ws):
        flat = [w.reshape(-1, w.shape[-1]) for w in ws]
        return (jnp.concatenate(flat, axis=0) / K).astype(jnp.bfloat16)

    return {
        "w1": fuse(raw["w1"]),
        "b1": jnp.mean(jnp.stack(raw["b1"]), axis=0)[None, :],
        "w2": fuse(raw["w2"]),
        "b2": jnp.mean(jnp.stack(raw["b2"]), axis=0)[None, :],
    }


# ----------------------------------------------------------------------------
# Pure-JAX f32 reference (mirrors the PyTorch TimesBlock forward).
# ----------------------------------------------------------------------------
def _inception_ref(z, ws, bs):
    outs = []
    for i, w in enumerate(ws):
        ks = 2 * i + 1
        wk = jnp.transpose(w.reshape(ks, ks, z.shape[1], -1), (3, 2, 0, 1))
        o = jax.lax.conv_general_dilated(
            z, wk, window_strides=(1, 1), padding=[(i, i), (i, i)],
            dimension_numbers=("NCHW", "OIHW", "NCHW"),
            precision=jax.lax.Precision.HIGHEST)
        outs.append(o + bs[i][None, :, None, None])
    return jnp.mean(jnp.stack(outs), axis=0)


def times_block_reference(x, raw, seq_len, pred_len, top_k, num_kernels):
    B, T, N = x.shape
    period_list, period_weight = fft_for_period(x, top_k)
    res = []
    for i in range(top_k):
        p = int(period_list[i])
        length = T if T % p == 0 else (T // p + 1) * p
        z = x if length == T else jnp.concatenate(
            [x, jnp.zeros((B, length - T, N), x.dtype)], axis=1)
        z = z.reshape(B, length // p, p, N).transpose(0, 3, 1, 2)
        h = _gelu(_inception_ref(z, raw["w1"], raw["b1"]))
        y = _inception_ref(h, raw["w2"], raw["b2"])
        y = y.transpose(0, 2, 3, 1).reshape(B, length, N)[:, :T, :]
        res.append(y)
    res = jnp.stack(res, axis=-1)
    pw = jax.nn.softmax(period_weight, axis=1)
    return jnp.sum(res * pw[:, None, None, :], axis=-1) + x


if __name__ == "__main__":
    # small config consistent with TimesBlock's forward
    seq_len, pred_len = 12, 4
    d_model, d_ff = 8, 16
    top_k, num_kernels = 2, 3
    B = 2
    T = seq_len + pred_len

    key = jax.random.PRNGKey(0)
    kx, kp = jax.random.split(key)
    x = jax.random.normal(kx, (B, T, d_model), jnp.float32)
    raw = init_params(kp, d_model, d_ff, num_kernels)
    fused = fuse_params(raw, num_kernels)

    out = times_block_forward(x, fused, seq_len, pred_len, top_k, num_kernels)
    out = jax.block_until_ready(out)

    assert out.shape == (B, T, d_model), out.shape
    assert bool(jnp.all(jnp.isfinite(out)))

    # correctness vs. pure-JAX f32 reference (loose tol: bf16 MXU operands)
    ref = times_block_reference(x, raw, seq_len, pred_len, top_k, num_kernels)
    err = float(jnp.max(jnp.abs(out - ref)))
    assert err < 1e-1, f"max abs err vs reference: {err}"
    print("KERNEL_OK")
</pallas_src>

<mosaic_0001>
module attributes {stable_mosaic.version = 11 : i64} {
  func.func @kernel(%arg0: i32, %arg1: memref<1x96x8xbf16, #tpu.memory_space<vmem>>, %arg2: memref<280x16xbf16, #tpu.memory_space<vmem>>, %arg3: memref<1x16xf32, #tpu.memory_space<vmem>>, %arg4: memref<560x8xbf16, #tpu.memory_space<vmem>>, %arg5: memref<1x8xf32, #tpu.memory_space<vmem>>, %arg6: memref<32x1xbf16, #tpu.memory_space<vmem>>, %arg7: memref<1x1x1xf32, #tpu.memory_space<vmem>>, %arg8: memref<1x16x8xf32, #tpu.memory_space<vmem>>, %arg9: memref<1x16x8xf32, #tpu.memory_space<vmem>>, %arg10: memref<96x16xbf16, #tpu.memory_space<vmem>>, %arg11: memref<32x280xbf16, #tpu.memory_space<vmem>>, %arg12: memref<32x560xbf16, #tpu.memory_space<vmem>>, %arg13: memref<32x8xf32, #tpu.memory_space<vmem>>) attributes {dimension_semantics = [#tpu.dimension_semantics<parallel>], iteration_bounds = array<i64: 2>, scalar_prefetch = 0 : i64, scratch_operands = 4 : i64, tpu.core_type = #tpu.core_type<tc>, window_params = [{transform_indices = @transform_0, window_bounds = array<i64: 1, 96, 8>}, {pipeline_mode = #tpu.pipeline_mode<synchronous>, transform_indices = @transform_1, window_bounds = array<i64: 280, 16>}, {pipeline_mode = #tpu.pipeline_mode<synchronous>, transform_indices = @transform_2, window_bounds = array<i64: 1, 16>}, {pipeline_mode = #tpu.pipeline_mode<synchronous>, transform_indices = @transform_3, window_bounds = array<i64: 560, 8>}, {pipeline_mode = #tpu.pipeline_mode<synchronous>, transform_indices = @transform_4, window_bounds = array<i64: 1, 8>}, {pipeline_mode = #tpu.pipeline_mode<synchronous>, transform_indices = @transform_5, window_bounds = array<i64: 32, 1>}, {transform_indices = @transform_6, window_bounds = array<i64: 1, 1, 1>}, {transform_indices = @transform_7, window_bounds = array<i64: 1, 16, 8>}, {transform_indices = @transform_8, window_bounds = array<i64: 1, 16, 8>}]} {
    %cst = arith.constant 0.000000e+00 : bf16
    %0 = vector.broadcast %cst : bf16 to vector<32x16xbf16>
    %c0 = arith.constant 0 : index
    %c0_0 = arith.constant 0 : index
    %1 = vector.load %arg10[%c0, %c0_0] : memref<96x16xbf16, #tpu.memory_space<vmem>>, vector<32x16xbf16>
    tpu.vector_store %arg10[%c0, %c0_0], %0 {strides = array<i32>} : memref<96x16xbf16, #tpu.memory_space<vmem>>, vector<32x16xbf16>,
    %cst_1 = arith.constant 0.000000e+00 : bf16
    %2 = vector.broadcast %cst_1 : bf16 to vector<32x16xbf16>
    %c64 = arith.constant 64 : index
    %c0_2 = arith.constant 0 : index
    %3 = vector.load %arg10[%c64, %c0_2] : memref<96x16xbf16, #tpu.memory_space<vmem>>, vector<32x16xbf16>
    tpu.vector_store %arg10[%c64, %c0_2], %2 {strides = array<i32>} : memref<96x16xbf16, #tpu.memory_space<vmem>>, vector<32x16xbf16>,
    %c0_3 = arith.constant 0 : index
    %c32 = arith.constant 32 : index
    %c0_4 = arith.constant 0 : index
    %4 = vector.load %arg1[%c0_3, %c32, %c0_4] : memref<1x96x8xbf16, #tpu.memory_space<vmem>>, vector<1x32x8xbf16>
    %5 = vector.shape_cast %4 : vector<1x32x8xbf16> to vector<32x8xbf16>
    %c0_5 = arith.constant 0 : index
    %c0_6 = arith.constant 0 : index
    %6 = vector.load %arg11[%c0_5, %c0_6] : memref<32x280xbf16, #tpu.memory_space<vmem>>, vector<32x8xbf16>
    tpu.vector_store %arg11[%c0_5, %c0_6], %5 {strides = array<i32>} : memref<32x280xbf16, #tpu.memory_space<vmem>>, vector<32x8xbf16>,
    %c0_7 = arith.constant 0 : index
    %c23 = arith.constant 23 : index
    %c0_8 = arith.constant 0 : index
    %7 = vector.load %arg1[%c0_7, %c23, %c0_8] : memref<1x96x8xbf16, #tpu.memory_space<vmem>>, vector<1x32x8xbf16>
    %8 = vector.shape_cast %7 : vector<1x32x8xbf16> to vector<32x8xbf16>
    %c0_9 = arith.constant 0 : index
    %c8 = arith.constant 8 : index
    %9 = vector.load %arg11[%c0_9, %c8] : memref<32x280xbf16, #tpu.memory_space<vmem>>, vector<32x8xbf16>
    tpu.vector_store %arg11[%c0_9, %c8], %8 {strides = array<i32>} : memref<32x280xbf16, #tpu.memory_space<vmem>>, vector<32x8xbf16>,
    %c0_10 = arith.constant 0 : index
    %c24 = arith.constant 24 : index
    %c0_11 = arith.constant 0 : index
    %10 = vector.load %arg1[%c0_10, %c24, %c0_11] : memref<1x96x8xbf16, #tpu.memory_space<vmem>>, vector<1x32x8xbf16>
    %11 = vector.shape_cast %10 : vector<1x32x8xbf16> to vector<32x8xbf16>
    %c0_12 = arith.constant 0 : index
    %c16 = arith.constant 16 : index
    %12 = vector.load %arg11[%c0_12, %c16] : memref<32x280xbf16, #tpu.memory_space<vmem>>, vector<32x8xbf16>
    tpu.vector_store %arg11[%c0_12, %c16], %11 {strides = array<i32>} : memref<32x280xbf16, #tpu.memory_space<vmem>>, vector<32x8xbf16>,
    %c0_13 = arith.constant 0 : index
    %c25 = arith.constant 25 : index
    %c0_14 = arith.constant 0 : index
    %13 = vector.load %arg1[%c0_13, %c25, %c0_14] : memref<1x96x8xbf16, #tpu.memory_space<vmem>>, vector<1x32x8xbf16>
    %14 = vector.shape_cast %13 : vector<1x32x8xbf16> to vector<32x8xbf16>
    %c0_15 = arith.constant 0 : index
    %c24_16 = arith.constant 24 : index
    %15 = vector.load %arg11[%c0_15, %c24_16] : memref<32x280xbf16, #tpu.memory_space<vmem>>, vector<32x8xbf16>
    tpu.vector_store %arg11[%c0_15, %c24_16], %14 {strides = array<i32>} : memref<32x280xbf16, #tpu.memory_space<vmem>>, vector<32x8xbf16>,
    %c0_17 = arith.constant 0 : index
    %c31 = arith.constant 31 : index
    %c0_18 = arith.constant 0 : index
    %16 = vector.load %arg1[%c0_17, %c31, %c0_18] : memref<1x96x8xbf16, #tpu.memory_space<vmem>>, vector<1x32x8xbf16>
    %17 = vector.shape_cast %16 : vector<1x32x8xbf16> to vector<32x8xbf16>
    %c0_19 = arith.constant 0 : index
    %c32_20 = arith.constant 32 : index
    %18 = vector.load %arg11[%c0_19, %c32_20] : memref<32x280xbf16, #tpu.memory_space<vmem>>, vector<32x8xbf16>
    tpu.vector_store %arg11[%c0_19, %c32_20], %17 {strides = array<i32>} : memref<32x280xbf16, #tpu.memory_space<vmem>>, vector<32x8xbf16>,
    %c0_21 = arith.constant 0 : index
    %c32_22 = arith.constant 32 : index
    %c0_23 = arith.constant 0 : index
    %19 = vector.load %arg1[%c0_21, %c32_22, %c0_23] : memref<1x96x8xbf16, #tpu.memory_space<vmem>>, vector<1x32x8xbf16>
    %20 = vector.shape_cast %19 : vector<1x32x8xbf16> to vector<32x8xbf16>
    %c0_24 = arith.constant 0 : index
    %c40 = arith.constant 40 : index
    %21 = vector.load %arg11[%c0_24, %c40] : memref<32x280xbf16, #tpu.memory_space<vmem>>, vector<32x8xbf16>
    tpu.vector_store %arg11[%c0_24, %c40], %20 {strides = array<i32>} : memref<32x280xbf16, #tpu.memory_space<vmem>>, vector<32x8xbf16>,
    %c0_25 = arith.constant 0 : index
    %c33 = arith.constant 33 : index
    %c0_26 = arith.constant 0 : index
    %22 = vector.load %arg1[%c0_25, %c33, %c0_26] : memref<1x96x8xbf16, #tpu.memory_space<vmem>>, vector<1x32x8xbf16>
    %23 = vector.shape_cast %22 : vector<1x32x8xbf16> to vector<32x8xbf16>
    %c0_27 = arith.constant 0 : index
    %c48 = arith.constant 48 : index
    %24 = vector.load %arg11[%c0_27, %c48] : memref<32x280xbf16, #tpu.memory_space<vmem>>, vector<32x8xbf16>
    tpu.vector_store %arg11[%c0_27, %c48], %23 {strides = array<i32>} : memref<32x280xbf16, #tpu.memory_space<vmem>>, vector<32x8xbf16>,
    %c0_28 = arith.constant 0 : index
    %c39 = arith.constant 39 : index
    %c0_29 = arith.constant 0 : index
    %25 = vector.load %arg1[%c0_28, %c39, %c0_29] : memref<1x96x8xbf16, #tpu.memory_space<vmem>>, vector<1x32x8xbf16>
    %26 = vector.shape_cast %25 : vector<1x32x8xbf16> to vector<32x8xbf16>
    %c0_30 = arith.constant 0 : index
    %c56 = arith.constant 56 : index
    %27 = vector.load %arg11[%c0_30, %c56] : memref<32x280xbf16, #tpu.memory_space<vmem>>, vector<32x8xbf16>
    tpu.vector_store %arg11[%c0_30, %c56], %26 {strides = array<i32>} : memref<32x280xbf16, #tpu.memory_space<vmem>>, vector<32x8xbf16>,
    %c0_31 = arith.constant 0 : index
    %c40_32 = arith.constant 40 : index
    %c0_33 = arith.constant 0 : index
    %28 = vector.load %arg1[%c0_31, %c40_32, %c0_33] : memref<1x96x8xbf16, #tpu.memory_space<vmem>>, vector<1x32x8xbf16>
    %29 = vector.shape_cast %28 : vector<1x32x8xbf16> to vector<32x8xbf16>
    %c0_34 = arith.constant 0 : index
    %c64_35 = arith.constant 64 : index
    %30 = vector.load %arg11[%c0_34, %c64_35] : memref<32x280xbf16, #tpu.memory_space<vmem>>, vector<32x8xbf16>
    tpu.vector_store %arg11[%c0_34, %c64_35], %29 {strides = array<i32>} : memref<32x280xbf16, #tpu.memory_space<vmem>>, vector<32x8xbf16>,
    %c0_36 = arith.constant 0 : index
    %c41 = arith.constant 41 : index
    %c0_37 = arith.constant 0 : index
    %31 = vector.load %arg1[%c0_36, %c41, %c0_37] : memref<1x96x8xbf16, #tpu.memory_space<vmem>>, vector<1x32x8xbf16>
    %32 = vector.shape_cast %31 : vector<1x32x8xbf16> to vector<32x8xbf16>
    %c0_38 = arith.constant 0 : index
    %c72 = arith.constant 72 : index
    %33 = vector.load %arg11[%c0_38, %c72] : memref<32x280xbf16, #tpu.memory_space<vmem>>, vector<32x8xbf16>
    tpu.vector_store %arg11[%c0_38, %c72], %32 {strides = array<i32>} : memref<32x280xbf16, #tpu.memory_space<vmem>>, vector<32x8xbf16>,
    %c0_39 = arith.constant 0 : index
    %c14 = arith.constant 14 : index
    %c0_40 = arith.constant 0 : index
    %34 = vector.load %arg1[%c0_39, %c14, %c0_40] : memref<1x96x8xbf16, #tpu.memory_space<vmem>>, vector<1x32x8xbf16>
    %35 = vector.shape_cast %34 : vector<1x32x8xbf16> to vector<32x8xbf16>
    %c0_41 = arith.constant 0 : index
    %c80 = arith.constant 80 : index
    %36 = vector.load %arg11[%c0_41, %c80] : memref<32x280xbf16, #tpu.memory_space<vmem>>, vector<32x8xbf16>
    tpu.vector_store %arg11[%c0_41, %c80], %35 {strides = array<i32>} : memref<32x280xbf16, #tpu.memory_space<vmem>>, vector<32x8xbf16>,
    %c0_42 = arith.constant 0 : index
    %c15 = arith.constant 15 : index
    %c0_43 = arith.constant 0 : index
    %37 = vector.load %arg1[%c0_42, %c15, %c0_43] : memref<1x96x8xbf16, #tpu.memory_space<vmem>>, vector<1x32x8xbf16>
    %38 = vector.shape_cast %37 : vector<1x32x8xbf16> to vector<32x8xbf16>
    %c0_44 = arith.constant 0 : index
    %c88 = arith.constant 88 : index
    %39 = vector.load %arg11[%c0_44, %c88] : memref<32x280xbf16, #tpu.memory_space<vmem>>, vector<32x8xbf16>
    tpu.vector_store %arg11[%c0_44, %c88], %38 {strides = array<i32>} : memref<32x280xbf16, #tpu.memory_space<vmem>>, vector<32x8xbf16>,
    %c0_45 = arith.constant 0 : index
    %c16_46 = arith.constant 16 : index
    %c0_47 = arith.constant 0 : index
    %40 = vector.load %arg1[%c0_45, %c16_46, %c0_47] : memref<1x96x8xbf16, #tpu.memory_space<vmem>>, vector<1x32x8xbf16>
    %41 = vector.shape_cast %40 : vector<1x32x8xbf16> to vector<32x8xbf16>
    %c0_48 = arith.constant 0 : index
    %c96 = arith.constant 96 : index
    %42 = vector.load %arg11[%c0_48, %c96] : memref<32x280xbf16, #tpu.memory_space<vmem>>, vector<32x8xbf16>
    tpu.vector_store %arg11[%c0_48, %c96], %41 {strides = array<i32>} : memref<32x280xbf16, #tpu.memory_space<vmem>>, vector<32x8xbf16>,
    %c0_49 = arith.constant 0 : index
    %c17 = arith.constant 17 : index
    %c0_50 = arith.constant 0 : index
    %43 = vector.load %arg1[%c0_49, %c17, %c0_50] : memref<1x96x8xbf16, #tpu.memory_space<vmem>>, vector<1x32x8xbf16>
    %44 = vector.shape_cast %43 : vector<1x32x8xbf16> to vector<32x8xbf16>
    %c0_51 = arith.constant 0 : index
    %c104 = arith.constant 104 : index
    %45 = vector.load %arg11[%c0_51, %c104] : memref<32x280xbf16, #tpu.memory_space<vmem>>, vector<32x8xbf16>
    tpu.vector_store %arg11[%c0_51, %c104], %44 {strides = array<i32>} : memref<32x280xbf16, #tpu.memory_space<vmem>>, vector<32x8xbf16>,
    %c0_52 = arith.constant 0 : index
    %c18 = arith.constant 18 : index
    %c0_53 = arith.constant 0 : index
    %46 = vector.load %arg1[%c0_52, %c18, %c0_53] : memref<1x96x8xbf16, #tpu.memory_space<vmem>>, vector<1x32x8xbf16>
    %47 = vector.shape_cast %46 : vector<1x32x8xbf16> to vector<32x8xbf16>
    %c0_54 = arith.constant 0 : index
    %c112 = arith.constant 112 : index
    %48 = vector.load %arg11[%c0_54, %c112] : memref<32x280xbf16, #tpu.memory_space<vmem>>, vector<32x8xbf16>
    tpu.vector_store %arg11[%c0_54, %c112], %47 {strides = array<i32>} : memref<32x280xbf16, #tpu.memory_space<vmem>>, vector<32x8xbf16>,
    %c0_55 = arith.constant 0 : index
    %c22 = arith.constant 22 : index
    %c0_56 = arith.constant 0 : index
    %49 = vector.load %arg1[%c0_55, %c22, %c0_56] : memref<1x96x8xbf16, #tpu.memory_space<vmem>>, vector<1x32x8xbf16>
    %50 = vector.shape_cast %49 : vector<1x32x8xbf16> to vector<32x8xbf16>
    %c0_57 = arith.constant 0 : index
    %c120 = arith.constant 120 : index
    %51 = vector.load %arg11[%c0_57, %c120] : memref<32x280xbf16, #tpu.memory_space<vmem>>, vector<32x8xbf16>
    tpu.vector_store %arg11[%c0_57, %c120], %50 {strides = array<i32>} : memref<32x280xbf16, #tpu.memory_space<vmem>>, vector<32x8xbf16>,
    %c0_58 = arith.constant 0 : index
    %c23_59 = arith.constant 23 : index
    %c0_60 = arith.constant 0 : index
    %52 = vector.load %arg1[%c0_58, %c23_59, %c0_60] : memref<1x96x8xbf16, #tpu.memory_space<vmem>>, vector<1x32x8xbf16>
    %53 = vector.shape_cast %52 : vector<1x32x8xbf16> to vector<32x8xbf16>
    %c0_61 = arith.constant 0 : index
    %c128 = arith.constant 128 : index
    %54 = vector.load %arg11[%c0_61, %c128] : memref<32x280xbf16, #tpu.memory_space<vmem>>, vector<32x8xbf16>
    tpu.vector_store %arg11[%c0_61, %c128], %53 {strides = array<i32>} : memref<32x280xbf16, #tpu.memory_space<vmem>>, vector<32x8xbf16>,
    %c0_62 = arith.constant 0 : index
    %c24_63 = arith.constant 24 : index
    %c0_64 = arith.constant 0 : index
    %55 = vector.load %arg1[%c0_62, %c24_63, %c0_64] : memref<1x96x8xbf16, #tpu.memory_space<vmem>>, vector<1x32x8xbf16>
    %56 = vector.shape_cast %55 : vector<1x32x8xbf16> to vector<32x8xbf16>
    %c0_65 = arith.constant 0 : index
    %c136 = arith.constant 136 : index
    %57 = vector.load %arg11[%c0_65, %c136] : memref<32x280xbf16, #tpu.memory_space<vmem>>, vector<32x8xbf16>
    tpu.vector_store %arg11[%c0_65, %c136], %56 {strides = array<i32>} : memref<32x280xbf16, #tpu.memory_space<vmem>>, vector<32x8xbf16>,
    %c0_66 = arith.constant 0 : index
    %c25_67 = arith.constant 25 : index
    %c0_68 = arith.constant 0 : index
    %58 = vector.load %arg1[%c0_66, %c25_67, %c0_68] : memref<1x96x8xbf16, #tpu.memory_space<vmem>>, vector<1x32x8xbf16>
    %59 = vector.shape_cast %58 : vector<1x32x8xbf16> to vector<32x8xbf16>
    %c0_69 = arith.constant 0 : index
    %c144 = arith.constant 144 : index
    %60 = vector.load %arg11[%c0_69, %c144] : memref<32x280xbf16, #tpu.memory_space<vmem>>, vector<32x8xbf16>
    tpu.vector_store %arg11[%c0_69, %c144], %59 {strides = array<i32>} : memref<32x280xbf16, #tpu.memory_space<vmem>>, vector<32x8xbf16>,
    %c0_70 = arith.constant 0 : index
    %c26 = arith.constant 26 : index
    %c0_71 = arith.constant 0 : index
    %61 = vector.load %arg1[%c0_70, %c26, %c0_71] : memref<1x96x8xbf16, #tpu.memory_space<vmem>>, vector<1x32x8xbf16>
    %62 = vector.shape_cast %61 : vector<1x32x8xbf16> to vector<32x8xbf16>
    %c0_72 = arith.constant 0 : index
    %c152 = arith.constant 152 : index
    %63 = vector.load %arg11[%c0_72, %c152] : memref<32x280xbf16, #tpu.memory_space<vmem>>, vector<32x8xbf16>
    tpu.vector_store %arg11[%c0_72, %c152], %62 {strides = array<i32>} : memref<32x280xbf16, #tpu.memory_space<vmem>>, vector<32x8xbf16>,
    %c0_73 = arith.constant 0 : index
    %c30 = arith.constant 30 : index
    %c0_74 = arith.constant 0 : index
    %64 = vector.load %arg1[%c0_73, %c30, %c0_74] : memref<1x96x8xbf16, #tpu.memory_space<vmem>>, vector<1x32x8xbf16>
    %65 = vector.shape_cast %64 : vector<1x32x8xbf16> to vector<32x8xbf16>
    %c0_75 = arith.constant 0 : index
    %c160 = arith.constant 160 : index
    %66 = vector.load %arg11[%c0_75, %c160] : memref<32x280xbf16, #tpu.memory_space<vmem>>, vector<32x8xbf16>
    tpu.vector_store %arg11[%c0_75, %c160], %65 {strides = array<i32>} : memref<32x280xbf16, #tpu.memory_space<vmem>>, vector<32x8xbf16>,
    %c0_76 = arith.constant 0 : index
    %c31_77 = arith.constant 31 : index
    %c0_78 = arith.constant 0 : index
    %67 = vector.load %arg1[%c0_76, %c31_77, %c0_78] : memref<1x96x8xbf16, #tpu.memory_space<vmem>>, vector<1x32x8xbf16>
    %68 = vector.shape_cast %67 : vector<1x32x8xbf16> to vector<32x8xbf16>
    %c0_79 = arith.constant 0 : index
    %c168 = arith.constant 168 : index
    %69 = vector.load %arg11[%c0_79, %c168] : memref<32x280xbf16, #tpu.memory_space<vmem>>, vector<32x8xbf16>
    tpu.vector_store %arg11[%c0_79, %c168], %68 {strides = array<i32>} : memref<32x280xbf16, #tpu.memory_space<vmem>>, vector<32x8xbf16>,
    %c0_80 = arith.constant 0 : index
    %c32_81 = arith.constant 32 : index
    %c0_82 = arith.constant 0 : index
    %70 = vector.load %arg1[%c0_80, %c32_81, %c0_82] : memref<1x96x8xbf16, #tpu.memory_space<vmem>>, vector<1x32x8xbf16>
    %71 = vector.shape_cast %70 : vector<1x32x8xbf16> to vector<32x8xbf16>
    %c0_83 = arith.constant 0 : index
    %c176 = arith.constant 176 : index
    %72 = vector.load %arg11[%c0_83, %c176] : memref<32x280xbf16, #tpu.memory_space<vmem>>, vector<32x8xbf16>
    tpu.vector_store %arg11[%c0_83, %c176], %71 {strides = array<i32>} : memref<32x280xbf16, #tpu.memory_space<vmem>>, vector<32x8xbf16>,
    %c0_84 = arith.constant 0 : index
    %c33_85 = arith.constant 33 : index
    %c0_86 = arith.constant 0 : index
    %73 = vector.load %arg1[%c0_84, %c33_85, %c0_86] : memref<1x96x8xbf16, #tpu.memory_space<vmem>>, vector<1x32x8xbf16>
    %74 = vector.shape_cast %73 : vector<1x32x8xbf16> to vector<32x8xbf16>
    %c0_87 = arith.constant 0 : index
    %c184 = arith.constant 184 : index
    %75 = vector.load %arg11[%c0_87, %c184] : memref<32x280xbf16, #tpu.memory_space<vmem>>, vector<32x8xbf16>
    tpu.vector_store %arg11[%c0_87, %c184], %74 {strides = array<i32>} : memref<32x280xbf16, #tpu.memory_space<vmem>>, vector<32x8xbf16>,
    %c0_88 = arith.constant 0 : index
    %c34 = arith.constant 34 : index
    %c0_89 = arith.constant 0 : index
    %76 = vector.load %arg1[%c0_88, %c34, %c0_89] : memref<1x96x8xbf16, #tpu.memory_space<vmem>>, vector<1x32x8xbf16>
    %77 = vector.shape_cast %76 : vector<1x32x8xbf16> to vector<32x8xbf16>
    %c0_90 = arith.constant 0 : index
    %c192 = arith.constant 192 : index
    %78 = vector.load %arg11[%c0_90, %c192] : memref<32x280xbf16, #tpu.memory_space<vmem>>, vector<32x8xbf16>
    tpu.vector_store %arg11[%c0_90, %c192], %77 {strides = array<i32>} : memref<32x280xbf16, #tpu.memory_space<vmem>>, vector<32x8xbf16>,
    %c0_91 = arith.constant 0 : index
    %c38 = arith.constant 38 : index
    %c0_92 = arith.constant 0 : index
    %79 = vector.load %arg1[%c0_91, %c38, %c0_92] : memref<1x96x8xbf16, #tpu.memory_space<vmem>>, vector<1x32x8xbf16>
    %80 = vector.shape_cast %79 : vector<1x32x8xbf16> to vector<32x8xbf16>
    %c0_93 = arith.constant 0 : index
    %c200 = arith.constant 200 : index
    %81 = vector.load %arg11[%c0_93, %c200] : memref<32x280xbf16, #tpu.memory_space<vmem>>, vector<32x8xbf16>
    tpu.vector_store %arg11[%c0_93, %c200], %80 {strides = array<i32>} : memref<32x280xbf16, #tpu.memory_space<vmem>>, vector<32x8xbf16>,
    %c0_94 = arith.constant 0 : index
    %c39_95 = arith.constant 39 : index
    %c0_96 = arith.constant 0 : index
    %82 = vector.load %arg1[%c0_94, %c39_95, %c0_96] : memref<1x96x8xbf16, #tpu.memory_space<vmem>>, vector<1x32x8xbf16>
    %83 = vector.shape_cast %82 : vector<1x32x8xbf16> to vector<32x8xbf16>
    %c0_97 = arith.constant 0 : index
    %c208 = arith.constant 208 : index
    %84 = vector.load %arg11[%c0_97, %c208] : memref<32x280xbf16, #tpu.memory_space<vmem>>, vector<32x8xbf16>
    tpu.vector_store %arg11[%c0_97, %c208], %83 {strides = array<i32>} : memref<32x280xbf16, #tpu.memory_space<vmem>>, vector<32x8xbf16>,
    %c0_98 = arith.constant 0 : index
    %c40_99 = arith.constant 40 : index
    %c0_100 = arith.constant 0 : index
    %85 = vector.load %arg1[%c0_98, %c40_99, %c0_100] : memref<1x96x8xbf16, #tpu.memory_space<vmem>>, vector<1x32x8xbf16>
    %86 = vector.shape_cast %85 : vector<1x32x8xbf16> to vector<32x8xbf16>
    %c0_101 = arith.constant 0 : index
    %c216 = arith.constant 216 : index
    %87 = vector.load %arg11[%c0_101, %c216] : memref<32x280xbf16, #tpu.memory_space<vmem>>, vector<32x8xbf16>
    tpu.vector_store %arg11[%c0_101, %c216], %86 {strides = array<i32>} : memref<32x280xbf16, #tpu.memory_space<vmem>>, vector<32x8xbf16>,
    %c0_102 = arith.constant 0 : index
    %c41_103 = arith.constant 41 : index
    %c0_104 = arith.constant 0 : index
    %88 = vector.load %arg1[%c0_102, %c41_103, %c0_104] : memref<1x96x8xbf16, #tpu.memory_space<vmem>>, vector<1x32x8xbf16>
    %89 = vector.shape_cast %88 : vector<1x32x8xbf16> to vector<32x8xbf16>
    %c0_105 = arith.constant 0 : index
    %c224 = arith.constant 224 : index
    %90 = vector.load %arg11[%c0_105, %c224] : memref<32x280xbf16, #tpu.memory_space<vmem>>, vector<32x8xbf16>
    tpu.vector_store %arg11[%c0_105, %c224], %89 {strides = array<i32>} : memref<32x280xbf16, #tpu.memory_space<vmem>>, vector<32x8xbf16>,
    %c0_106 = arith.constant 0 : index
    %c42 = arith.constant 42 : index
    %c0_107 = arith.constant 0 : index
    %91 = vector.load %arg1[%c0_106, %c42, %c0_107] : memref<1x96x8xbf16, #tpu.memory_space<vmem>>, vector<1x32x8xbf16>
    %92 = vector.shape_cast %91 : vector<1x32x8xbf16> to vector<32x8xbf16>
    %c0_108 = arith.constant 0 : index
    %c232 = arith.constant 232 : index
    %93 = vector.load %arg11[%c0_108, %c232] : memref<32x280xbf16, #tpu.memory_space<vmem>>, vector<32x8xbf16>
    tpu.vector_store %arg11[%c0_108, %c232], %92 {strides = array<i32>} : memref<32x280xbf16, #tpu.memory_space<vmem>>, vector<32x8xbf16>,
    %c0_109 = arith.constant 0 : index
    %c46 = arith.constant 46 : index
    %c0_110 = arith.constant 0 : index
    %94 = vector.load %arg1[%c0_109, %c46, %c0_110] : memref<1x96x8xbf16, #tpu.memory_space<vmem>>, vector<1x32x8xbf16>
    %95 = vector.shape_cast %94 : vector<1x32x8xbf16> to vector<32x8xbf16>
    %c0_111 = arith.constant 0 : index
    %c240 = arith.constant 240 : index
    %96 = vector.load %arg11[%c0_111, %c240] : memref<32x280xbf16, #tpu.memory_space<vmem>>, vector<32x8xbf16>
    tpu.vector_store %arg11[%c0_111, %c240], %95 {strides = array<i32>} : memref<32x280xbf16, #tpu.memory_space<vmem>>, vector<32x8xbf16>,
    %c0_112 = arith.constant 0 : index
    %c47 = arith.constant 47 : index
    %c0_113 = arith.constant 0 : index
    %97 = vector.load %arg1[%c0_112, %c47, %c0_113] : memref<1x96x8xbf16, #tpu.memory_space<vmem>>, vector<1x32x8xbf16>
    %98 = vector.shape_cast %97 : vector<1x32x8xbf16> to vector<32x8xbf16>
    %c0_114 = arith.constant 0 : index
    %c248 = arith.constant 248 : index
    %99 = vector.load %arg11[%c0_114, %c248] : memref<32x280xbf16, #tpu.memory_space<vmem>>, vector<32x8xbf16>
    tpu.vector_store %arg11[%c0_114, %c248], %98 {strides = array<i32>} : memref<32x280xbf16, #tpu.memory_space<vmem>>, vector<32x8xbf16>,
    %c0_115 = arith.constant 0 : index
    %c48_116 = arith.constant 48 : index
    %c0_117 = arith.constant 0 : index
    %100 = vector.load %arg1[%c0_115, %c48_116, %c0_117] : memref<1x96x8xbf16, #tpu.memory_space<vmem>>, vector<1x32x8xbf16>
    %101 = vector.shape_cast %100 : vector<1x32x8xbf16> to vector<32x8xbf16>
    %c0_118 = arith.constant 0 : index
    %c256 = arith.constant 256 : index
    %102 = vector.load %arg11[%c0_118, %c256] : memref<32x280xbf16, #tpu.memory_space<vmem>>, vector<32x8xbf16>
    tpu.vector_store %arg11[%c0_118, %c256], %101 {strides = array<i32>} : memref<32x280xbf16, #tpu.memory_space<vmem>>, vector<32x8xbf16>,
    %c0_119 = arith.constant 0 : index
    %c49 = arith.constant 49 : index
    %c0_120 = arith.constant 0 : index
    %103 = vector.load %arg1[%c0_119, %c49, %c0_120] : memref<1x96x8xbf16, #tpu.memory_space<vmem>>, vector<1x32x8xbf16>
    %104 = vector.shape_cast %103 : vector<1x32x8xbf16> to vector<32x8xbf16>
    %c0_121 = arith.constant 0 : index
    %c264 = arith.constant 264 : index
    %105 = vector.load %arg11[%c0_121, %c264] : memref<32x280xbf16, #tpu.memory_space<vmem>>, vector<32x8xbf16>
    tpu.vector_store %arg11[%c0_121, %c264], %104 {strides = array<i32>} : memref<32x280xbf16, #tpu.memory_space<vmem>>, vector<32x8xbf16>,
    %c0_122 = arith.constant 0 : index
    %c50 = arith.constant 50 : index
    %c0_123 = arith.constant 0 : index
    %106 = vector.load %arg1[%c0_122, %c50, %c0_123] : memref<1x96x8xbf16, #tpu.memory_space<vmem>>, vector<1x32x8xbf16>
    %107 = vector.shape_cast %106 : vector<1x32x8xbf16> to vector<32x8xbf16>
    %c0_124 = arith.constant 0 : index
    %c272 = arith.constant 272 : index
    %108 = vector.load %arg11[%c0_124, %c272] : memref<32x280xbf16, #tpu.memory_space<vmem>>, vector<32x8xbf16>
    tpu.vector_store %arg11[%c0_124, %c272], %107 {strides = array<i32>} : memref<32x280xbf16, #tpu.memory_space<vmem>>, vector<32x8xbf16>,
    %c0_125 = arith.constant 0 : index
    %c0_126 = arith.constant 0 : index
    %109 = vector.load %arg11[%c0_125, %c0_126] : memref<32x280xbf16, #tpu.memory_space<vmem>>, vector<32x280xbf16>
    %c0_127 = arith.constant 0 : index
    %c0_128 = arith.constant 0 : index
    %110 = vector.load %arg2[%c0_127, %c0_128] : memref<280x16xbf16, #tpu.memory_space<vmem>>, vector<280x16xbf16>
    %cst_129 = arith.constant dense<0.000000e+00> : vector<32x16xf32>
    %111 = tpu.matmul %109, %110, %cst_129 {dimension_numbers = #tpu.dot_dimension_numbers<[1], [0], [0], [1], [0, 0, 1, 1], [], []>} : vector<32x280xbf16>, vector<280x16xbf16>, vector<32x16xf32> -> vector<32x16xf32>
    %c0_130 = arith.constant 0 : index
    %c0_131 = arith.constant 0 : index
    %112 = vector.load %arg3[%c0_130, %c0_131] : memref<1x16xf32, #tpu.memory_space<vmem>>, vector<1x16xf32>
    %113 = vector.broadcast %112 : vector<1x16xf32> to vector<32x16xf32>
    %114 = arith.addf %111, %113 : vector<32x16xf32>
    %115 = arith.mulf %114, %114 : vector<32x16xf32>
    %116 = arith.mulf %114, %115 : vector<32x16xf32>
    %cst_132 = arith.constant 4.471500e-02 : f32
    %117 = vector.broadcast %cst_132 : f32 to vector<32x16xf32>
    %118 = arith.mulf %117, %116 : vector<32x16xf32>
    %119 = arith.addf %114, %118 : vector<32x16xf32>
    %cst_133 = arith.constant 0.797884583 : f32
    %120 = vector.broadcast %cst_133 : f32 to vector<32x16xf32>
    %121 = arith.mulf %120, %119 : vector<32x16xf32>
    %122 = math.tanh %121 : vector<32x16xf32>
    %cst_134 = arith.constant 1.000000e+00 : f32
    %123 = vector.broadcast %cst_134 : f32 to vector<32x16xf32>
    %124 = arith.addf %123, %122 : vector<32x16xf32>
    %cst_135 = arith.constant 5.000000e-01 : f32
    %125 = vector.broadcast %cst_135 : f32 to vector<32x16xf32>
    %126 = arith.mulf %125, %124 : vector<32x16xf32>
    %127 = arith.mulf %114, %126 : vector<32x16xf32>
    %128 = arith.truncf %127 : vector<32x16xf32> to vector<32x16xbf16>
    %c0_136 = arith.constant 0 : index
    %c0_137 = arith.constant 0 : index
    %129 = vector.load %arg6[%c0_136, %c0_137] : memref<32x1xbf16, #tpu.memory_space<vmem>>, vector<32x1xbf16>
    %130 = vector.broadcast %129 : vector<32x1xbf16> to vector<32x16xbf16>
    %131 = arith.mulf %128, %130 : vector<32x16xbf16>
    %c32_138 = arith.constant 32 : index
    %c0_139 = arith.constant 0 : index
    %132 = vector.load %arg10[%c32_138, %c0_139] : memref<96x16xbf16, #tpu.memory_space<vmem>>, vector<32x16xbf16>
    tpu.vector_store %arg10[%c32_138, %c0_139], %131 {strides = array<i32>} : memref<96x16xbf16, #tpu.memory_space<vmem>>, vector<32x16xbf16>,
    %c32_140 = arith.constant 32 : index
    %c0_141 = arith.constant 0 : index
    %133 = vector.load %arg10[%c32_140, %c0_141] : memref<96x16xbf16, #tpu.memory_space<vmem>>, vector<32x16xbf16>
    %c0_142 = arith.constant 0 : index
    %c0_143 = arith.constant 0 : index
    %134 = vector.load %arg12[%c0_142, %c0_143] : memref<32x560xbf16, #tpu.memory_space<vmem>>, vector<32x16xbf16>
    tpu.vector_store %arg12[%c0_142, %c0_143], %133 {strides = array<i32>} : memref<32x560xbf16, #tpu.memory_space<vmem>>, vector<32x16xbf16>,
    %c23_144 = arith.constant 23 : index
    %c0_145 = arith.constant 0 : index
    %135 = vector.load %arg10[%c23_144, %c0_145] : memref<96x16xbf16, #tpu.memory_space<vmem>>, vector<32x16xbf16>
    %c0_146 = arith.constant 0 : index
    %c16_147 = arith.constant 16 : index
    %136 = vector.load %arg12[%c0_146, %c16_147] : memref<32x560xbf16, #tpu.memory_space<vmem>>, vector<32x16xbf16>
    tpu.vector_store %arg12[%c0_146, %c16_147], %135 {strides = array<i32>} : memref<32x560xbf16, #tpu.memory_space<vmem>>, vector<32x16xbf16>,
    %c24_148 = arith.constant 24 : index
    %c0_149 = arith.constant 0 : index
    %137 = vector.load %arg10[%c24_148, %c0_149] : memref<96x16xbf16, #tpu.memory_space<vmem>>, vector<32x16xbf16>
    %c0_150 = arith.constant 0 : index
    %c32_151 = arith.constant 32 : index
    %138 = vector.load %arg12[%c0_150, %c32_151] : memref<32x560xbf16, #tpu.memory_space<vmem>>, vector<32x16xbf16>
    tpu.vector_store %arg12[%c0_150, %c32_151], %137 {strides = array<i32>} : memref<32x560xbf16, #tpu.memory_space<vmem>>, vector<32x16xbf16>,
    %c25_152 = arith.constant 25 : index
    %c0_153 = arith.constant 0 : index
    %139 = vector.load %arg10[%c25_152, %c0_153] : memref<96x16xbf16, #tpu.memory_space<vmem>>, vector<32x16xbf16>
    %c0_154 = arith.constant 0 : index
    %c48_155 = arith.constant 48 : index
    %140 = vector.load %arg12[%c0_154, %c48_155] : memref<32x560xbf16, #tpu.memory_space<vmem>>, vector<32x16xbf16>
    tpu.vector_store %arg12[%c0_154, %c48_155], %139 {strides = array<i32>} : memref<32x560xbf16, #tpu.memory_space<vmem>>, vector<32x16xbf16>,
    %c31_156 = arith.constant 31 : index
    %c0_157 = arith.constant 0 : index
    %141 = vector.load %arg10[%c31_156, %c0_157] : memref<96x16xbf16, #tpu.memory_space<vmem>>, vector<32x16xbf16>
    %c0_158 = arith.constant 0 : index
    %c64_159 = arith.constant 64 : index
    %142 = vector.load %arg12[%c0_158, %c64_159] : memref<32x560xbf16, #tpu.memory_space<vmem>>, vector<32x16xbf16>
    tpu.vector_store %arg12[%c0_158, %c64_159], %141 {strides = array<i32>} : memref<32x560xbf16, #tpu.memory_space<vmem>>, vector<32x16xbf16>,
    %c32_160 = arith.constant 32 : index
    %c0_161 = arith.constant 0 : index
    %143 = vector.load %arg10[%c32_160, %c0_161] : memref<96x16xbf16, #tpu.memory_space<vmem>>, vector<32x16xbf16>
    %c0_162 = arith.constant 0 : index
    %c80_163 = arith.constant 80 : index
    %144 = vector.load %arg12[%c0_162, %c80_163] : memref<32x560xbf16, #tpu.memory_space<vmem>>, vector<32x16xbf16>
    tpu.vector_store %arg12[%c0_162, %c80_163], %143 {strides = array<i32>} : memref<32x560xbf16, #tpu.memory_space<vmem>>, vector<32x16xbf16>,
    %c33_164 = arith.constant 33 : index
    %c0_165 = arith.constant 0 : index
    %145 = vector.load %arg10[%c33_164, %c0_165] : memref<96x16xbf16, #tpu.memory_space<vmem>>, vector<32x16xbf16>
    %c0_166 = arith.constant 0 : index
    %c96_167 = arith.constant 96 : index
    %146 = vector.load %arg12[%c0_166, %c96_167] : memref<32x560xbf16, #tpu.memory_space<vmem>>, vector<32x16xbf16>
    tpu.vector_store %arg12[%c0_166, %c96_167], %145 {strides = array<i32>} : memref<32x560xbf16, #tpu.memory_space<vmem>>, vector<32x16xbf16>,
    %c39_168 = arith.constant 39 : index
    %c0_169 = arith.constant 0 : index
    %147 = vector.load %arg10[%c39_168, %c0_169] : memref<96x16xbf16, #tpu.memory_space<vmem>>, vector<32x16xbf16>
    %c0_170 = arith.constant 0 : index
    %c112_171 = arith.constant 112 : index
    %148 = vector.load %arg12[%c0_170, %c112_171] : memref<32x560xbf16, #tpu.memory_space<vmem>>, vector<32x16xbf16>
    tpu.vector_store %arg12[%c0_170, %c112_171], %147 {strides = array<i32>} : memref<32x560xbf16, #tpu.memory_space<vmem>>, vector<32x16xbf16>,
    %c40_172 = arith.constant 40 : index
    %c0_173 = arith.constant 0 : index
    %149 = vector.load %arg10[%c40_172, %c0_173] : memref<96x16xbf16, #tpu.memory_space<vmem>>, vector<32x16xbf16>
    %c0_174 = arith.constant 0 : index
    %c128_175 = arith.constant 128 : index
    %150 = vector.load %arg12[%c0_174, %c128_175] : memref<32x560xbf16, #tpu.memory_space<vmem>>, vector<32x16xbf16>
    tpu.vector_store %arg12[%c0_174, %c128_175], %149 {strides = array<i32>} : memref<32x560xbf16, #tpu.memory_space<vmem>>, vector<32x16xbf16>,
    %c41_176 = arith.constant 41 : index
    %c0_177 = arith.constant 0 : index
    %151 = vector.load %arg10[%c41_176, %c0_177] : memref<96x16xbf16, #tpu.memory_space<vmem>>, vector<32x16xbf16>
    %c0_178 = arith.constant 0 : index
    %c144_179 = arith.constant 144 : index
    %152 = vector.load %arg12[%c0_178, %c144_179] : memref<32x560xbf16, #tpu.memory_space<vmem>>, vector<32x16xbf16>
    tpu.vector_store %arg12[%c0_178, %c144_179], %151 {strides = array<i32>} : memref<32x560xbf16, #tpu.memory_space<vmem>>, vector<32x16xbf16>,
    %c14_180 = arith.constant 14 : index
    %c0_181 = arith.constant 0 : index
    %153 = vector.load %arg10[%c14_180, %c0_181] : memref<96x16xbf16, #tpu.memory_space<vmem>>, vector<32x16xbf16>
    %c0_182 = arith.constant 0 : index
    %c160_183 = arith.constant 160 : index
    %154 = vector.load %arg12[%c0_182, %c160_183] : memref<32x560xbf16, #tpu.memory_space<vmem>>, vector<32x16xbf16>
    tpu.vector_store %arg12[%c0_182, %c160_183], %153 {strides = array<i32>} : memref<32x560xbf16, #tpu.memory_space<vmem>>, vector<32x16xbf16>,
    %c15_184 = arith.constant 15 : index
    %c0_185 = arith.constant 0 : index
    %155 = vector.load %arg10[%c15_184, %c0_185] : memref<96x16xbf16, #tpu.memory_space<vmem>>, vector<32x16xbf16>
    %c0_186 = arith.constant 0 : index
    %c176_187 = arith.constant 176 : index
    %156 = vector.load %arg12[%c0_186, %c176_187] : memref<32x560xbf16, #tpu.memory_space<vmem>>, vector<32x16xbf16>
    tpu.vector_store %arg12[%c0_186, %c176_187], %155 {strides = array<i32>} : memref<32x560xbf16, #tpu.memory_space<vmem>>, vector<32x16xbf16>,
    %c16_188 = arith.constant 16 : index
    %c0_189 = arith.constant 0 : index
    %157 = vector.load %arg10[%c16_188, %c0_189] : memref<96x16xbf16, #tpu.memory_space<vmem>>, vector<32x16xbf16>
    %c0_190 = arith.constant 0 : index
    %c192_191 = arith.constant 192 : index
    %158 = vector.load %arg12[%c0_190, %c192_191] : memref<32x560xbf16, #tpu.memory_space<vmem>>, vector<32x16xbf16>
    tpu.vector_store %arg12[%c0_190, %c192_191], %157 {strides = array<i32>} : memref<32x560xbf16, #tpu.memory_space<vmem>>, vector<32x16xbf16>,
    %c17_192 = arith.constant 17 : index
    %c0_193 = arith.constant 0 : index
    %159 = vector.load %arg10[%c17_192, %c0_193] : memref<96x16xbf16, #tpu.memory_space<vmem>>, vector<32x16xbf16>
    %c0_194 = arith.constant 0 : index
    %c208_195 = arith.constant 208 : index
    %160 = vector.load %arg12[%c0_194, %c208_195] : memref<32x560xbf16, #tpu.memory_space<vmem>>, vector<32x16xbf16>
    tpu.vector_store %arg12[%c0_194, %c208_195], %159 {strides = array<i32>} : memref<32x560xbf16, #tpu.memory_space<vmem>>, vector<32x16xbf16>,
    %c18_196 = arith.constant 18 : index
    %c0_197 = arith.constant 0 : index
    %161 = vector.load %arg10[%c18_196, %c0_197] : memref<96x16xbf16, #tpu.memory_space<vmem>>, vector<32x16xbf16>
    %c0_198 = arith.constant 0 : index
    %c224_199 = arith.constant 224 : index
    %162 = vector.load %arg12[%c0_198, %c224_199] : memref<32x560xbf16, #tpu.memory_space<vmem>>, vector<32x16xbf16>
    tpu.vector_store %arg12[%c0_198, %c224_199], %161 {strides = array<i32>} : memref<32x560xbf16, #tpu.memory_space<vmem>>, vector<32x16xbf16>,
    %c22_200 = arith.constant 22 : index
    %c0_201 = arith.constant 0 : index
    %163 = vector.load %arg10[%c22_200, %c0_201] : memref<96x16xbf16, #tpu.memory_space<vmem>>, vector<32x16xbf16>
    %c0_202 = arith.constant 0 : index
    %c240_203 = arith.constant 240 : index
    %164 = vector.load %arg12[%c0_202, %c240_203] : memref<32x560xbf16, #tpu.memory_space<vmem>>, vector<32x16xbf16>
    tpu.vector_store %arg12[%c0_202, %c240_203], %163 {strides = array<i32>} : memref<32x560xbf16, #tpu.memory_space<vmem>>, vector<32x16xbf16>,
    %c23_204 = arith.constant 23 : index
    %c0_205 = arith.constant 0 : index
    %165 = vector.load %arg10[%c23_204, %c0_205] : memref<96x16xbf16, #tpu.memory_space<vmem>>, vector<32x16xbf16>
    %c0_206 = arith.constant 0 : index
    %c256_207 = arith.constant 256 : index
    %166 = vector.load %arg12[%c0_206, %c256_207] : memref<32x560xbf16, #tpu.memory_space<vmem>>, vector<32x16xbf16>
    tpu.vector_store %arg12[%c0_206, %c256_207], %165 {strides = array<i32>} : memref<32x560xbf16, #tpu.memory_space<vmem>>, vector<32x16xbf16>,
    %c24_208 = arith.constant 24 : index
    %c0_209 = arith.constant 0 : index
    %167 = vector.load %arg10[%c24_208, %c0_209] : memref<96x16xbf16, #tpu.memory_space<vmem>>, vector<32x16xbf16>
    %c0_210 = arith.constant 0 : index
    %c272_211 = arith.constant 272 : index
    %168 = vector.load %arg12[%c0_210, %c272_211] : memref<32x560xbf16, #tpu.memory_space<vmem>>, vector<32x16xbf16>
    tpu.vector_store %arg12[%c0_210, %c272_211], %167 {strides = array<i32>} : memref<32x560xbf16, #tpu.memory_space<vmem>>, vector<32x16xbf16>,
    %c25_212 = arith.constant 25 : index
    %c0_213 = arith.constant 0 : index
    %169 = vector.load %arg10[%c25_212, %c0_213] : memref<96x16xbf16, #tpu.memory_space<vmem>>, vector<32x16xbf16>
    %c0_214 = arith.constant 0 : index
    %c288 = arith.constant 288 : index
    %170 = vector.load %arg12[%c0_214, %c288] : memref<32x560xbf16, #tpu.memory_space<vmem>>, vector<32x16xbf16>
    tpu.vector_store %arg12[%c0_214, %c288], %169 {strides = array<i32>} : memref<32x560xbf16, #tpu.memory_space<vmem>>, vector<32x16xbf16>,
    %c26_215 = arith.constant 26 : index
    %c0_216 = arith.constant 0 : index
    %171 = vector.load %arg10[%c26_215, %c0_216] : memref<96x16xbf16, #tpu.memory_space<vmem>>, vector<32x16xbf16>
    %c0_217 = arith.constant 0 : index
    %c304 = arith.constant 304 : index
    %172 = vector.load %arg12[%c0_217, %c304] : memref<32x560xbf16, #tpu.memory_space<vmem>>, vector<32x16xbf16>
    tpu.vector_store %arg12[%c0_217, %c304], %171 {strides = array<i32>} : memref<32x560xbf16, #tpu.memory_space<vmem>>, vector<32x16xbf16>,
    %c30_218 = arith.constant 30 : index
    %c0_219 = arith.constant 0 : index
    %173 = vector.load %arg10[%c30_218, %c0_219] : memref<96x16xbf16, #tpu.memory_space<vmem>>, vector<32x16xbf16>
    %c0_220 = arith.constant 0 : index
    %c320 = arith.constant 320 : index
    %174 = vector.load %arg12[%c0_220, %c320] : memref<32x560xbf16, #tpu.memory_space<vmem>>, vector<32x16xbf16>
    tpu.vector_store %arg12[%c0_220, %c320], %173 {strides = array<i32>} : memref<32x560xbf16, #tpu.memory_space<vmem>>, vector<32x16xbf16>,
    %c31_221 = arith.constant 31 : index
    %c0_222 = arith.constant 0 : index
    %175 = vector.load %arg10[%c31_221, %c0_222] : memref<96x16xbf16, #tpu.memory_space<vmem>>, vector<32x16xbf16>
    %c0_223 = arith.constant 0 : index
    %c336 = arith.constant 336 : index
    %176 = vector.load %arg12[%c0_223, %c336] : memref<32x560xbf16, #tpu.memory_space<vmem>>, vector<32x16xbf16>
    tpu.vector_store %arg12[%c0_223, %c336], %175 {strides = array<i32>} : memref<32x560xbf16, #tpu.memory_space<vmem>>, vector<32x16xbf16>,
    %c32_224 = arith.constant 32 : index
    %c0_225 = arith.constant 0 : index
    %177 = vector.load %arg10[%c32_224, %c0_225] : memref<96x16xbf16, #tpu.memory_space<vmem>>, vector<32x16xbf16>
    %c0_226 = arith.constant 0 : index
    %c352 = arith.constant 352 : index
    %178 = vector.load %arg12[%c0_226, %c352] : memref<32x560xbf16, #tpu.memory_space<vmem>>, vector<32x16xbf16>
    tpu.vector_store %arg12[%c0_226, %c352], %177 {strides = array<i32>} : memref<32x560xbf16, #tpu.memory_space<vmem>>, vector<32x16xbf16>,
    %c33_227 = arith.constant 33 : index
    %c0_228 = arith.constant 0 : index
    %179 = vector.load %arg10[%c33_227, %c0_228] : memref<96x16xbf16, #tpu.memory_space<vmem>>, vector<32x16xbf16>
    %c0_229 = arith.constant 0 : index
    %c368 = arith.constant 368 : index
    %180 = vector.load %arg12[%c0_229, %c368] : memref<32x560xbf16, #tpu.memory_space<vmem>>, vector<32x16xbf16>
    tpu.vector_store %arg12[%c0_229, %c368], %179 {strides = array<i32>} : memref<32x560xbf16, #tpu.memory_space<vmem>>, vector<32x16xbf16>,
    %c34_230 = arith.constant 34 : index
    %c0_231 = arith.constant 0 : index
    %181 = vector.load %arg10[%c34_230, %c0_231] : memref<96x16xbf16, #tpu.memory_space<vmem>>, vector<32x16xbf16>
    %c0_232 = arith.constant 0 : index
    %c384 = arith.constant 384 : index
    %182 = vector.load %arg12[%c0_232, %c384] : memref<32x560xbf16, #tpu.memory_space<vmem>>, vector<32x16xbf16>
    tpu.vector_store %arg12[%c0_232, %c384], %181 {strides = array<i32>} : memref<32x560xbf16, #tpu.memory_space<vmem>>, vector<32x16xbf16>,
    %c38_233 = arith.constant 38 : index
    %c0_234 = arith.constant 0 : index
    %183 = vector.load %arg10[%c38_233, %c0_234] : memref<96x16xbf16, #tpu.memory_space<vmem>>, vector<32x16xbf16>
    %c0_235 = arith.constant 0 : index
    %c400 = arith.constant 400 : index
    %184 = vector.load %arg12[%c0_235, %c400] : memref<32x560xbf16, #tpu.memory_space<vmem>>, vector<32x16xbf16>
    tpu.vector_store %arg12[%c0_235, %c400], %183 {strides = array<i32>} : memref<32x560xbf16, #tpu.memory_space<vmem>>, vector<32x16xbf16>,
    %c39_236 = arith.constant 39 : index
    %c0_237 = arith.constant 0 : index
    %185 = vector.load %arg10[%c39_236, %c0_237] : memref<96x16xbf16, #tpu.memory_space<vmem>>, vector<32x16xbf16>
    %c0_238 = arith.constant 0 : index
    %c416 = arith.constant 416 : index
    %186 = vector.load %arg12[%c0_238, %c416] : memref<32x560xbf16, #tpu.memory_space<vmem>>, vector<32x16xbf16>
    tpu.vector_store %arg12[%c0_238, %c416], %185 {strides = array<i32>} : memref<32x560xbf16, #tpu.memory_space<vmem>>, vector<32x16xbf16>,
    %c40_239 = arith.constant 40 : index
    %c0_240 = arith.constant 0 : index
    %187 = vector.load %arg10[%c40_239, %c0_240] : memref<96x16xbf16, #tpu.memory_space<vmem>>, vector<32x16xbf16>
    %c0_241 = arith.constant 0 : index
    %c432 = arith.constant 432 : index
    %188 = vector.load %arg12[%c0_241, %c432] : memref<32x560xbf16, #tpu.memory_space<vmem>>, vector<32x16xbf16>
    tpu.vector_store %arg12[%c0_241, %c432], %187 {strides = array<i32>} : memref<32x560xbf16, #tpu.memory_space<vmem>>, vector<32x16xbf16>,
    %c41_242 = arith.constant 41 : index
    %c0_243 = arith.constant 0 : index
    %189 = vector.load %arg10[%c41_242, %c0_243] : memref<96x16xbf16, #tpu.memory_space<vmem>>, vector<32x16xbf16>
    %c0_244 = arith.constant 0 : index
    %c448 = arith.constant 448 : index
    %190 = vector.load %arg12[%c0_244, %c448] : memref<32x560xbf16, #tpu.memory_space<vmem>>, vector<32x16xbf16>
    tpu.vector_store %arg12[%c0_244, %c448], %189 {strides = array<i32>} : memref<32x560xbf16, #tpu.memory_space<vmem>>, vector<32x16xbf16>,
    %c42_245 = arith.constant 42 : index
    %c0_246 = arith.constant 0 : index
    %191 = vector.load %arg10[%c42_245, %c0_246] : memref<96x16xbf16, #tpu.memory_space<vmem>>, vector<32x16xbf16>
    %c0_247 = arith.constant 0 : index
    %c464 = arith.constant 464 : index
    %192 = vector.load %arg12[%c0_247, %c464] : memref<32x560xbf16, #tpu.memory_space<vmem>>, vector<32x16xbf16>
    tpu.vector_store %arg12[%c0_247, %c464], %191 {strides = array<i32>} : memref<32x560xbf16, #tpu.memory_space<vmem>>, vector<32x16xbf16>,
    %c46_248 = arith.constant 46 : index
    %c0_249 = arith.constant 0 : index
    %193 = vector.load %arg10[%c46_248, %c0_249] : memref<96x16xbf16, #tpu.memory_space<vmem>>, vector<32x16xbf16>
    %c0_250 = arith.constant 0 : index
    %c480 = arith.constant 480 : index
    %194 = vector.load %arg12[%c0_250, %c480] : memref<32x560xbf16, #tpu.memory_space<vmem>>, vector<32x16xbf16>
    tpu.vector_store %arg12[%c0_250, %c480], %193 {strides = array<i32>} : memref<32x560xbf16, #tpu.memory_space<vmem>>, vector<32x16xbf16>,
    %c47_251 = arith.constant 47 : index
    %c0_252 = arith.constant 0 : index
    %195 = vector.load %arg10[%c47_251, %c0_252] : memref<96x16xbf16, #tpu.memory_space<vmem>>, vector<32x16xbf16>
    %c0_253 = arith.constant 0 : index
    %c496 = arith.constant 496 : index
    %196 = vector.load %arg12[%c0_253, %c496] : memref<32x560xbf16, #tpu.memory_space<vmem>>, vector<32x16xbf16>
    tpu.vector_store %arg12[%c0_253, %c496], %195 {strides = array<i32>} : memref<32x560xbf16, #tpu.memory_space<vmem>>, vector<32x16xbf16>,
    %c48_254 = arith.constant 48 : index
    %c0_255 = arith.constant 0 : index
    %197 = vector.load %arg10[%c48_254, %c0_255] : memref<96x16xbf16, #tpu.memory_space<vmem>>, vector<32x16xbf16>
    %c0_256 = arith.constant 0 : index
    %c512 = arith.constant 512 : index
    %198 = vector.load %arg12[%c0_256, %c512] : memref<32x560xbf16, #tpu.memory_space<vmem>>, vector<32x16xbf16>
    tpu.vector_store %arg12[%c0_256, %c512], %197 {strides = array<i32>} : memref<32x560xbf16, #tpu.memory_space<vmem>>, vector<32x16xbf16>,
    %c49_257 = arith.constant 49 : index
    %c0_258 = arith.constant 0 : index
    %199 = vector.load %arg10[%c49_257, %c0_258] : memref<96x16xbf16, #tpu.memory_space<vmem>>, vector<32x16xbf16>
    %c0_259 = arith.constant 0 : index
    %c528 = arith.constant 528 : index
    %200 = vector.load %arg12[%c0_259, %c528] : memref<32x560xbf16, #tpu.memory_space<vmem>>, vector<32x16xbf16>
    tpu.vector_store %arg12[%c0_259, %c528], %199 {strides = array<i32>} : memref<32x560xbf16, #tpu.memory_space<vmem>>, vector<32x16xbf16>,
    %c50_260 = arith.constant 50 : index
    %c0_261 = arith.constant 0 : index
    %201 = vector.load %arg10[%c50_260, %c0_261] : memref<96x16xbf16, #tpu.memory_space<vmem>>, vector<32x16xbf16>
    %c0_262 = arith.constant 0 : index
    %c544 = arith.constant 544 : index
    %202 = vector.load %arg12[%c0_262, %c544] : memref<32x560xbf16, #tpu.memory_space<vmem>>, vector<32x16xbf16>
    tpu.vector_store %arg12[%c0_262, %c544], %201 {strides = array<i32>} : memref<32x560xbf16, #tpu.memory_space<vmem>>, vector<32x16xbf16>,
    %c0_263 = arith.constant 0 : index
    %c0_264 = arith.constant 0 : index
    %203 = vector.load %arg12[%c0_263, %c0_264] : memref<32x560xbf16, #tpu.memory_space<vmem>>, vector<32x560xbf16>
    %c0_265 = arith.constant 0 : index
    %c0_266 = arith.constant 0 : index
    %204 = vector.load %arg4[%c0_265, %c0_266] : memref<560x8xbf16, #tpu.memory_space<vmem>>, vector<560x8xbf16>
    %cst_267 = arith.constant dense<0.000000e+00> : vector<32x8xf32>
    %205 = tpu.matmul %203, %204, %cst_267 {dimension_numbers = #tpu.dot_dimension_numbers<[1], [0], [0], [1], [0, 0, 1, 1], [], []>} : vector<32x560xbf16>, vector<560x8xbf16>, vector<32x8xf32> -> vector<32x8xf32>
    %c0_268 = arith.constant 0 : index
    %c0_269 = arith.constant 0 : index
    %206 = vector.load %arg5[%c0_268, %c0_269] : memref<1x8xf32, #tpu.memory_space<vmem>>, vector<1x8xf32>
    %207 = vector.broadcast %206 : vector<1x8xf32> to vector<32x8xf32>
    %208 = arith.addf %205, %207 : vector<32x8xf32>
    %c0_270 = arith.constant 0 : index
    %c0_271 = arith.constant 0 : index
    %209 = vector.load %arg13[%c0_270, %c0_271] : memref<32x8xf32, #tpu.memory_space<vmem>>, vector<32x8xf32>
    tpu.vector_store %arg13[%c0_270, %c0_271], %208 {strides = array<i32>} : memref<32x8xf32, #tpu.memory_space<vmem>>, vector<32x8xf32>,
    %c2 = arith.constant 2 : index
    %c0_272 = arith.constant 0 : index
    %210 = vector.load %arg13[%c2, %c0_272] : memref<32x8xf32, #tpu.memory_space<vmem>>, vector<4x8xf32>
    %c10 = arith.constant 10 : index
    %c0_273 = arith.constant 0 : index
    %211 = vector.load %arg13[%c10, %c0_273] : memref<32x8xf32, #tpu.memory_space<vmem>>, vector<4x8xf32>
    %c18_274 = arith.constant 18 : index
    %c0_275 = arith.constant 0 : index
    %212 = vector.load %arg13[%c18_274, %c0_275] : memref<32x8xf32, #tpu.memory_space<vmem>>, vector<4x8xf32>
    %c26_276 = arith.constant 26 : index
    %c0_277 = arith.constant 0 : index
    %213 = vector.load %arg13[%c26_276, %c0_277] : memref<32x8xf32, #tpu.memory_space<vmem>>, vector<4x8xf32>
    %214 = tpu.concatenate %210, %211, %212, %213 in 0 : vector<4x8xf32>, vector<4x8xf32>, vector<4x8xf32>, vector<4x8xf32> -> vector<16x8xf32>
    %c0_278 = arith.constant 0 : index
    %c0_279 = arith.constant 0 : index
    %c0_280 = arith.constant 0 : index
    %215 = vector.load %arg8[%c0_278, %c0_279, %c0_280] : memref<1x16x8xf32, #tpu.memory_space<vmem>>, vector<1x16x8xf32>
    %216 = vector.shape_cast %215 : vector<1x16x8xf32> to vector<16x8xf32>
    %c0_281 = arith.constant 0 : index
    %c0_282 = arith.constant 0 : index
    %c0_283 = arith.constant 0 : index
    %217 = vector.load %arg7[%c0_281, %c0_282, %c0_283] : memref<1x1x1xf32, #tpu.memory_space<vmem>>, vector<1x1x1xf32>
    %218 = vector.shape_cast %217 : vector<1x1x1xf32> to vector<1x1xf32>
    %219 = vector.broadcast %218 : vector<1x1xf32> to vector<16x8xf32>
    %220 = arith.mulf %219, %214 : vector<16x8xf32>
    %221 = arith.addf %216, %220 : vector<16x8xf32>
    %c0_284 = arith.constant 0 : index
    %c0_285 = arith.constant 0 : index
    %c0_286 = arith.constant 0 : index
    %222 = vector.load %arg9[%c0_284, %c0_285, %c0_286] : memref<1x16x8xf32, #tpu.memory_space<vmem>>, vector<1x16x8xf32>
    %223 = vector.shape_cast %222 : vector<1x16x8xf32> to vector<16x8xf32>
    %224 = vector.shape_cast %221 : vector<16x8xf32> to vector<1x16x8xf32>
    tpu.vector_store %arg9[%c0_284, %c0_285, %c0_286], %224 {strides = array<i32>} : memref<1x16x8xf32, #tpu.memory_space<vmem>>, vector<1x16x8xf32>,
    return
  }
  func.func @transform_0(%arg0: i32) -> (i32, i32, i32) {
    %c0_i32 = arith.constant 0 : i32
    %c0_i32_0 = arith.constant 0 : i32
    %c0_i32_1 = arith.constant 0 : i32
    return %arg0, %c0_i32, %c0_i32_0 : i32, i32, i32
  }
  func.func @transform_1(%arg0: i32) -> (i32, i32) {
    %c0_i32 = arith.constant 0 : i32
    %c0_i32_0 = arith.constant 0 : i32
    %c0_i32_1 = arith.constant 0 : i32
    return %c0_i32, %c0_i32_0 : i32, i32
  }
  func.func @transform_2(%arg0: i32) -> (i32, i32) {
    %c0_i32 = arith.constant 0 : i32
    %c0_i32_0 = arith.constant 0 : i32
    %c0_i32_1 = arith.constant 0 : i32
    return %c0_i32, %c0_i32_0 : i32, i32
  }
  func.func @transform_3(%arg0: i32) -> (i32, i32) {
    %c0_i32 = arith.constant 0 : i32
    %c0_i32_0 = arith.constant 0 : i32
    %c0_i32_1 = arith.constant 0 : i32
    return %c0_i32, %c0_i32_0 : i32, i32
  }
  func.func @transform_4(%arg0: i32) -> (i32, i32) {
    %c0_i32 = arith.constant 0 : i32
    %c0_i32_0 = arith.constant 0 : i32
    %c0_i32_1 = arith.constant 0 : i32
    return %c0_i32, %c0_i32_0 : i32, i32
  }
  func.func @transform_5(%arg0: i32) -> (i32, i32) {
    %c0_i32 = arith.constant 0 : i32
    %c0_i32_0 = arith.constant 0 : i32
    %c0_i32_1 = arith.constant 0 : i32
    return %c0_i32, %c0_i32_0 : i32, i32
  }
  func.func @transform_6(%arg0: i32) -> (i32, i32, i32) {
    %c0_i32 = arith.constant 0 : i32
    %c0_i32_0 = arith.constant 0 : i32
    %c0_i32_1 = arith.constant 0 : i32
    return %arg0, %c0_i32, %c0_i32_0 : i32, i32, i32
  }
  func.func @transform_7(%arg0: i32) -> (i32, i32, i32) {
    %c0_i32 = arith.constant 0 : i32
    %c0_i32_0 = arith.constant 0 : i32
    %c0_i32_1 = arith.constant 0 : i32
    return %arg0, %c0_i32, %c0_i32_0 : i32, i32, i32
  }
  func.func @transform_8(%arg0: i32) -> (i32, i32, i32) {
    %c0_i32 = arith.constant 0 : i32
    %c0_i32_0 = arith.constant 0 : i32
    %c0_i32_1 = arith.constant 0 : i32
    return %arg0, %c0_i32, %c0_i32_0 : i32, i32, i32
  }
}

</mosaic_0001>

<llo_original>
// kernel: tpu_custom_call.1
$region0: #{tpu_custom_call.1}
  #allocation0 [shape = 'u32[]', space=smem, size = 0x4, offset = 0x4, fixed_abs, tag = 'smem constant byte address 0x4 - core index']
  #allocation1 [shape = 'u32[144,128]{1,0:T(1,128)}', space=vmem, size = 0x12000, scoped, tag = 'internal scratch']
  #allocation2 [shape = 'bf16[96,16]{1,0:T(8,128)(2,1)}', space=vmem, size = 0x6000, scoped, tag = 'scratch operand']
  #allocation3 [shape = 'bf16[32,280]{1,0:T(8,128)(2,1)}', space=vmem, size = 0x6000, scoped, tag = 'scratch operand']
  #allocation4 [shape = 'bf16[32,560]{1,0:T(8,128)(2,1)}', space=vmem, size = 0xa000, scoped, tag = 'scratch operand']
  #allocation5 [shape = 'f32[32,8]{1,0:T(8,128)}', space=vmem, size = 0x4000, scoped, tag = 'scratch operand']
  %s0 = inlined_call_operand.vmem [shape: bf16[2,96,8], index: 0, kind: input, shape index: {}]
  %s1 = inlined_call_operand.vmem [shape: bf16[280,16], index: 1, kind: input, shape index: {}]
  %s2 = inlined_call_operand.vmem [shape: f32[1,16], index: 2, kind: input, shape index: {}]
  %s3 = inlined_call_operand.vmem [shape: bf16[560,8], index: 3, kind: input, shape index: {}]
  %s4 = inlined_call_operand.vmem [shape: f32[1,8], index: 4, kind: input, shape index: {}]
  %s5 = inlined_call_operand.vmem [shape: bf16[32,1], index: 5, kind: input, shape index: {}]
  %s6 = inlined_call_operand.vmem [shape: f32[2,1,1], index: 6, kind: input, shape index: {}]
  %s7 = inlined_call_operand.vmem [shape: f32[2,16,8], index: 7, kind: input, shape index: {}, may-alias: {7,8}]
  %s8 = inlined_call_operand.vmem [shape: f32[2,16,8], index: 8, kind: output, shape index: {}, may-alias: {7,8}]
  %s9 = sld [smem:[#allocation0]]
  $region65: #{tpu_custom_call.1} parent=0
    _
  %s11 = ssub.s32 1, %s9
  %s12 = scalar_select 0, %s11, %s9
  loop: start=0, step=1, limit=4
  $region2: #{tpu_custom_call.1} parent=0 // loop_pre_header
    _
  $region3: #{tpu_custom_call.1} parent=0 // loop_header
    %s14 = sphi 0, %s18
    %p15 = scmp.ge.s32.totalorder %s14, 4
    %s24 = sphi 0, %s26
    %s27 = sphi 0, %s24
    %s28 = sphi 0, %s27
    %s44 = sphi 0, %s28
    %s48 = sphi 0, %s48
    %s50 = sphi 0, %s48
    %s51 = sphi 0, %s50
    %s65 = sphi 0, %s51
    %s69 = sphi 0, %s69
    %s71 = sphi 0, %s69
    %s72 = sphi 0, %s71
    %s86 = sphi 0, %s72
    %s90 = sphi 0, %s90
    %s92 = sphi 0, %s90
    %s93 = sphi 0, %s92
    %s107 = sphi 0, %s93
    %s111 = sphi 0, %s111
    %s113 = sphi 0, %s111
    %s114 = sphi 0, %s113
    %s128 = sphi 0, %s114
    %s132 = sphi 0, %s132
    %s134 = sphi 0, %s132
    %s135 = sphi 0, %s134
    %s149 = sphi 0, %s135
    %s155 = sphi 0, %s157
    %s158 = sphi 0, %s155
    %s159 = sphi 0, %s158
    %s175 = sphi 0, %s159
    %s181 = sphi 0, %s183
    %s184 = sphi 0, %s181
    %s185 = sphi 0, %s184
    %s201 = sphi 0, %s185
    %s207 = sphi 0, %s209
    %s210 = sphi 0, %s207
    %s211 = sphi 0, %s210
    %s227 = sphi 0, %s211
  $region4: #{tpu_custom_call.1} parent=0 // loop_header_branch
    %17 = sbr.rel (%p15) target = $region8
  $region5: #{tpu_custom_call.1} parent=0 // loop_body
    %s19 = ssub.s32 %s14, 1
    %s20 = ssub.s32 %s14, 2
    %s21 = sadd.s32 %s14, 1
    %s22 = ssub.s32 %s14, %s21
    %p23 = scmp.eq.s32.totalorder %s22, 0
    %s25 = sadd.s32 %s24, 1
    %s26 = scalar_select %p23, %s24, %s25
    %p29 = pneg %p23
    %p30 = scmp.eq.s32.totalorder %s14, 1
    %p31 = por %p29, %p30
    %p32 = scmp.ne.s32.totalorder %s24, %s27
    %p33 = scmp.eq.s32.totalorder %s14, 0
    %p34 = por %p32, %p33
    %p35 = scmp.ne.s32.totalorder %s24, %s27
    %p36 = scmp.eq.s32.totalorder %s19, 1
    %p37 = por %p35, %p36
    %p38 = scmp.ne.s32.totalorder %s27, %s28
    %p39 = scmp.eq.s32.totalorder %s19, 0
    %p40 = por %p38, %p39
    %p41 = scmp.ne.s32.totalorder %s27, %s28
    %p42 = scmp.eq.s32.totalorder %s20, 1
    %p43 = por %p41, %p42
    %p45 = scmp.ne.s32.totalorder %s28, %s44
    %p46 = scmp.eq.s32.totalorder %s20, 0
    %p47 = por %p45, %p46
    %s49 = sadd.s32 %s48, 1
    %p52 = scmp.eq.s32.totalorder %s14, 1
    %p53 = scmp.ne.s32.totalorder %s48, %s50
    %p54 = scmp.eq.s32.totalorder %s14, 0
    %p55 = por %p53, %p54
    %p56 = scmp.ne.s32.totalorder %s48, %s50
    %p57 = scmp.eq.s32.totalorder %s19, 1
    %p58 = por %p56, %p57
    %p59 = scmp.ne.s32.totalorder %s50, %s51
    %p60 = scmp.eq.s32.totalorder %s19, 0
    %p61 = por %p59, %p60
    %p62 = scmp.ne.s32.totalorder %s50, %s51
    %p63 = scmp.eq.s32.totalorder %s20, 1
    %p64 = por %p62, %p63
    %p66 = scmp.ne.s32.totalorder %s51, %s65
    %p67 = scmp.eq.s32.totalorder %s20, 0
    %p68 = por %p66, %p67
    %s70 = sadd.s32 %s69, 1
    %p73 = scmp.eq.s32.totalorder %s14, 1
    %p74 = scmp.ne.s32.totalorder %s69, %s71
    %p75 = scmp.eq.s32.totalorder %s14, 0
    %p76 = por %p74, %p75
    %p77 = scmp.ne.s32.totalorder %s69, %s71
    %p78 = scmp.eq.s32.totalorder %s19, 1
    %p79 = por %p77, %p78
    %p80 = scmp.ne.s32.totalorder %s71, %s72
    %p81 = scmp.eq.s32.totalorder %s19, 0
    %p82 = por %p80, %p81
    %p83 = scmp.ne.s32.totalorder %s71, %s72
    %p84 = scmp.eq.s32.totalorder %s20, 1
    %p85 = por %p83, %p84
    %p87 = scmp.ne.s32.totalorder %s72, %s86
    %p88 = scmp.eq.s32.totalorder %s20, 0
    %p89 = por %p87, %p88
    %s91 = sadd.s32 %s90, 1
    %p94 = scmp.eq.s32.totalorder %s14, 1
    %p95 = scmp.ne.s32.totalorder %s90, %s92
    %p96 = scmp.eq.s32.totalorder %s14, 0
    %p97 = por %p95, %p96
    %p98 = scmp.ne.s32.totalorder %s90, %s92
    %p99 = scmp.eq.s32.totalorder %s19, 1
    %p100 = por %p98, %p99
    %p101 = scmp.ne.s32.totalorder %s92, %s93
    %p102 = scmp.eq.s32.totalorder %s19, 0
    %p103 = por %p101, %p102
    %p104 = scmp.ne.s32.totalorder %s92, %s93
    %p105 = scmp.eq.s32.totalorder %s20, 1
    %p106 = por %p104, %p105
    %p108 = scmp.ne.s32.totalorder %s93, %s107
    %p109 = scmp.eq.s32.totalorder %s20, 0
    %p110 = por %p108, %p109
    %s112 = sadd.s32 %s111, 1
    %p115 = scmp.eq.s32.totalorder %s14, 1
    %p116 = scmp.ne.s32.totalorder %s111, %s113
    %p117 = scmp.eq.s32.totalorder %s14, 0
    %p118 = por %p116, %p117
    %p119 = scmp.ne.s32.totalorder %s111, %s113
    %p120 = scmp.eq.s32.totalorder %s19, 1
    %p121 = por %p119, %p120
    %p122 = scmp.ne.s32.totalorder %s113, %s114
    %p123 = scmp.eq.s32.totalorder %s19, 0
    %p124 = por %p122, %p123
    %p125 = scmp.ne.s32.totalorder %s113, %s114
    %p126 = scmp.eq.s32.totalorder %s20, 1
    %p127 = por %p125, %p126
    %p129 = scmp.ne.s32.totalorder %s114, %s128
    %p130 = scmp.eq.s32.totalorder %s20, 0
    %p131 = por %p129, %p130
    %s133 = sadd.s32 %s132, 1
    %p136 = scmp.eq.s32.totalorder %s14, 1
    %p137 = scmp.ne.s32.totalorder %s132, %s134
    %p138 = scmp.eq.s32.totalorder %s14, 0
    %p139 = por %p137, %p138
    %p140 = scmp.ne.s32.totalorder %s132, %s134
    %p141 = scmp.eq.s32.totalorder %s19, 1
    %p142 = por %p140, %p141
    %p143 = scmp.ne.s32.totalorder %s134, %s135
    %p144 = scmp.eq.s32.totalorder %s19, 0
    %p145 = por %p143, %p144
    %p146 = scmp.ne.s32.totalorder %s134, %s135
    %p147 = scmp.eq.s32.totalorder %s20, 1
    %p148 = por %p146, %p147
    %p150 = scmp.ne.s32.totalorder %s135, %s149
    %p151 = scmp.eq.s32.totalorder %s20, 0
    %p152 = por %p150, %p151
    %s153 = ssub.s32 %s14, %s21
    %p154 = scmp.eq.s32.totalorder %s153, 0
    %s156 = sadd.s32 %s155, 1
    %s157 = scalar_select %p154, %s155, %s156
    %p160 = pneg %p154
    %p161 = scmp.eq.s32.totalorder %s14, 1
    %p162 = por %p160, %p161
    %p163 = scmp.ne.s32.totalorder %s155, %s158
    %p164 = scmp.eq.s32.totalorder %s14, 0
    %p165 = por %p163, %p164
    %p166 = scmp.ne.s32.totalorder %s155, %s158
    %p167 = scmp.eq.s32.totalorder %s19, 1
    %p168 = por %p166, %p167
    %p169 = scmp.ne.s32.totalorder %s158, %s159
    %p170 = scmp.eq.s32.totalorder %s19, 0
    %p171 = por %p169, %p170
    %p172 = scmp.ne.s32.totalorder %s158, %s159
    %p173 = scmp.eq.s32.totalorder %s20, 1
    %p174 = por %p172, %p173
    %p176 = scmp.ne.s32.totalorder %s159, %s175
    %p177 = scmp.eq.s32.totalorder %s20, 0
    %p178 = por %p176, %p177
    %s179 = ssub.s32 %s14, %s21
    %p180 = scmp.eq.s32.totalorder %s179, 0
    %s182 = sadd.s32 %s181, 1
    %s183 = scalar_select %p180, %s181, %s182
    %p186 = pneg %p180
    %p187 = scmp.eq.s32.totalorder %s14, 1
    %p188 = por %p186, %p187
    %p189 = scmp.ne.s32.totalorder %s181, %s184
    %p190 = scmp.eq.s32.totalorder %s14, 0
    %p191 = por %p189, %p190
    %p192 = scmp.ne.s32.totalorder %s181, %s184
    %p193 = scmp.eq.s32.totalorder %s19, 1
    %p194 = por %p192, %p193
    %p195 = scmp.ne.s32.totalorder %s184, %s185
    %p196 = scmp.eq.s32.totalorder %s19, 0
    %p197 = por %p195, %p196
    %p198 = scmp.ne.s32.totalorder %s184, %s185
    %p199 = scmp.eq.s32.totalorder %s20, 1
    %p200 = por %p198, %p199
    %p202 = scmp.ne.s32.totalorder %s185, %s201
    %p203 = scmp.eq.s32.totalorder %s20, 0
    %p204 = por %p202, %p203
    %s205 = ssub.s32 %s14, %s21
    %p206 = scmp.eq.s32.totalorder %s205, 0
    %s208 = sadd.s32 %s207, 1
    %s209 = scalar_select %p206, %s207, %s208
    %p212 = pneg %p206
    %p213 = scmp.eq.s32.totalorder %s14, 1
    %p214 = por %p212, %p213
    %p215 = scmp.ne.s32.totalorder %s207, %s210
    %p216 = scmp.eq.s32.totalorder %s14, 0
    %p217 = por %p215, %p216
    %p218 = scmp.ne.s32.totalorder %s207, %s210
    %p219 = scmp.eq.s32.totalorder %s19, 1
    %p220 = por %p218, %p219
    %p221 = scmp.ne.s32.totalorder %s210, %s211
    %p222 = scmp.eq.s32.totalorder %s19, 0
    %p223 = por %p221, %p222
    %p224 = scmp.ne.s32.totalorder %s210, %s211
    %p225 = scmp.eq.s32.totalorder %s20, 1
    %p226 = por %p224, %p225
    %p228 = scmp.ne.s32.totalorder %s211, %s227
    %p229 = scmp.eq.s32.totalorder %s20, 0
    %p230 = por %p228, %p229
    %p231 = scmp.le.s32.totalorder 1, %s14
    %p232 = scmp.lt.s32.totalorder %s14, 3
    %p233 = pnand %p231, %p232
    %p234 = pneg %p233
    // Predicated region
    $region9: #{tpu_custom_call.1} parent=5 // pred_check
      _
    $region10: #{tpu_custom_call.1} parent=5 // pred_check_branch
      %236 = sbr.rel (%p233) target = $region12
    $region11: #{tpu_custom_call.1} parent=5 // pred_region
      %s237 = ssub.s32 %s14, 1
      // Predicated region
      $region13: #{tpu_custom_call.1} parent=11 // pred_check
        %p238 = pneg %p61
      $region14: #{tpu_custom_call.1} parent=11 // pred_check_branch
        %240 = sbr.rel (%p238) target = $region16
      $region15: #{tpu_custom_call.1} parent=11 // pred_region
        _
      $region16: #{tpu_custom_call.1} parent=11 // pred_fallthru
        _
      // Predicated region
      $region17: #{tpu_custom_call.1} parent=11 // pred_check
        %p241 = pneg %p82
      $region18: #{tpu_custom_call.1} parent=11 // pred_check_branch
        %243 = sbr.rel (%p241) target = $region20
      $region19: #{tpu_custom_call.1} parent=11 // pred_region
        _
      $region20: #{tpu_custom_call.1} parent=11 // pred_fallthru
        _
      // Predicated region
      $region21: #{tpu_custom_call.1} parent=11 // pred_check
        %p244 = pneg %p103
      $region22: #{tpu_custom_call.1} parent=11 // pred_check_branch
        %246 = sbr.rel (%p244) target = $region24
      $region23: #{tpu_custom_call.1} parent=11 // pred_region
        _
      $region24: #{tpu_custom_call.1} parent=11 // pred_fallthru
        _
      // Predicated region
      $region25: #{tpu_custom_call.1} parent=11 // pred_check
        %p247 = pneg %p124
      $region26: #{tpu_custom_call.1} parent=11 // pred_check_branch
        %249 = sbr.rel (%p247) target = $region28
      $region27: #{tpu_custom_call.1} parent=11 // pred_region
        _
      $region28: #{tpu_custom_call.1} parent=11 // pred_fallthru
        _
      // Predicated region
      $region29: #{tpu_custom_call.1} parent=11 // pred_check
        %p250 = pneg %p145
      $region30: #{tpu_custom_call.1} parent=11 // pred_check_branch
        %252 = sbr.rel (%p250) target = $region32
      $region31: #{tpu_custom_call.1} parent=11 // pred_region
        _
      $region32: #{tpu_custom_call.1} parent=11 // pred_fallthru
        _
    $region12: #{tpu_custom_call.1} parent=5 // pred_fallthru
      _
    %p253 = scmp.lt.s32.totalorder %s14, 2
    // Predicated region
    $region33: #{tpu_custom_call.1} parent=5 // pred_check
      %p254 = pneg %p253
    $region34: #{tpu_custom_call.1} parent=5 // pred_check_branch
      %256 = sbr.rel (%p254) target = $region36
    $region35: #{tpu_custom_call.1} parent=5 // pred_region
      // Predicated region
      $region37: #{tpu_custom_call.1} parent=35 // pred_check
        %p257 = pneg %p34
      $region38: #{tpu_custom_call.1} parent=35 // pred_check_branch
        %259 = sbr.rel (%p257) target = $region40
      $region39: #{tpu_custom_call.1} parent=35 // pred_region
        %p260 = scmp.lt.s32.totalorder %s14, 1
        %s261 = scalar_select %p260, %s14, 1
        %s262 = smul.addr %s261, 12
        %s263 = smul.addr %s262, 4
        %s264 = scalar_lea.vmem %s0, %s263
      $region40: #{tpu_custom_call.1} parent=35 // pred_fallthru
        _
      // Predicated region
      $region41: #{tpu_custom_call.1} parent=35 // pred_check
        %p265 = pneg %p165
      $region42: #{tpu_custom_call.1} parent=35 // pred_check_branch
        %267 = sbr.rel (%p265) target = $region44
      $region43: #{tpu_custom_call.1} parent=35 // pred_region
        %p268 = scmp.lt.s32.totalorder %s14, 1
        %s269 = scalar_select %p268, %s14, 1
        %s270 = scalar_lea.vmem %s6, %s269
      $region44: #{tpu_custom_call.1} parent=35 // pred_fallthru
        _
      // Predicated region
      $region45: #{tpu_custom_call.1} parent=35 // pred_check
        %p271 = pneg %p191
      $region46: #{tpu_custom_call.1} parent=35 // pred_check_branch
        %273 = sbr.rel (%p271) target = $region48
      $region47: #{tpu_custom_call.1} parent=35 // pred_region
        %p274 = scmp.lt.s32.totalorder %s14, 1
        %s275 = scalar_select %p274, %s14, 1
        %s276 = smul.addr %s275, 2
        %s277 = smul.addr %s276, 8
        %s278 = scalar_lea.vmem %s7, %s277
      $region48: #{tpu_custom_call.1} parent=35 // pred_fallthru
        _
    $region36: #{tpu_custom_call.1} parent=5 // pred_fallthru
      _
    %p279 = scmp.le.s32.totalorder 1, %s14
    %p280 = scmp.lt.s32.totalorder %s14, 3
    %p281 = pnand %p279, %p280
    %p282 = pneg %p281
    // Predicated region
    $region49: #{tpu_custom_call.1} parent=5 // pred_check
      _
    $region50: #{tpu_custom_call.1} parent=5 // pred_check_branch
      %284 = sbr.rel (%p281) target = $region52
    $region51: #{tpu_custom_call.1} parent=5 // pred_region
      %s285 = ssub.s32 %s14, 1
      %p286 = scmp.lt.s32.totalorder %s19, 1
      %s287 = scalar_select %p286, %s19, 1
      %s288 = smul.addr %s287, 12
      %s289 = smul.addr %s288, 4
      %s290 = scalar_lea.vmem %s0, %s289
      %p291 = pneg %p40
      %p292 = pneg %p37
      %p293 = pneg %p61
      %p294 = pneg %p58
      %p295 = pneg %p82
      %p296 = pneg %p79
      %p297 = pneg %p103
      %p298 = pneg %p100
      %p299 = pneg %p124
      %p300 = pneg %p121
      %p301 = pneg %p145
      %p302 = pneg %p142
      %p303 = scmp.lt.s32.totalorder %s19, 1
      %s304 = scalar_select %p303, %s19, 1
      %s305 = scalar_lea.vmem %s6, %s304
      %p306 = pneg %p171
      %p307 = pneg %p168
      %p308 = scmp.lt.s32.totalorder %s19, 1
      %s309 = scalar_select %p308, %s19, 1
      %s310 = smul.addr %s309, 2
      %s311 = smul.addr %s310, 8
      %s312 = scalar_lea.vmem %s7, %s311
      %p313 = pneg %p197
      %p314 = pneg %p194
      %p315 = pneg %p223
      %p316 = pneg %p220
      %p317 = scmp.lt.s32.totalorder %s19, 1
      %s318 = scalar_select %p317, %s19, 1
      %s319 = smul.addr %s318, 2
      %s320 = smul.addr %s319, 8
      %s321 = scalar_lea.vmem %s8, %s320
      %p322 = scmp.lt.s32.totalorder %s19, 1
      %s323 = scalar_select %p322, %s19, 1
      %s324 = smul.addr %s323, 12
      %s325 = smul.addr %s324, 4
      %s326 = scalar_lea.vmem %s0, %s325
      %p327 = scmp.lt.s32.totalorder %s19, 1
      %s328 = scalar_select %p327, %s19, 1
      %s329 = scalar_lea.vmem %s6, %s328
      %p330 = scmp.lt.s32.totalorder %s19, 1
      %s331 = scalar_select %p330, %s19, 1
      %s332 = smul.addr %s331, 2
      %s333 = smul.addr %s332, 8
      %s334 = scalar_lea.vmem %s7, %s333
      %p335 = scmp.lt.s32.totalorder %s19, 1
      %s336 = scalar_select %p335, %s19, 1
      %s337 = smul.addr %s336, 2
      %s338 = smul.addr %s337, 8
      %s339 = scalar_lea.vmem %s8, %s338
      %vm341 = vcmask 125952
      %342 = vst.msk [vmem:[#allocation2] sm:$0xf] %vm341, 0
      %343 = vst.msk [vmem:[#allocation2 + $0x4] sm:$0xf] %vm341, 0
      %344 = vst.msk [vmem:[#allocation2 + $0x8] sm:$0xf] %vm341, 0
      %345 = vst.msk [vmem:[#allocation2 + $0xc] sm:$0xf] %vm341, 0
      %346 = vst.msk [vmem:[#allocation2 + $0x20] sm:$0xf] %vm341, 0
      %347 = vst.msk [vmem:[#allocation2 + $0x24] sm:$0xf] %vm341, 0
      %348 = vst.msk [vmem:[#allocation2 + $0x28] sm:$0xf] %vm341, 0
      %349 = vst.msk [vmem:[#allocation2 + $0x2c] sm:$0xf] %vm341, 0
      %v350 = vld [vmem:[%s326 + $0x10] sm:$0xf]
      %v351 = vld [vmem:[%s326 + $0x14] sm:$0xf]
      %v352 = vld [vmem:[%s326 + $0x18] sm:$0xf]
      %v353 = vld [vmem:[%s326 + $0x1c] sm:$0xf]
      %vm354 = vcmask 60416
      %355 = vst.msk [vmem:[#allocation3] sm:$0xf] %vm354, %v350
      %356 = vst.msk [vmem:[#allocation3 + $0xc] sm:$0xf] %vm354, %v351
      %357 = vst.msk [vmem:[#allocation3 + $0x18] sm:$0xf] %vm354, %v352
      %358 = vst.msk [vmem:[#allocation3 + $0x24] sm:$0xf] %vm354, %v353
      %v359 = vld [vmem:[%s326 + $0x8] sm:$0x8]
      %v360 = vld [vmem:[%s326 + $0xc] sm:$0xf]
      %v361 = vld [vmem:[%s326 + $0x10] sm:$0xf]
      %v362 = vld [vmem:[%s326 + $0x14] sm:$0xf]
      %v363 = vld [vmem:[%s326 + $0x18] sm:$0xf]
      %vm364 = vsmask.f32 256
      %vm365 = vsmask.f32 4368
      %vm366 = vmor %vm364, %vm365
      %v368 = vshrl.u32 %v359, 16
      %v370 = vrot.slane %v368, 7
      %v371 = vrot.slane %v370, 4
      %v373 = vshrl.u32 %v360, 16
      %v375 = vrot.slane %v373, 7
      %v376 = vshll.u32 %v360, 16
      %v378 = vor.u32 %v375, %v376
      %v379 = vsel %vm366, %v371, %v378
      %v380 = vrot.slane %v375, 4
      %v382 = vshrl.u32 %v361, 16
      %v384 = vrot.slane %v382, 7
      %v385 = vshll.u32 %v361, 16
      %v387 = vor.u32 %v384, %v385
      %v388 = vsel %vm366, %v380, %v387
      %v389 = vrot.slane %v384, 4
      %v391 = vshrl.u32 %v362, 16
      %v393 = vrot.slane %v391, 7
      %v394 = vshll.u32 %v362, 16
      %v396 = vor.u32 %v393, %v394
      %v397 = vsel %vm366, %v389, %v396
      %v398 = vrot.slane %v393, 4
      %v400 = vshrl.u32 %v363, 16
      %v402 = vrot.slane %v400, 7
      %v403 = vshll.u32 %v363, 16
      %v405 = vor.u32 %v402, %v403
      %v406 = vsel %vm366, %v398, %v405
      %407 = vrot.lane.b32.xlu0 %v379, 8
      %v408 = vpop.permute.xlu0 %407
      %409 = vrot.lane.b32.xlu0 %v388, 8
      %v410 = vpop.permute.xlu0 %409
      %411 = vrot.lane.b32.xlu0 %v397, 8
      %v412 = vpop.permute.xlu0 %411
      %413 = vrot.lane.b32.xlu0 %v406, 8
      %v414 = vpop.permute.xlu0 %413
      %vm419 = vcmask 126016
      %420 = vst.msk [vmem:[#allocation3] sm:$0xf] %vm419, %v408
      %421 = vst.msk [vmem:[#allocation3 + $0xc] sm:$0xf] %vm419, %v410
      %422 = vst.msk [vmem:[#allocation3 + $0x18] sm:$0xf] %vm419, %v412
      %423 = vst.msk [vmem:[#allocation3 + $0x24] sm:$0xf] %vm419, %v414
      %v424 = vld [vmem:[%s326 + $0xc] sm:$0xf]
      %v425 = vld [vmem:[%s326 + $0x10] sm:$0xf]
      %v426 = vld [vmem:[%s326 + $0x14] sm:$0xf]
      %v427 = vld [vmem:[%s326 + $0x18] sm:$0xf]
      %432 = vrot.lane.b32.xlu0 %v424, 16
      %v433 = vpop.permute.xlu0 %432
      %434 = vrot.lane.b32.xlu0 %v425, 16
      %v435 = vpop.permute.xlu0 %434
      %436 = vrot.lane.b32.xlu0 %v426, 16
      %v437 = vpop.permute.xlu0 %436
      %438 = vrot.lane.b32.xlu0 %v427, 16
      %v439 = vpop.permute.xlu0 %438
      %vm444 = vcmask 191616
      %445 = vst.msk [vmem:[#allocation3] sm:$0xf] %vm444, %v433
      %446 = vst.msk [vmem:[#allocation3 + $0xc] sm:$0xf] %vm444, %v435
      %447 = vst.msk [vmem:[#allocation3 + $0x18] sm:$0xf] %vm444, %v437
      %448 = vst.msk [vmem:[#allocation3 + $0x24] sm:$0xf] %vm444, %v439
      %v449 = vld [vmem:[%s326 + $0xc] sm:$0xf]
      %v450 = vld [vmem:[%s326 + $0x10] sm:$0xf]
      %v451 = vld [vmem:[%s326 + $0x14] sm:$0xf]
      %v452 = vld [vmem:[%s326 + $0x18] sm:$0xf]
      %v453 = vld [vmem:[%s326 + $0x1c] sm:$0x1]
      %vm454 = vsmask.f32 3328
      %vm455 = vsmask.f32 7440
      %vm456 = vmor %vm454, %vm455
      %v458 = vshrl.u32 %v449, 16
      %v460 = vrot.slane %v458, 4
      %v461 = vshll.u32 %v449, 16
      %v463 = vrot.slane %v461, 5
      %v464 = vor.u32 %v460, %v463
      %v465 = vrot.slane %v464, 4
      %v467 = vshll.u32 %v450, 16
      %v469 = vrot.slane %v467, 5
      %v470 = vsel %vm456, %v465, %v469
      %v471 = vshrl.u32 %v450, 16
      %v473 = vrot.slane %v471, 4
      %v474 = vor.u32 %v473, %v469
      %v475 = vrot.slane %v474, 4
      %v477 = vshll.u32 %v451, 16
      %v479 = vrot.slane %v477, 5
      %v480 = vsel %vm456, %v475, %v479
      %v481 = vshrl.u32 %v451, 16
      %v483 = vrot.slane %v481, 4
      %v484 = vor.u32 %v483, %v479
      %v485 = vrot.slane %v484, 4
      %v487 = vshll.u32 %v452, 16
      %v489 = vrot.slane %v487, 5
      %v490 = vsel %vm456, %v485, %v489
      %v491 = vshrl.u32 %v452, 16
      %v493 = vrot.slane %v491, 4
      %v494 = vor.u32 %v493, %v489
      %v495 = vrot.slane %v494, 4
      %v497 = vshll.u32 %v453, 16
      %v499 = vrot.slane %v497, 5
      %v500 = vsel %vm456, %v495, %v499
      %501 = vrot.lane.b32.xlu0 %v470, 24
      %v502 = vpop.permute.xlu0 %501
      %503 = vrot.lane.b32.xlu0 %v480, 24
      %v504 = vpop.permute.xlu0 %503
      %505 = vrot.lane.b32.xlu0 %v490, 24
      %v506 = vpop.permute.xlu0 %505
      %507 = vrot.lane.b32.xlu0 %v500, 24
      %v508 = vpop.permute.xlu0 %507
      %vm513 = vcmask 257216
      %514 = vst.msk [vmem:[#allocation3] sm:$0xf] %vm513, %v502
      %515 = vst.msk [vmem:[#allocation3 + $0xc] sm:$0xf] %vm513, %v504
      %516 = vst.msk [vmem:[#allocation3 + $0x18] sm:$0xf] %vm513, %v506
      %517 = vst.msk [vmem:[#allocation3 + $0x24] sm:$0xf] %vm513, %v508
      %v518 = vld [vmem:[%s326 + $0xc] sm:$0x8]
      %v519 = vld [vmem:[%s326 + $0x10] sm:$0xf]
      %v520 = vld [vmem:[%s326 + $0x14] sm:$0xf]
      %v521 = vld [vmem:[%s326 + $0x18] sm:$0xf]
      %v522 = vld [vmem:[%s326 + $0x1c] sm:$0xf]
      %v524 = vshrl.u32 %v518, 16
      %v526 = vrot.slane %v524, 7
      %v527 = vrot.slane %v526, 4
      %v529 = vshrl.u32 %v519, 16
      %v531 = vrot.slane %v529, 7
      %v532 = vshll.u32 %v519, 16
      %v534 = vor.u32 %v531, %v532
      %v535 = vsel %vm366, %v527, %v534
      %v536 = vrot.slane %v531, 4
      %v538 = vshrl.u32 %v520, 16
      %v540 = vrot.slane %v538, 7
      %v541 = vshll.u32 %v520, 16
      %v543 = vor.u32 %v540, %v541
      %v544 = vsel %vm366, %v536, %v543
      %v545 = vrot.slane %v540, 4
      %v547 = vshrl.u32 %v521, 16
      %v549 = vrot.slane %v547, 7
      %v550 = vshll.u32 %v521, 16
      %v552 = vor.u32 %v549, %v550
      %v553 = vsel %vm366, %v545, %v552
      %v554 = vrot.slane %v549, 4
      %v556 = vshrl.u32 %v522, 16
      %v558 = vrot.slane %v556, 7
      %v559 = vshll.u32 %v522, 16
      %v561 = vor.u32 %v558, %v559
      %v562 = vsel %vm366, %v554, %v561
      %563 = vrot.lane.b32.xlu0 %v535, 32
      %v564 = vpop.permute.xlu0 %563
      %565 = vrot.lane.b32.xlu0 %v544, 32
      %v566 = vpop.permute.xlu0 %565
      %567 = vrot.lane.b32.xlu0 %v553, 32
      %v568 = vpop.permute.xlu0 %567
      %569 = vrot.lane.b32.xlu0 %v562, 32
      %v570 = vpop.permute.xlu0 %569
      %vm575 = vcmask 322816
      %576 = vst.msk [vmem:[#allocation3] sm:$0xf] %vm575, %v564
      %577 = vst.msk [vmem:[#allocation3 + $0xc] sm:$0xf] %vm575, %v566
      %578 = vst.msk [vmem:[#allocation3 + $0x18] sm:$0xf] %vm575, %v568
      %579 = vst.msk [vmem:[#allocation3 + $0x24] sm:$0xf] %vm575, %v570
      %v580 = vld [vmem:[%s326 + $0x10] sm:$0xf]
      %v581 = vld [vmem:[%s326 + $0x14] sm:$0xf]
      %v582 = vld [vmem:[%s326 + $0x18] sm:$0xf]
      %v583 = vld [vmem:[%s326 + $0x1c] sm:$0xf]
      %588 = vrot.lane.b32.xlu0 %v580, 40
      %v589 = vpop.permute.xlu0 %588
      %590 = vrot.lane.b32.xlu0 %v581, 40
      %v591 = vpop.permute.xlu0 %590
      %592 = vrot.lane.b32.xlu0 %v582, 40
      %v593 = vpop.permute.xlu0 %592
      %594 = vrot.lane.b32.xlu0 %v583, 40
      %v595 = vpop.permute.xlu0 %594
      %vm600 = vcmask 388416
      %601 = vst.msk [vmem:[#allocation3] sm:$0xf] %vm600, %v589
      %602 = vst.msk [vmem:[#allocation3 + $0xc] sm:$0xf] %vm600, %v591
      %603 = vst.msk [vmem:[#allocation3 + $0x18] sm:$0xf] %vm600, %v593
      %604 = vst.msk [vmem:[#allocation3 + $0x24] sm:$0xf] %vm600, %v595
      %v605 = vld [vmem:[%s326 + $0x10] sm:$0xf]
      %v606 = vld [vmem:[%s326 + $0x14] sm:$0xf]
      %v607 = vld [vmem:[%s326 + $0x18] sm:$0xf]
      %v608 = vld [vmem:[%s326 + $0x1c] sm:$0xf]
      %v609 = vld [vmem:[%s326 + $0x20] sm:$0x1]
      %v611 = vshrl.u32 %v605, 16
      %v613 = vrot.slane %v611, 4
      %v614 = vshll.u32 %v605, 16
      %v616 = vrot.slane %v614, 5
      %v617 = vor.u32 %v613, %v616
      %v618 = vrot.slane %v617, 4
      %v620 = vshll.u32 %v606, 16
      %v622 = vrot.slane %v620, 5
      %v623 = vsel %vm456, %v618, %v622
      %v624 = vshrl.u32 %v606, 16
      %v626 = vrot.slane %v624, 4
      %v627 = vor.u32 %v626, %v622
      %v628 = vrot.slane %v627, 4
      %v630 = vshll.u32 %v607, 16
      %v632 = vrot.slane %v630, 5
      %v633 = vsel %vm456, %v628, %v632
      %v634 = vshrl.u32 %v607, 16
      %v636 = vrot.slane %v634, 4
      %v637 = vor.u32 %v636, %v632
      %v638 = vrot.slane %v637, 4
      %v640 = vshll.u32 %v608, 16
      %v642 = vrot.slane %v640, 5
      %v643 = vsel %vm456, %v638, %v642
      %v644 = vshrl.u32 %v608, 16
      %v646 = vrot.slane %v644, 4
      %v647 = vor.u32 %v646, %v642
      %v648 = vrot.slane %v647, 4
      %v650 = vshll.u32 %v609, 16
      %v652 = vrot.slane %v650, 5
      %v653 = vsel %vm456, %v648, %v652
      %654 = vrot.lane.b32.xlu0 %v623, 48
      %v655 = vpop.permute.xlu0 %654
      %656 = vrot.lane.b32.xlu0 %v633, 48
      %v657 = vpop.permute.xlu0 %656
      %658 = vrot.lane.b32.xlu0 %v643, 48
      %v659 = vpop.permute.xlu0 %658
      %660 = vrot.lane.b32.xlu0 %v653, 48
      %v661 = vpop.permute.xlu0 %660
      %vm666 = vcmask 454016
      %667 = vst.msk [vmem:[#allocation3] sm:$0xf] %vm666, %v655
      %668 = vst.msk [vmem:[#allocation3 + $0xc] sm:$0xf] %vm666, %v657
      %669 = vst.msk [vmem:[#allocation3 + $0x18] sm:$0xf] %vm666, %v659
      %670 = vst.msk [vmem:[#allocation3 + $0x24] sm:$0xf] %vm666, %v661
      %v671 = vld [vmem:[%s326 + $0x10] sm:$0x8]
      %v672 = vld [vmem:[%s326 + $0x14] sm:$0xf]
      %v673 = vld [vmem:[%s326 + $0x18] sm:$0xf]
      %v674 = vld [vmem:[%s326 + $0x1c] sm:$0xf]
      %v675 = vld [vmem:[%s326 + $0x20] sm:$0xf]
      %v677 = vshrl.u32 %v671, 16
      %v679 = vrot.slane %v677, 7
      %v680 = vrot.slane %v679, 4
      %v682 = vshrl.u32 %v672, 16
      %v684 = vrot.slane %v682, 7
      %v685 = vshll.u32 %v672, 16
      %v687 = vor.u32 %v684, %v685
      %v688 = vsel %vm366, %v680, %v687
      %v689 = vrot.slane %v684, 4
      %v691 = vshrl.u32 %v673, 16
      %v693 = vrot.slane %v691, 7
      %v694 = vshll.u32 %v673, 16
      %v696 = vor.u32 %v693, %v694
      %v697 = vsel %vm366, %v689, %v696
      %v698 = vrot.slane %v693, 4
      %v700 = vshrl.u32 %v674, 16
      %v702 = vrot.slane %v700, 7
      %v703 = vshll.u32 %v674, 16
      %v705 = vor.u32 %v702, %v703
      %v706 = vsel %vm366, %v698, %v705
      %v707 = vrot.slane %v702, 4
      %v709 = vshrl.u32 %v675, 16
      %v711 = vrot.slane %v709, 7
      %v712 = vshll.u32 %v675, 16
      %v714 = vor.u32 %v711, %v712
      %v715 = vsel %vm366, %v707, %v714
      %716 = vrot.lane.b32.xlu0 %v688, 56
      %v717 = vpop.permute.xlu0 %716
      %718 = vrot.lane.b32.xlu0 %v697, 56
      %v719 = vpop.permute.xlu0 %718
      %720 = vrot.lane.b32.xlu0 %v706, 56
      %v721 = vpop.permute.xlu0 %720
      %722 = vrot.lane.b32.xlu0 %v715, 56
      %v723 = vpop.permute.xlu0 %722
      %vm728 = vcmask 519616
      %729 = vst.msk [vmem:[#allocation3] sm:$0xf] %vm728, %v717
      %730 = vst.msk [vmem:[#allocation3 + $0xc] sm:$0xf] %vm728, %v719
      %731 = vst.msk [vmem:[#allocation3 + $0x18] sm:$0xf] %vm728, %v721
      %732 = vst.msk [vmem:[#allocation3 + $0x24] sm:$0xf] %vm728, %v723
      %v733 = vld [vmem:[%s326 + $0x14] sm:$0xf]
      %v734 = vld [vmem:[%s326 + $0x18] sm:$0xf]
      %v735 = vld [vmem:[%s326 + $0x1c] sm:$0xf]
      %v736 = vld [vmem:[%s326 + $0x20] sm:$0xf]
      %741 = vrot.lane.b32.xlu0 %v733, 64
      %v742 = vpop.permute.xlu0 %741
      %743 = vrot.lane.b32.xlu0 %v734, 64
      %v744 = vpop.permute.xlu0 %743
      %745 = vrot.lane.b32.xlu0 %v735, 64
      %v746 = vpop.permute.xlu0 %745
      %747 = vrot.lane.b32.xlu0 %v736, 64
      %v748 = vpop.permute.xlu0 %747
      %vm753 = vcmask 585216
      %754 = vst.msk [vmem:[#allocation3] sm:$0xf] %vm753, %v742
      %755 = vst.msk [vmem:[#allocation3 + $0xc] sm:$0xf] %vm753, %v744
      %756 = vst.msk [vmem:[#allocation3 + $0x18] sm:$0xf] %vm753, %v746
      %757 = vst.msk [vmem:[#allocation3 + $0x24] sm:$0xf] %vm753, %v748
      %v758 = vld [vmem:[%s326 + $0x14] sm:$0xf]
      %v759 = vld [vmem:[%s326 + $0x18] sm:$0xf]
      %v760 = vld [vmem:[%s326 + $0x1c] sm:$0xf]
      %v761 = vld [vmem:[%s326 + $0x20] sm:$0xf]
      %v762 = vld [vmem:[%s326 + $0x24] sm:$0x1]
      %v764 = vshrl.u32 %v758, 16
      %v766 = vrot.slane %v764, 4
      %v767 = vshll.u32 %v758, 16
      %v769 = vrot.slane %v767, 5
      %v770 = vor.u32 %v766, %v769
      %v771 = vrot.slane %v770, 4
      %v773 = vshll.u32 %v759, 16
      %v775 = vrot.slane %v773, 5
      %v776 = vsel %vm456, %v771, %v775
      %v777 = vshrl.u32 %v759, 16
      %v779 = vrot.slane %v777, 4
      %v780 = vor.u32 %v779, %v775
      %v781 = vrot.slane %v780, 4
      %v783 = vshll.u32 %v760, 16
      %v785 = vrot.slane %v783, 5
      %v786 = vsel %vm456, %v781, %v785
      %v787 = vshrl.u32 %v760, 16
      %v789 = vrot.slane %v787, 4
      %v790 = vor.u32 %v789, %v785
      %v791 = vrot.slane %v790, 4
      %v793 = vshll.u32 %v761, 16
      %v795 = vrot.slane %v793, 5
      %v796 = vsel %vm456, %v791, %v795
      %v797 = vshrl.u32 %v761, 16
      %v799 = vrot.slane %v797, 4
      %v800 = vor.u32 %v799, %v795
      %v801 = vrot.slane %v800, 4
      %v803 = vshll.u32 %v762, 16
      %v805 = vrot.slane %v803, 5
      %v806 = vsel %vm456, %v801, %v805
      %807 = vrot.lane.b32.xlu0 %v776, 72
      %v808 = vpop.permute.xlu0 %807
      %809 = vrot.lane.b32.xlu0 %v786, 72
      %v810 = vpop.permute.xlu0 %809
      %811 = vrot.lane.b32.xlu0 %v796, 72
      %v812 = vpop.permute.xlu0 %811
      %813 = vrot.lane.b32.xlu0 %v806, 72
      %v814 = vpop.permute.xlu0 %813
      %vm819 = vcmask 650816
      %820 = vst.msk [vmem:[#allocation3] sm:$0xf] %vm819, %v808
      %821 = vst.msk [vmem:[#allocation3 + $0xc] sm:$0xf] %vm819, %v810
      %822 = vst.msk [vmem:[#allocation3 + $0x18] sm:$0xf] %vm819, %v812
      %823 = vst.msk [vmem:[#allocation3 + $0x24] sm:$0xf] %vm819, %v814
      %v824 = vld [vmem:[%s326 + $0x4] sm:$0x8]
      %v825 = vld [vmem:[%s326 + $0x8] sm:$0xf]
      %v826 = vld [vmem:[%s326 + $0xc] sm:$0xf]
      %v827 = vld [vmem:[%s326 + $0x10] sm:$0xf]
      %v828 = vld [vmem:[%s326 + $0x14] sm:$0x7]
      %vm834 = vcmask 1040384
      %vm835 = vcmask 1044484
      %vm836 = vmor %vm834, %vm835
      %v837 = vrot.slane %v824, 7
      %v838 = vrot.slane %v837, 4
      %v839 = vrot.slane %v825, 7
      %v840 = vsel %vm836, %v838, %v839
      %v841 = vrot.slane %v839, 4
      %v842 = vrot.slane %v826, 7
      %v843 = vsel %vm836, %v841, %v842
      %v844 = vrot.slane %v842, 4
      %v845 = vrot.slane %v827, 7
      %v846 = vsel %vm836, %v844, %v845
      %v847 = vrot.slane %v845, 4
      %v848 = vrot.slane %v828, 7
      %v849 = vsel %vm836, %v847, %v848
      %850 = vrot.lane.b32.xlu0 %v840, 80
      %v851 = vpop.permute.xlu0 %850
      %852 = vrot.lane.b32.xlu0 %v843, 80
      %v853 = vpop.permute.xlu0 %852
      %854 = vrot.lane.b32.xlu0 %v846, 80
      %v855 = vpop.permute.xlu0 %854
      %856 = vrot.lane.b32.xlu0 %v849, 80
      %v857 = vpop.permute.xlu0 %856
      %vm862 = vcmask 716416
      %863 = vst.msk [vmem:[#allocation3] sm:$0xf] %vm862, %v851
      %864 = vst.msk [vmem:[#allocation3 + $0xc] sm:$0xf] %vm862, %v853
      %865 = vst.msk [vmem:[#allocation3 + $0x18] sm:$0xf] %vm862, %v855
      %866 = vst.msk [vmem:[#allocation3 + $0x24] sm:$0xf] %vm862, %v857
      %v867 = vld [vmem:[%s326 + $0x4] sm:$0x8]
      %v868 = vld [vmem:[%s326 + $0x8] sm:$0xf]
      %v869 = vld [vmem:[%s326 + $0xc] sm:$0xf]
      %v870 = vld [vmem:[%s326 + $0x10] sm:$0xf]
      %v871 = vld [vmem:[%s326 + $0x14] sm:$0xf]
      %v873 = vshrl.u32 %v867, 16
      %v875 = vrot.slane %v873, 7
      %v876 = vrot.slane %v875, 4
      %v878 = vshrl.u32 %v868, 16
      %v880 = vrot.slane %v878, 7
      %v881 = vshll.u32 %v868, 16
      %v883 = vor.u32 %v880, %v881
      %v884 = vsel %vm366, %v876, %v883
      %v885 = vrot.slane %v880, 4
      %v887 = vshrl.u32 %v869, 16
      %v889 = vrot.slane %v887, 7
      %v890 = vshll.u32 %v869, 16
      %v892 = vor.u32 %v889, %v890
      %v893 = vsel %vm366, %v885, %v892
      %v894 = vrot.slane %v889, 4
      %v896 = vshrl.u32 %v870, 16
      %v898 = vrot.slane %v896, 7
      %v899 = vshll.u32 %v870, 16
      %v901 = vor.u32 %v898, %v899
      %v902 = vsel %vm366, %v894, %v901
      %v903 = vrot.slane %v898, 4
      %v905 = vshrl.u32 %v871, 16
      %v907 = vrot.slane %v905, 7
      %v908 = vshll.u32 %v871, 16
      %v910 = vor.u32 %v907, %v908
      %v911 = vsel %vm366, %v903, %v910
      %912 = vrot.lane.b32.xlu0 %v884, 88
      %v913 = vpop.permute.xlu0 %912
      %914 = vrot.lane.b32.xlu0 %v893, 88
      %v915 = vpop.permute.xlu0 %914
      %916 = vrot.lane.b32.xlu0 %v902, 88
      %v917 = vpop.permute.xlu0 %916
      %918 = vrot.lane.b32.xlu0 %v911, 88
      %v919 = vpop.permute.xlu0 %918
      %vm924 = vcmask 782016
      %925 = vst.msk [vmem:[#allocation3] sm:$0xf] %vm924, %v913
      %926 = vst.msk [vmem:[#allocation3 + $0xc] sm:$0xf] %vm924, %v915
      %927 = vst.msk [vmem:[#allocation3 + $0x18] sm:$0xf] %vm924, %v917
      %928 = vst.msk [vmem:[#allocation3 + $0x24] sm:$0xf] %vm924, %v919
      %v929 = vld [vmem:[%s326 + $0x8] sm:$0xf]
      %v930 = vld [vmem:[%s326 + $0xc] sm:$0xf]
      %v931 = vld [vmem:[%s326 + $0x10] sm:$0xf]
      %v932 = vld [vmem:[%s326 + $0x14] sm:$0xf]
      %937 = vrot.lane.b32.xlu0 %v929, 96
      %v938 = vpop.permute.xlu0 %937
      %939 = vrot.lane.b32.xlu0 %v930, 96
      %v940 = vpop.permute.xlu0 %939
      %941 = vrot.lane.b32.xlu0 %v931, 96
      %v942 = vpop.permute.xlu0 %941
      %943 = vrot.lane.b32.xlu0 %v932, 96
      %v944 = vpop.permute.xlu0 %943
      %vm949 = vcmask 847616
      %950 = vst.msk [vmem:[#allocation3] sm:$0xf] %vm949, %v938
      %951 = vst.msk [vmem:[#allocation3 + $0xc] sm:$0xf] %vm949, %v940
      %952 = vst.msk [vmem:[#allocation3 + $0x18] sm:$0xf] %vm949, %v942
      %953 = vst.msk [vmem:[#allocation3 + $0x24] sm:$0xf] %vm949, %v944
      %v954 = vld [vmem:[%s326 + $0x8] sm:$0xf]
      %v955 = vld [vmem:[%s326 + $0xc] sm:$0xf]
      %v956 = vld [vmem:[%s326 + $0x10] sm:$0xf]
      %v957 = vld [vmem:[%s326 + $0x14] sm:$0xf]
      %v958 = vld [vmem:[%s326 + $0x18] sm:$0x1]
      %v960 = vshrl.u32 %v954, 16
      %v962 = vrot.slane %v960, 4
      %v963 = vshll.u32 %v954, 16
      %v965 = vrot.slane %v963, 5
      %v966 = vor.u32 %v962, %v965
      %v967 = vrot.slane %v966, 4
      %v969 = vshll.u32 %v955, 16
      %v971 = vrot.slane %v969, 5
      %v972 = vsel %vm456, %v967, %v971
      %v973 = vshrl.u32 %v955, 16
      %v975 = vrot.slane %v973, 4
      %v976 = vor.u32 %v975, %v971
      %v977 = vrot.slane %v976, 4
      %v979 = vshll.u32 %v956, 16
      %v981 = vrot.slane %v979, 5
      %v982 = vsel %vm456, %v977, %v981
      %v983 = vshrl.u32 %v956, 16
      %v985 = vrot.slane %v983, 4
      %v986 = vor.u32 %v985, %v981
      %v987 = vrot.slane %v986, 4
      %v989 = vshll.u32 %v957, 16
      %v991 = vrot.slane %v989, 5
      %v992 = vsel %vm456, %v987, %v991
      %v993 = vshrl.u32 %v957, 16
      %v995 = vrot.slane %v993, 4
      %v996 = vor.u32 %v995, %v991
      %v997 = vrot.slane %v996, 4
      %v999 = vshll.u32 %v958, 16
      %v1001 = vrot.slane %v999, 5
      %v1002 = vsel %vm456, %v997, %v1001
      %1003 = vrot.lane.b32.xlu0 %v972, 104
      %v1004 = vpop.permute.xlu0 %1003
      %1005 = vrot.lane.b32.xlu0 %v982, 104
      %v1006 = vpop.permute.xlu0 %1005
      %1007 = vrot.lane.b32.xlu0 %v992, 104
      %v1008 = vpop.permute.xlu0 %1007
      %1009 = vrot.lane.b32.xlu0 %v1002, 104
      %v1010 = vpop.permute.xlu0 %1009
      %vm1015 = vcmask 913216
      %1016 = vst.msk [vmem:[#allocation3] sm:$0xf] %vm1015, %v1004
      %1017 = vst.msk [vmem:[#allocation3 + $0xc] sm:$0xf] %vm1015, %v1006
      %1018 = vst.msk [vmem:[#allocation3 + $0x18] sm:$0xf] %vm1015, %v1008
      %1019 = vst.msk [vmem:[#allocation3 + $0x24] sm:$0xf] %vm1015, %v1010
      %v1020 = vld [vmem:[%s326 + $0x8] sm:$0xe]
      %v1021 = vld [vmem:[%s326 + $0xc] sm:$0xf]
      %v1022 = vld [vmem:[%s326 + $0x10] sm:$0xf]
      %v1023 = vld [vmem:[%s326 + $0x14] sm:$0xf]
      %v1024 = vld [vmem:[%s326 + $0x18] sm:$0x1]
      %vm1030 = vcmask 1042432
      %vm1031 = vcmask 1046532
      %vm1032 = vmor %vm1030, %vm1031
      %v1033 = vrot.slane %v1020, 5
      %v1034 = vrot.slane %v1033, 4
      %v1035 = vrot.slane %v1021, 5
      %v1036 = vsel %vm1032, %v1034, %v1035
      %v1037 = vrot.slane %v1035, 4
      %v1038 = vrot.slane %v1022, 5
      %v1039 = vsel %vm1032, %v1037, %v1038
      %v1040 = vrot.slane %v1038, 4
      %v1041 = vrot.slane %v1023, 5
      %v1042 = vsel %vm1032, %v1040, %v1041
      %v1043 = vrot.slane %v1041, 4
      %v1044 = vrot.slane %v1024, 5
      %v1045 = vsel %vm1032, %v1043, %v1044
      %1046 = vrot.lane.b32.xlu0 %v1036, 112
      %v1047 = vpop.permute.xlu0 %1046
      %1048 = vrot.lane.b32.xlu0 %v1039, 112
      %v1049 = vpop.permute.xlu0 %1048
      %1050 = vrot.lane.b32.xlu0 %v1042, 112
      %v1051 = vpop.permute.xlu0 %1050
      %1052 = vrot.lane.b32.xlu0 %v1045, 112
      %v1053 = vpop.permute.xlu0 %1052
      %vm1058 = vcmask 978816
      %1059 = vst.msk [vmem:[#allocation3] sm:$0xf] %vm1058, %v1047
      %1060 = vst.msk [vmem:[#allocation3 + $0xc] sm:$0xf] %vm1058, %v1049
      %1061 = vst.msk [vmem:[#allocation3 + $0x18] sm:$0xf] %vm1058, %v1051
      %1062 = vst.msk [vmem:[#allocation3 + $0x24] sm:$0xf] %vm1058, %v1053
      %v1063 = vld [vmem:[%s326 + $0x8] sm:$0x8]
      %v1064 = vld [vmem:[%s326 + $0xc] sm:$0xf]
      %v1065 = vld [vmem:[%s326 + $0x10] sm:$0xf]
      %v1066 = vld [vmem:[%s326 + $0x14] sm:$0xf]
      %v1067 = vld [vmem:[%s326 + $0x18] sm:$0x7]
      %v1073 = vrot.slane %v1063, 7
      %v1074 = vrot.slane %v1073, 4
      %v1075 = vrot.slane %v1064, 7
      %v1076 = vsel %vm836, %v1074, %v1075
      %v1077 = vrot.slane %v1075, 4
      %v1078 = vrot.slane %v1065, 7
      %v1079 = vsel %vm836, %v1077, %v1078
      %v1080 = vrot.slane %v1078, 4
      %v1081 = vrot.slane %v1066, 7
      %v1082 = vsel %vm836, %v1080, %v1081
      %v1083 = vrot.slane %v1081, 4
      %v1084 = vrot.slane %v1067, 7
      %v1085 = vsel %vm836, %v1083, %v1084
      %1086 = vrot.lane.b32.xlu0 %v1076, 120
      %v1087 = vpop.permute.xlu0 %1086
      %1088 = vrot.lane.b32.xlu0 %v1079, 120
      %v1089 = vpop.permute.xlu0 %1088
      %1090 = vrot.lane.b32.xlu0 %v1082, 120
      %v1091 = vpop.permute.xlu0 %1090
      %1092 = vrot.lane.b32.xlu0 %v1085, 120
      %v1093 = vpop.permute.xlu0 %1092
      %vm1098 = vcmask 1044416
      %1099 = vst.msk [vmem:[#allocation3] sm:$0xf] %vm1098, %v1087
      %1100 = vst.msk [vmem:[#allocation3 + $0xc] sm:$0xf] %vm1098, %v1089
      %1101 = vst.msk [vmem:[#allocation3 + $0x18] sm:$0xf] %vm1098, %v1091
      %1102 = vst.msk [vmem:[#allocation3 + $0x24] sm:$0xf] %vm1098, %v1093
      %v1103 = vld [vmem:[%s326 + $0x8] sm:$0x8]
      %v1104 = vld [vmem:[%s326 + $0xc] sm:$0xf]
      %v1105 = vld [vmem:[%s326 + $0x10] sm:$0xf]
      %v1106 = vld [vmem:[%s326 + $0x14] sm:$0xf]
      %v1107 = vld [vmem:[%s326 + $0x18] sm:$0xf]
      %v1109 = vshrl.u32 %v1103, 16
      %v1111 = vrot.slane %v1109, 7
      %v1112 = vrot.slane %v1111, 4
      %v1114 = vshrl.u32 %v1104, 16
      %v1116 = vrot.slane %v1114, 7
      %v1117 = vshll.u32 %v1104, 16
      %v1119 = vor.u32 %v1116, %v1117
      %v1120 = vsel %vm366, %v1112, %v1119
      %v1121 = vrot.slane %v1116, 4
      %v1123 = vshrl.u32 %v1105, 16
      %v1125 = vrot.slane %v1123, 7
      %v1126 = vshll.u32 %v1105, 16
      %v1128 = vor.u32 %v1125, %v1126
      %v1129 = vsel %vm366, %v1121, %v1128
      %v1130 = vrot.slane %v1125, 4
      %v1132 = vshrl.u32 %v1106, 16
      %v1134 = vrot.slane %v1132, 7
      %v1135 = vshll.u32 %v1106, 16
      %v1137 = vor.u32 %v1134, %v1135
      %v1138 = vsel %vm366, %v1130, %v1137
      %v1139 = vrot.slane %v1134, 4
      %v1141 = vshrl.u32 %v1107, 16
      %v1143 = vrot.slane %v1141, 7
      %v1144 = vshll.u32 %v1107, 16
      %v1146 = vor.u32 %v1143, %v1144
      %v1147 = vsel %vm366, %v1139, %v1146
      %1152 = vst.msk [vmem:[#allocation3 + $0x4] sm:$0xf] %vm354, %v1120
      %1153 = vst.msk [vmem:[#allocation3 + $0x10] sm:$0xf] %vm354, %v1129
      %1154 = vst.msk [vmem:[#allocation3 + $0x1c] sm:$0xf] %vm354, %v1138
      %1155 = vst.msk [vmem:[#allocation3 + $0x28] sm:$0xf] %vm354, %v1147
      %v1156 = vld [vmem:[%s326 + $0xc] sm:$0xf]
      %v1157 = vld [vmem:[%s326 + $0x10] sm:$0xf]
      %v1158 = vld [vmem:[%s326 + $0x14] sm:$0xf]
      %v1159 = vld [vmem:[%s326 + $0x18] sm:$0xf]
      %1164 = vrot.lane.b32.xlu0 %v1156, 8
      %v1165 = vpop.permute.xlu0 %1164
      %1166 = vrot.lane.b32.xlu0 %v1157, 8
      %v1167 = vpop.permute.xlu0 %1166
      %1168 = vrot.lane.b32.xlu0 %v1158, 8
      %v1169 = vpop.permute.xlu0 %1168
      %1170 = vrot.lane.b32.xlu0 %v1159, 8
      %v1171 = vpop.permute.xlu0 %1170
      %1176 = vst.msk [vmem:[#allocation3 + $0x4] sm:$0xf] %vm419, %v1165
      %1177 = vst.msk [vmem:[#allocation3 + $0x10] sm:$0xf] %vm419, %v1167
      %1178 = vst.msk [vmem:[#allocation3 + $0x1c] sm:$0xf] %vm419, %v1169
      %1179 = vst.msk [vmem:[#allocation3 + $0x28] sm:$0xf] %vm419, %v1171
      %v1180 = vld [vmem:[%s326 + $0xc] sm:$0xf]
      %v1181 = vld [vmem:[%s326 + $0x10] sm:$0xf]
      %v1182 = vld [vmem:[%s326 + $0x14] sm:$0xf]
      %v1183 = vld [vmem:[%s326 + $0x18] sm:$0xf]
      %v1184 = vld [vmem:[%s326 + $0x1c] sm:$0x1]
      %v1186 = vshrl.u32 %v1180, 16
      %v1188 = vrot.slane %v1186, 4
      %v1189 = vshll.u32 %v1180, 16
      %v1191 = vrot.slane %v1189, 5
      %v1192 = vor.u32 %v1188, %v1191
      %v1193 = vrot.slane %v1192, 4
      %v1195 = vshll.u32 %v1181, 16
      %v1197 = vrot.slane %v1195, 5
      %v1198 = vsel %vm456, %v1193, %v1197
      %v1199 = vshrl.u32 %v1181, 16
      %v1201 = vrot.slane %v1199, 4
      %v1202 = vor.u32 %v1201, %v1197
      %v1203 = vrot.slane %v1202, 4
      %v1205 = vshll.u32 %v1182, 16
      %v1207 = vrot.slane %v1205, 5
      %v1208 = vsel %vm456, %v1203, %v1207
      %v1209 = vshrl.u32 %v1182, 16
      %v1211 = vrot.slane %v1209, 4
      %v1212 = vor.u32 %v1211, %v1207
      %v1213 = vrot.slane %v1212, 4
      %v1215 = vshll.u32 %v1183, 16
      %v1217 = vrot.slane %v1215, 5
      %v1218 = vsel %vm456, %v1213, %v1217
      %v1219 = vshrl.u32 %v1183, 16
      %v1221 = vrot.slane %v1219, 4
      %v1222 = vor.u32 %v1221, %v1217
      %v1223 = vrot.slane %v1222, 4
      %v1225 = vshll.u32 %v1184, 16
      %v1227 = vrot.slane %v1225, 5
      %v1228 = vsel %vm456, %v1223, %v1227
      %1229 = vrot.lane.b32.xlu0 %v1198, 16
      %v1230 = vpop.permute.xlu0 %1229
      %1231 = vrot.lane.b32.xlu0 %v1208, 16
      %v1232 = vpop.permute.xlu0 %1231
      %1233 = vrot.lane.b32.xlu0 %v1218, 16
      %v1234 = vpop.permute.xlu0 %1233
      %1235 = vrot.lane.b32.xlu0 %v1228, 16
      %v1236 = vpop.permute.xlu0 %1235
      %1241 = vst.msk [vmem:[#allocation3 + $0x4] sm:$0xf] %vm444, %v1230
      %1242 = vst.msk [vmem:[#allocation3 + $0x10] sm:$0xf] %vm444, %v1232
      %1243 = vst.msk [vmem:[#allocation3 + $0x1c] sm:$0xf] %vm444, %v1234
      %1244 = vst.msk [vmem:[#allocation3 + $0x28] sm:$0xf] %vm444, %v1236
      %v1245 = vld [vmem:[%s326 + $0xc] sm:$0xe]
      %v1246 = vld [vmem:[%s326 + $0x10] sm:$0xf]
      %v1247 = vld [vmem:[%s326 + $0x14] sm:$0xf]
      %v1248 = vld [vmem:[%s326 + $0x18] sm:$0xf]
      %v1249 = vld [vmem:[%s326 + $0x1c] sm:$0x1]
      %v1255 = vrot.slane %v1245, 5
      %v1256 = vrot.slane %v1255, 4
      %v1257 = vrot.slane %v1246, 5
      %v1258 = vsel %vm1032, %v1256, %v1257
      %v1259 = vrot.slane %v1257, 4
      %v1260 = vrot.slane %v1247, 5
      %v1261 = vsel %vm1032, %v1259, %v1260
      %v1262 = vrot.slane %v1260, 4
      %v1263 = vrot.slane %v1248, 5
      %v1264 = vsel %vm1032, %v1262, %v1263
      %v1265 = vrot.slane %v1263, 4
      %v1266 = vrot.slane %v1249, 5
      %v1267 = vsel %vm1032, %v1265, %v1266
      %1268 = vrot.lane.b32.xlu0 %v1258, 24
      %v1269 = vpop.permute.xlu0 %1268
      %1270 = vrot.lane.b32.xlu0 %v1261, 24
      %v1271 = vpop.permute.xlu0 %1270
      %1272 = vrot.lane.b32.xlu0 %v1264, 24
      %v1273 = vpop.permute.xlu0 %1272
      %1274 = vrot.lane.b32.xlu0 %v1267, 24
      %v1275 = vpop.permute.xlu0 %1274
      %1280 = vst.msk [vmem:[#allocation3 + $0x4] sm:$0xf] %vm513, %v1269
      %1281 = vst.msk [vmem:[#allocation3 + $0x10] sm:$0xf] %vm513, %v1271
      %1282 = vst.msk [vmem:[#allocation3 + $0x1c] sm:$0xf] %vm513, %v1273
      %1283 = vst.msk [vmem:[#allocation3 + $0x28] sm:$0xf] %vm513, %v1275
      %v1284 = vld [vmem:[%s326 + $0xc] sm:$0x8]
      %v1285 = vld [vmem:[%s326 + $0x10] sm:$0xf]
      %v1286 = vld [vmem:[%s326 + $0x14] sm:$0xf]
      %v1287 = vld [vmem:[%s326 + $0x18] sm:$0xf]
      %v1288 = vld [vmem:[%s326 + $0x1c] sm:$0x7]
      %v1294 = vrot.slane %v1284, 7
      %v1295 = vrot.slane %v1294, 4
      %v1296 = vrot.slane %v1285, 7
      %v1297 = vsel %vm836, %v1295, %v1296
      %v1298 = vrot.slane %v1296, 4
      %v1299 = vrot.slane %v1286, 7
      %v1300 = vsel %vm836, %v1298, %v1299
      %v1301 = vrot.slane %v1299, 4
      %v1302 = vrot.slane %v1287, 7
      %v1303 = vsel %vm836, %v1301, %v1302
      %v1304 = vrot.slane %v1302, 4
      %v1305 = vrot.slane %v1288, 7
      %v1306 = vsel %vm836, %v1304, %v1305
      %1307 = vrot.lane.b32.xlu0 %v1297, 32
      %v1308 = vpop.permute.xlu0 %1307
      %1309 = vrot.lane.b32.xlu0 %v1300, 32
      %v1310 = vpop.permute.xlu0 %1309
      %1311 = vrot.lane.b32.xlu0 %v1303, 32
      %v1312 = vpop.permute.xlu0 %1311
      %1313 = vrot.lane.b32.xlu0 %v1306, 32
      %v1314 = vpop.permute.xlu0 %1313
      %1319 = vst.msk [vmem:[#allocation3 + $0x4] sm:$0xf] %vm575, %v1308
      %1320 = vst.msk [vmem:[#allocation3 + $0x10] sm:$0xf] %vm575, %v1310
      %1321 = vst.msk [vmem:[#allocation3 + $0x1c] sm:$0xf] %vm575, %v1312
      %1322 = vst.msk [vmem:[#allocation3 + $0x28] sm:$0xf] %vm575, %v1314
      %v1323 = vld [vmem:[%s326 + $0xc] sm:$0x8]
      %v1324 = vld [vmem:[%s326 + $0x10] sm:$0xf]
      %v1325 = vld [vmem:[%s326 + $0x14] sm:$0xf]
      %v1326 = vld [vmem:[%s326 + $0x18] sm:$0xf]
      %v1327 = vld [vmem:[%s326 + $0x1c] sm:$0xf]
      %v1329 = vshrl.u32 %v1323, 16
      %v1331 = vrot.slane %v1329, 7
      %v1332 = vrot.slane %v1331, 4
      %v1334 = vshrl.u32 %v1324, 16
      %v1336 = vrot.slane %v1334, 7
      %v1337 = vshll.u32 %v1324, 16
      %v1339 = vor.u32 %v1336, %v1337
      %v1340 = vsel %vm366, %v1332, %v1339
      %v1341 = vrot.slane %v1336, 4
      %v1343 = vshrl.u32 %v1325, 16
      %v1345 = vrot.slane %v1343, 7
      %v1346 = vshll.u32 %v1325, 16
      %v1348 = vor.u32 %v1345, %v1346
      %v1349 = vsel %vm366, %v1341, %v1348
      %v1350 = vrot.slane %v1345, 4
      %v1352 = vshrl.u32 %v1326, 16
      %v1354 = vrot.slane %v1352, 7
      %v1355 = vshll.u32 %v1326, 16
      %v1357 = vor.u32 %v1354, %v1355
      %v1358 = vsel %vm366, %v1350, %v1357
      %v1359 = vrot.slane %v1354, 4
      %v1361 = vshrl.u32 %v1327, 16
      %v1363 = vrot.slane %v1361, 7
      %v1364 = vshll.u32 %v1327, 16
      %v1366 = vor.u32 %v1363, %v1364
      %v1367 = vsel %vm366, %v1359, %v1366
      %1368 = vrot.lane.b32.xlu0 %v1340, 40
      %v1369 = vpop.permute.xlu0 %1368
      %1370 = vrot.lane.b32.xlu0 %v1349, 40
      %v1371 = vpop.permute.xlu0 %1370
      %1372 = vrot.lane.b32.xlu0 %v1358, 40
      %v1373 = vpop.permute.xlu0 %1372
      %1374 = vrot.lane.b32.xlu0 %v1367, 40
      %v1375 = vpop.permute.xlu0 %1374
      %1380 = vst.msk [vmem:[#allocation3 + $0x4] sm:$0xf] %vm600, %v1369
      %1381 = vst.msk [vmem:[#allocation3 + $0x10] sm:$0xf] %vm600, %v1371
      %1382 = vst.msk [vmem:[#allocation3 + $0x1c] sm:$0xf] %vm600, %v1373
      %1383 = vst.msk [vmem:[#allocation3 + $0x28] sm:$0xf] %vm600, %v1375
      %v1384 = vld [vmem:[%s326 + $0x10] sm:$0xf]
      %v1385 = vld [vmem:[%s326 + $0x14] sm:$0xf]
      %v1386 = vld [vmem:[%s326 + $0x18] sm:$0xf]
      %v1387 = vld [vmem:[%s326 + $0x1c] sm:$0xf]
      %1392 = vrot.lane.b32.xlu0 %v1384, 48
      %v1393 = vpop.permute.xlu0 %1392
      %1394 = vrot.lane.b32.xlu0 %v1385, 48
      %v1395 = vpop.permute.xlu0 %1394
      %1396 = vrot.lane.b32.xlu0 %v1386, 48
      %v1397 = vpop.permute.xlu0 %1396
      %1398 = vrot.lane.b32.xlu0 %v1387, 48
      %v1399 = vpop.permute.xlu0 %1398
      %1404 = vst.msk [vmem:[#allocation3 + $0x4] sm:$0xf] %vm666, %v1393
      %1405 = vst.msk [vmem:[#allocation3 + $0x10] sm:$0xf] %vm666, %v1395
      %1406 = vst.msk [vmem:[#allocation3 + $0x1c] sm:$0xf] %vm666, %v1397
      %1407 = vst.msk [vmem:[#allocation3 + $0x28] sm:$0xf] %vm666, %v1399
      %v1408 = vld [vmem:[%s326 + $0x10] sm:$0xf]
      %v1409 = vld [vmem:[%s326 + $0x14] sm:$0xf]
      %v1410 = vld [vmem:[%s326 + $0x18] sm:$0xf]
      %v1411 = vld [vmem:[%s326 + $0x1c] sm:$0xf]
      %v1412 = vld [vmem:[%s326 + $0x20] sm:$0x1]
      %v1414 = vshrl.u32 %v1408, 16
      %v1416 = vrot.slane %v1414, 4
      %v1417 = vshll.u32 %v1408, 16
      %v1419 = vrot.slane %v1417, 5
      %v1420 = vor.u32 %v1416, %v1419
      %v1421 = vrot.slane %v1420, 4
      %v1423 = vshll.u32 %v1409, 16
      %v1425 = vrot.slane %v1423, 5
      %v1426 = vsel %vm456, %v1421, %v1425
      %v1427 = vshrl.u32 %v1409, 16
      %v1429 = vrot.slane %v1427, 4
      %v1430 = vor.u32 %v1429, %v1425
      %v1431 = vrot.slane %v1430, 4
      %v1433 = vshll.u32 %v1410, 16
      %v1435 = vrot.slane %v1433, 5
      %v1436 = vsel %vm456, %v1431, %v1435
      %v1437 = vshrl.u32 %v1410, 16
      %v1439 = vrot.slane %v1437, 4
      %v1440 = vor.u32 %v1439, %v1435
      %v1441 = vrot.slane %v1440, 4
      %v1443 = vshll.u32 %v1411, 16
      %v1445 = vrot.slane %v1443, 5
      %v1446 = vsel %vm456, %v1441, %v1445
      %v1447 = vshrl.u32 %v1411, 16
      %v1449 = vrot.slane %v1447, 4
      %v1450 = vor.u32 %v1449, %v1445
      %v1451 = vrot.slane %v1450, 4
      %v1453 = vshll.u32 %v1412, 16
      %v1455 = vrot.slane %v1453, 5
      %v1456 = vsel %vm456, %v1451, %v1455
      %1457 = vrot.lane.b32.xlu0 %v1426, 56
      %v1458 = vpop.permute.xlu0 %1457
      %1459 = vrot.lane.b32.xlu0 %v1436, 56
      %v1460 = vpop.permute.xlu0 %1459
      %1461 = vrot.lane.b32.xlu0 %v1446, 56
      %v1462 = vpop.permute.xlu0 %1461
      %1463 = vrot.lane.b32.xlu0 %v1456, 56
      %v1464 = vpop.permute.xlu0 %1463
      %1469 = vst.msk [vmem:[#allocation3 + $0x4] sm:$0xf] %vm728, %v1458
      %1470 = vst.msk [vmem:[#allocation3 + $0x10] sm:$0xf] %vm728, %v1460
      %1471 = vst.msk [vmem:[#allocation3 + $0x1c] sm:$0xf] %vm728, %v1462
      %1472 = vst.msk [vmem:[#allocation3 + $0x28] sm:$0xf] %vm728, %v1464
      %v1473 = vld [vmem:[%s326 + $0x10] sm:$0xe]
      %v1474 = vld [vmem:[%s326 + $0x14] sm:$0xf]
      %v1475 = vld [vmem:[%s326 + $0x18] sm:$0xf]
      %v1476 = vld [vmem:[%s326 + $0x1c] sm:$0xf]
      %v1477 = vld [vmem:[%s326 + $0x20] sm:$0x1]
      %v1483 = vrot.slane %v1473, 5
      %v1484 = vrot.slane %v1483, 4
      %v1485 = vrot.slane %v1474, 5
      %v1486 = vsel %vm1032, %v1484, %v1485
      %v1487 = vrot.slane %v1485, 4
      %v1488 = vrot.slane %v1475, 5
      %v1489 = vsel %vm1032, %v1487, %v1488
      %v1490 = vrot.slane %v1488, 4
      %v1491 = vrot.slane %v1476, 5
      %v1492 = vsel %vm1032, %v1490, %v1491
      %v1493 = vrot.slane %v1491, 4
      %v1494 = vrot.slane %v1477, 5
      %v1495 = vsel %vm1032, %v1493, %v1494
      %1496 = vrot.lane.b32.xlu0 %v1486, 64
      %v1497 = vpop.permute.xlu0 %1496
      %1498 = vrot.lane.b32.xlu0 %v1489, 64
      %v1499 = vpop.permute.xlu0 %1498
      %1500 = vrot.lane.b32.xlu0 %v1492, 64
      %v1501 = vpop.permute.xlu0 %1500
      %1502 = vrot.lane.b32.xlu0 %v1495, 64
      %v1503 = vpop.permute.xlu0 %1502
      %1508 = vst.msk [vmem:[#allocation3 + $0x4] sm:$0xf] %vm753, %v1497
      %1509 = vst.msk [vmem:[#allocation3 + $0x10] sm:$0xf] %vm753, %v1499
      %1510 = vst.msk [vmem:[#allocation3 + $0x1c] sm:$0xf] %vm753, %v1501
      %1511 = vst.msk [vmem:[#allocation3 + $0x28] sm:$0xf] %vm753, %v1503
      %v1512 = vld [vmem:[%s326 + $0x10] sm:$0x8]
      %v1513 = vld [vmem:[%s326 + $0x14] sm:$0xf]
      %v1514 = vld [vmem:[%s326 + $0x18] sm:$0xf]
      %v1515 = vld [vmem:[%s326 + $0x1c] sm:$0xf]
      %v1516 = vld [vmem:[%s326 + $0x20] sm:$0x7]
      %v1522 = vrot.slane %v1512, 7
      %v1523 = vrot.slane %v1522, 4
      %v1524 = vrot.slane %v1513, 7
      %v1525 = vsel %vm836, %v1523, %v1524
      %v1526 = vrot.slane %v1524, 4
      %v1527 = vrot.slane %v1514, 7
      %v1528 = vsel %vm836, %v1526, %v1527
      %v1529 = vrot.slane %v1527, 4
      %v1530 = vrot.slane %v1515, 7
      %v1531 = vsel %vm836, %v1529, %v1530
      %v1532 = vrot.slane %v1530, 4
      %v1533 = vrot.slane %v1516, 7
      %v1534 = vsel %vm836, %v1532, %v1533
      %1535 = vrot.lane.b32.xlu0 %v1525, 72
      %v1536 = vpop.permute.xlu0 %1535
      %1537 = vrot.lane.b32.xlu0 %v1528, 72
      %v1538 = vpop.permute.xlu0 %1537
      %1539 = vrot.lane.b32.xlu0 %v1531, 72
      %v1540 = vpop.permute.xlu0 %1539
      %1541 = vrot.lane.b32.xlu0 %v1534, 72
      %v1542 = vpop.permute.xlu0 %1541
      %1547 = vst.msk [vmem:[#allocation3 + $0x4] sm:$0xf] %vm819, %v1536
      %1548 = vst.msk [vmem:[#allocation3 + $0x10] sm:$0xf] %vm819, %v1538
      %1549 = vst.msk [vmem:[#allocation3 + $0x1c] sm:$0xf] %vm819, %v1540
      %1550 = vst.msk [vmem:[#allocation3 + $0x28] sm:$0xf] %vm819, %v1542
      %v1551 = vld [vmem:[%s326 + $0x10] sm:$0x8]
      %v1552 = vld [vmem:[%s326 + $0x14] sm:$0xf]
      %v1553 = vld [vmem:[%s326 + $0x18] sm:$0xf]
      %v1554 = vld [vmem:[%s326 + $0x1c] sm:$0xf]
      %v1555 = vld [vmem:[%s326 + $0x20] sm:$0xf]
      %v1557 = vshrl.u32 %v1551, 16
      %v1559 = vrot.slane %v1557, 7
      %v1560 = vrot.slane %v1559, 4
      %v1562 = vshrl.u32 %v1552, 16
      %v1564 = vrot.slane %v1562, 7
      %v1565 = vshll.u32 %v1552, 16
      %v1567 = vor.u32 %v1564, %v1565
      %v1568 = vsel %vm366, %v1560, %v1567
      %v1569 = vrot.slane %v1564, 4
      %v1571 = vshrl.u32 %v1553, 16
      %v1573 = vrot.slane %v1571, 7
      %v1574 = vshll.u32 %v1553, 16
      %v1576 = vor.u32 %v1573, %v1574
      %v1577 = vsel %vm366, %v1569, %v1576
      %v1578 = vrot.slane %v1573, 4
      %v1580 = vshrl.u32 %v1554, 16
      %v1582 = vrot.slane %v1580, 7
      %v1583 = vshll.u32 %v1554, 16
      %v1585 = vor.u32 %v1582, %v1583
      %v1586 = vsel %vm366, %v1578, %v1585
      %v1587 = vrot.slane %v1582, 4
      %v1589 = vshrl.u32 %v1555, 16
      %v1591 = vrot.slane %v1589, 7
      %v1592 = vshll.u32 %v1555, 16
      %v1594 = vor.u32 %v1591, %v1592
      %v1595 = vsel %vm366, %v1587, %v1594
      %1596 = vrot.lane.b32.xlu0 %v1568, 80
      %v1597 = vpop.permute.xlu0 %1596
      %1598 = vrot.lane.b32.xlu0 %v1577, 80
      %v1599 = vpop.permute.xlu0 %1598
      %1600 = vrot.lane.b32.xlu0 %v1586, 80
      %v1601 = vpop.permute.xlu0 %1600
      %1602 = vrot.lane.b32.xlu0 %v1595, 80
      %v1603 = vpop.permute.xlu0 %1602
      %1608 = vst.msk [vmem:[#allocation3 + $0x4] sm:$0xf] %vm862, %v1597
      %1609 = vst.msk [vmem:[#allocation3 + $0x10] sm:$0xf] %vm862, %v1599
      %1610 = vst.msk [vmem:[#allocation3 + $0x1c] sm:$0xf] %vm862, %v1601
      %1611 = vst.msk [vmem:[#allocation3 + $0x28] sm:$0xf] %vm862, %v1603
      %v1612 = vld [vmem:[%s326 + $0x14] sm:$0xf]
      %v1613 = vld [vmem:[%s326 + $0x18] sm:$0xf]
      %v1614 = vld [vmem:[%s326 + $0x1c] sm:$0xf]
      %v1615 = vld [vmem:[%s326 + $0x20] sm:$0xf]
      %1620 = vrot.lane.b32.xlu0 %v1612, 88
      %v1621 = vpop.permute.xlu0 %1620
      %1622 = vrot.lane.b32.xlu0 %v1613, 88
      %v1623 = vpop.permute.xlu0 %1622
      %1624 = vrot.lane.b32.xlu0 %v1614, 88
      %v1625 = vpop.permute.xlu0 %1624
      %1626 = vrot.lane.b32.xlu0 %v1615, 88
      %v1627 = vpop.permute.xlu0 %1626
      %1632 = vst.msk [vmem:[#allocation3 + $0x4] sm:$0xf] %vm924, %v1621
      %1633 = vst.msk [vmem:[#allocation3 + $0x10] sm:$0xf] %vm924, %v1623
      %1634 = vst.msk [vmem:[#allocation3 + $0x1c] sm:$0xf] %vm924, %v1625
      %1635 = vst.msk [vmem:[#allocation3 + $0x28] sm:$0xf] %vm924, %v1627
      %v1636 = vld [vmem:[%s326 + $0x14] sm:$0xf]
      %v1637 = vld [vmem:[%s326 + $0x18] sm:$0xf]
      %v1638 = vld [vmem:[%s326 + $0x1c] sm:$0xf]
      %v1639 = vld [vmem:[%s326 + $0x20] sm:$0xf]
      %v1640 = vld [vmem:[%s326 + $0x24] sm:$0x1]
      %v1642 = vshrl.u32 %v1636, 16
      %v1644 = vrot.slane %v1642, 4
      %v1645 = vshll.u32 %v1636, 16
      %v1647 = vrot.slane %v1645, 5
      %v1648 = vor.u32 %v1644, %v1647
      %v1649 = vrot.slane %v1648, 4
      %v1651 = vshll.u32 %v1637, 16
      %v1653 = vrot.slane %v1651, 5
      %v1654 = vsel %vm456, %v1649, %v1653
      %v1655 = vshrl.u32 %v1637, 16
      %v1657 = vrot.slane %v1655, 4
      %v1658 = vor.u32 %v1657, %v1653
      %v1659 = vrot.slane %v1658, 4
      %v1661 = vshll.u32 %v1638, 16
      %v1663 = vrot.slane %v1661, 5
      %v1664 = vsel %vm456, %v1659, %v1663
      %v1665 = vshrl.u32 %v1638, 16
      %v1667 = vrot.slane %v1665, 4
      %v1668 = vor.u32 %v1667, %v1663
      %v1669 = vrot.slane %v1668, 4
      %v1671 = vshll.u32 %v1639, 16
      %v1673 = vrot.slane %v1671, 5
      %v1674 = vsel %vm456, %v1669, %v1673
      %v1675 = vshrl.u32 %v1639, 16
      %v1677 = vrot.slane %v1675, 4
      %v1678 = vor.u32 %v1677, %v1673
      %v1679 = vrot.slane %v1678, 4
      %v1681 = vshll.u32 %v1640, 16
      %v1683 = vrot.slane %v1681, 5
      %v1684 = vsel %vm456, %v1679, %v1683
      %1685 = vrot.lane.b32.xlu0 %v1654, 96
      %v1686 = vpop.permute.xlu0 %1685
      %1687 = vrot.lane.b32.xlu0 %v1664, 96
      %v1688 = vpop.permute.xlu0 %1687
      %1689 = vrot.lane.b32.xlu0 %v1674, 96
      %v1690 = vpop.permute.xlu0 %1689
      %1691 = vrot.lane.b32.xlu0 %v1684, 96
      %v1692 = vpop.permute.xlu0 %1691
      %1697 = vst.msk [vmem:[#allocation3 + $0x4] sm:$0xf] %vm949, %v1686
      %1698 = vst.msk [vmem:[#allocation3 + $0x10] sm:$0xf] %vm949, %v1688
      %1699 = vst.msk [vmem:[#allocation3 + $0x1c] sm:$0xf] %vm949, %v1690
      %1700 = vst.msk [vmem:[#allocation3 + $0x28] sm:$0xf] %vm949, %v1692
      %v1701 = vld [vmem:[%s326 + $0x14] sm:$0xe]
      %v1702 = vld [vmem:[%s326 + $0x18] sm:$0xf]
      %v1703 = vld [vmem:[%s326 + $0x1c] sm:$0xf]
      %v1704 = vld [vmem:[%s326 + $0x20] sm:$0xf]
      %v1705 = vld [vmem:[%s326 + $0x24] sm:$0x1]
      %v1711 = vrot.slane %v1701, 5
      %v1712 = vrot.slane %v1711, 4
      %v1713 = vrot.slane %v1702, 5
      %v1714 = vsel %vm1032, %v1712, %v1713
      %v1715 = vrot.slane %v1713, 4
      %v1716 = vrot.slane %v1703, 5
      %v1717 = vsel %vm1032, %v1715, %v1716
      %v1718 = vrot.slane %v1716, 4
      %v1719 = vrot.slane %v1704, 5
      %v1720 = vsel %vm1032, %v1718, %v1719
      %v1721 = vrot.slane %v1719, 4
      %v1722 = vrot.slane %v1705, 5
      %v1723 = vsel %vm1032, %v1721, %v1722
      %1724 = vrot.lane.b32.xlu0 %v1714, 104
      %v1725 = vpop.permute.xlu0 %1724
      %1726 = vrot.lane.b32.xlu0 %v1717, 104
      %v1727 = vpop.permute.xlu0 %1726
      %1728 = vrot.lane.b32.xlu0 %v1720, 104
      %v1729 = vpop.permute.xlu0 %1728
      %1730 = vrot.lane.b32.xlu0 %v1723, 104
      %v1731 = vpop.permute.xlu0 %1730
      %1736 = vst.msk [vmem:[#allocation3 + $0x4] sm:$0xf] %vm1015, %v1725
      %1737 = vst.msk [vmem:[#allocation3 + $0x10] sm:$0xf] %vm1015, %v1727
      %1738 = vst.msk [vmem:[#allocation3 + $0x1c] sm:$0xf] %vm1015, %v1729
      %1739 = vst.msk [vmem:[#allocation3 + $0x28] sm:$0xf] %vm1015, %v1731
      %v1740 = vld [vmem:[%s326 + $0x14] sm:$0x8]
      %v1741 = vld [vmem:[%s326 + $0x18] sm:$0xf]
      %v1742 = vld [vmem:[%s326 + $0x1c] sm:$0xf]
      %v1743 = vld [vmem:[%s326 + $0x20] sm:$0xf]
      %v1744 = vld [vmem:[%s326 + $0x24] sm:$0x7]
      %v1750 = vrot.slane %v1740, 7
      %v1751 = vrot.slane %v1750, 4
      %v1752 = vrot.slane %v1741, 7
      %v1753 = vsel %vm836, %v1751, %v1752
      %v1754 = vrot.slane %v1752, 4
      %v1755 = vrot.slane %v1742, 7
      %v1756 = vsel %vm836, %v1754, %v1755
      %v1757 = vrot.slane %v1755, 4
      %v1758 = vrot.slane %v1743, 7
      %v1759 = vsel %vm836, %v1757, %v1758
      %v1760 = vrot.slane %v1758, 4
      %v1761 = vrot.slane %v1744, 7
      %v1762 = vsel %vm836, %v1760, %v1761
      %1763 = vrot.lane.b32.xlu0 %v1753, 112
      %v1764 = vpop.permute.xlu0 %1763
      %1765 = vrot.lane.b32.xlu0 %v1756, 112
      %v1766 = vpop.permute.xlu0 %1765
      %1767 = vrot.lane.b32.xlu0 %v1759, 112
      %v1768 = vpop.permute.xlu0 %1767
      %1769 = vrot.lane.b32.xlu0 %v1762, 112
      %v1770 = vpop.permute.xlu0 %1769
      %1775 = vst.msk [vmem:[#allocation3 + $0x4] sm:$0xf] %vm1058, %v1764
      %1776 = vst.msk [vmem:[#allocation3 + $0x10] sm:$0xf] %vm1058, %v1766
      %1777 = vst.msk [vmem:[#allocation3 + $0x1c] sm:$0xf] %vm1058, %v1768
      %1778 = vst.msk [vmem:[#allocation3 + $0x28] sm:$0xf] %vm1058, %v1770
      %v1779 = vld [vmem:[%s326 + $0x14] sm:$0x8]
      %v1780 = vld [vmem:[%s326 + $0x18] sm:$0xf]
      %v1781 = vld [vmem:[%s326 + $0x1c] sm:$0xf]
      %v1782 = vld [vmem:[%s326 + $0x20] sm:$0xf]
      %v1783 = vld [vmem:[%s326 + $0x24] sm:$0xf]
      %v1785 = vshrl.u32 %v1779, 16
      %v1787 = vrot.slane %v1785, 7
      %v1788 = vrot.slane %v1787, 4
      %v1790 = vshrl.u32 %v1780, 16
      %v1792 = vrot.slane %v1790, 7
      %v1793 = vshll.u32 %v1780, 16
      %v1795 = vor.u32 %v1792, %v1793
      %v1796 = vsel %vm366, %v1788, %v1795
      %v1797 = vrot.slane %v1792, 4
      %v1799 = vshrl.u32 %v1781, 16
      %v1801 = vrot.slane %v1799, 7
      %v1802 = vshll.u32 %v1781, 16
      %v1804 = vor.u32 %v1801, %v1802
      %v1805 = vsel %vm366, %v1797, %v1804
      %v1806 = vrot.slane %v1801, 4
      %v1808 = vshrl.u32 %v1782, 16
      %v1810 = vrot.slane %v1808, 7
      %v1811 = vshll.u32 %v1782, 16
      %v1813 = vor.u32 %v1810, %v1811
      %v1814 = vsel %vm366, %v1806, %v1813
      %v1815 = vrot.slane %v1810, 4
      %v1817 = vshrl.u32 %v1783, 16
      %v1819 = vrot.slane %v1817, 7
      %v1820 = vshll.u32 %v1783, 16
      %v1822 = vor.u32 %v1819, %v1820
      %v1823 = vsel %vm366, %v1815, %v1822
      %1824 = vrot.lane.b32.xlu0 %v1796, 120
      %v1825 = vpop.permute.xlu0 %1824
      %1826 = vrot.lane.b32.xlu0 %v1805, 120
      %v1827 = vpop.permute.xlu0 %1826
      %1828 = vrot.lane.b32.xlu0 %v1814, 120
      %v1829 = vpop.permute.xlu0 %1828
      %1830 = vrot.lane.b32.xlu0 %v1823, 120
      %v1831 = vpop.permute.xlu0 %1830
      %1836 = vst.msk [vmem:[#allocation3 + $0x4] sm:$0xf] %vm1098, %v1825
      %1837 = vst.msk [vmem:[#allocation3 + $0x10] sm:$0xf] %vm1098, %v1827
      %1838 = vst.msk [vmem:[#allocation3 + $0x1c] sm:$0xf] %vm1098, %v1829
      %1839 = vst.msk [vmem:[#allocation3 + $0x28] sm:$0xf] %vm1098, %v1831
      %v1840 = vld [vmem:[%s326 + $0x18] sm:$0xf]
      %v1841 = vld [vmem:[%s326 + $0x1c] sm:$0xf]
      %v1842 = vld [vmem:[%s326 + $0x20] sm:$0xf]
      %v1843 = vld [vmem:[%s326 + $0x24] sm:$0xf]
      %1844 = vst.msk [vmem:[#allocation3 + $0x8] sm:$0xf] %vm354, %v1840
      %1845 = vst.msk [vmem:[#allocation3 + $0x14] sm:$0xf] %vm354, %v1841
      %1846 = vst.msk [vmem:[#allocation3 + $0x20] sm:$0xf] %vm354, %v1842
      %1847 = vst.msk [vmem:[#allocation3 + $0x2c] sm:$0xf] %vm354, %v1843
      %v1848 = vld [vmem:[%s326 + $0x18] sm:$0xf]
      %v1849 = vld [vmem:[%s326 + $0x1c] sm:$0xf]
      %v1850 = vld [vmem:[%s326 + $0x20] sm:$0xf]
      %v1851 = vld [vmem:[%s326 + $0x24] sm:$0xf]
      %v1852 = vld [vmem:[%s326 + $0x28] sm:$0x1]
      %v1854 = vshrl.u32 %v1848, 16
      %v1856 = vrot.slane %v1854, 4
      %v1857 = vshll.u32 %v1848, 16
      %v1859 = vrot.slane %v1857, 5
      %v1860 = vor.u32 %v1856, %v1859
      %v1861 = vrot.slane %v1860, 4
      %v1863 = vshll.u32 %v1849, 16
      %v1865 = vrot.slane %v1863, 5
      %v1866 = vsel %vm456, %v1861, %v1865
      %v1867 = vshrl.u32 %v1849, 16
      %v1869 = vrot.slane %v1867, 4
      %v1870 = vor.u32 %v1869, %v1865
      %v1871 = vrot.slane %v1870, 4
      %v1873 = vshll.u32 %v1850, 16
      %v1875 = vrot.slane %v1873, 5
      %v1876 = vsel %vm456, %v1871, %v1875
      %v1877 = vshrl.u32 %v1850, 16
      %v1879 = vrot.slane %v1877, 4
      %v1880 = vor.u32 %v1879, %v1875
      %v1881 = vrot.slane %v1880, 4
      %v1883 = vshll.u32 %v1851, 16
      %v1885 = vrot.slane %v1883, 5
      %v1886 = vsel %vm456, %v1881, %v1885
      %v1887 = vshrl.u32 %v1851, 16
      %v1889 = vrot.slane %v1887, 4
      %v1890 = vor.u32 %v1889, %v1885
      %v1891 = vrot.slane %v1890, 4
      %v1893 = vshll.u32 %v1852, 16
      %v1895 = vrot.slane %v1893, 5
      %v1896 = vsel %vm456, %v1891, %v1895
      %1897 = vrot.lane.b32.xlu0 %v1866, 8
      %v1898 = vpop.permute.xlu0 %1897
      %1899 = vrot.lane.b32.xlu0 %v1876, 8
      %v1900 = vpop.permute.xlu0 %1899
      %1901 = vrot.lane.b32.xlu0 %v1886, 8
      %v1902 = vpop.permute.xlu0 %1901
      %1903 = vrot.lane.b32.xlu0 %v1896, 8
      %v1904 = vpop.permute.xlu0 %1903
      %1909 = vst.msk [vmem:[#allocation3 + $0x8] sm:$0xf] %vm419, %v1898
      %1910 = vst.msk [vmem:[#allocation3 + $0x14] sm:$0xf] %vm419, %v1900
      %1911 = vst.msk [vmem:[#allocation3 + $0x20] sm:$0xf] %vm419, %v1902
      %1912 = vst.msk [vmem:[#allocation3 + $0x2c] sm:$0xf] %vm419, %v1904
      %v1913 = vld [vmem:[%s326 + $0x18] sm:$0xe]
      %v1914 = vld [vmem:[%s326 + $0x1c] sm:$0xf]
      %v1915 = vld [vmem:[%s326 + $0x20] sm:$0xf]
      %v1916 = vld [vmem:[%s326 + $0x24] sm:$0xf]
      %v1917 = vld [vmem:[%s326 + $0x28] sm:$0x1]
      %v1923 = vrot.slane %v1913, 5
      %v1924 = vrot.slane %v1923, 4
      %v1925 = vrot.slane %v1914, 5
      %v1926 = vsel %vm1032, %v1924, %v1925
      %v1927 = vrot.slane %v1925, 4
      %v1928 = vrot.slane %v1915, 5
      %v1929 = vsel %vm1032, %v1927, %v1928
      %v1930 = vrot.slane %v1928, 4
      %v1931 = vrot.slane %v1916, 5
      %v1932 = vsel %vm1032, %v1930, %v1931
      %v1933 = vrot.slane %v1931, 4
      %v1934 = vrot.slane %v1917, 5
      %v1935 = vsel %vm1032, %v1933, %v1934
      %1936 = vrot.lane.b32.xlu0 %v1926, 16
      %v1937 = vpop.permute.xlu0 %1936
      %1938 = vrot.lane.b32.xlu0 %v1929, 16
      %v1939 = vpop.permute.xlu0 %1938
      %1940 = vrot.lane.b32.xlu0 %v1932, 16
      %v1941 = vpop.permute.xlu0 %1940
      %1942 = vrot.lane.b32.xlu0 %v1935, 16
      %v1943 = vpop.permute.xlu0 %1942
      %1948 = vst.msk [vmem:[#allocation3 + $0x8] sm:$0xf] %vm444, %v1937
      %1949 = vst.msk [vmem:[#allocation3 + $0x14] sm:$0xf] %vm444, %v1939
      %1950 = vst.msk [vmem:[#allocation3 + $0x20] sm:$0xf] %vm444, %v1941
      %1951 = vst.msk [vmem:[#allocation3 + $0x2c] sm:$0xf] %vm444, %v1943
      %v1952 = vld [vmem:[#allocation3] sm:$0xff]
      %v1953 = vld [vmem:[#allocation3 + $0x8] sm:$0xf]
      %v1954 = vld [vmem:[#allocation3 + $0xc] sm:$0xff]
      %v1955 = vld [vmem:[#allocation3 + $0x14] sm:$0xf]
      %v1956 = vld [vmem:[#allocation3 + $0x18] sm:$0xff]
      %v1957 = vld [vmem:[#allocation3 + $0x20] sm:$0xf]
      %v1958 = vld [vmem:[#allocation3 + $0x24] sm:$0xff]
      %v1959 = vld [vmem:[#allocation3 + $0x2c] sm:$0xf]
      %v1960 = vld [vmem:[%s1] sm:$0xf]
      %v1961 = vld [vmem:[%s1 + $0x4] sm:$0xf]
      %v1962 = vld [vmem:[%s1 + $0x8] sm:$0xf]
      %v1963 = vld [vmem:[%s1 + $0xc] sm:$0xf]
      %v1964 = vld [vmem:[%s1 + $0x10] sm:$0xf]
      %v1965 = vld [vmem:[%s1 + $0x14] sm:$0xf]
      %v1966 = vld [vmem:[%s1 + $0x18] sm:$0xf]
      %v1967 = vld [vmem:[%s1 + $0x1c] sm:$0xf]
      %v1968 = vld [vmem:[%s1 + $0x20] sm:$0xf]
      %v1969 = vld [vmem:[%s1 + $0x24] sm:$0xf]
      %v1970 = vld [vmem:[%s1 + $0x28] sm:$0xf]
      %v1971 = vld [vmem:[%s1 + $0x2c] sm:$0xf]
      %v1972 = vld [vmem:[%s1 + $0x30] sm:$0xf]
      %v1973 = vld [vmem:[%s1 + $0x34] sm:$0xf]
      %v1974 = vld [vmem:[%s1 + $0x38] sm:$0xf]
      %v1975 = vld [vmem:[%s1 + $0x3c] sm:$0xf]
      %v1976 = vld [vmem:[%s1 + $0x40] sm:$0xf]
      %v1977 = vld [vmem:[%s1 + $0x44] sm:$0xf]
      %v1978 = vld [vmem:[%s1 + $0x48] sm:$0xf]
      %v1979 = vld [vmem:[%s1 + $0x4c] sm:$0xf]
      %v1980 = vld [vmem:[%s1 + $0x50] sm:$0xf]
      %v1981 = vld [vmem:[%s1 + $0x54] sm:$0xf]
      %v1982 = vld [vmem:[%s1 + $0x58] sm:$0xf]
      %v1983 = vld [vmem:[%s1 + $0x5c] sm:$0xf]
      %v1984 = vld [vmem:[%s1 + $0x60] sm:$0xf]
      %v1985 = vld [vmem:[%s1 + $0x64] sm:$0xf]
      %v1986 = vld [vmem:[%s1 + $0x68] sm:$0xf]
      %v1987 = vld [vmem:[%s1 + $0x6c] sm:$0xf]
      %v1988 = vld [vmem:[%s1 + $0x70] sm:$0xf]
      %v1989 = vld [vmem:[%s1 + $0x74] sm:$0xf]
      %v1990 = vld [vmem:[%s1 + $0x78] sm:$0xf]
      %v1991 = vld [vmem:[%s1 + $0x7c] sm:$0xf]
      %v1992 = vld [vmem:[%s1 + $0x80] sm:$0xf]
      %v1993 = vld [vmem:[%s1 + $0x84] sm:$0xf]
      %v1994 = vld [vmem:[%s1 + $0x88] sm:$0xf]
      %v1995 = vld [vmem:[%s2] sm:$0x1]
      %v1997 = vlaneseq
      %v1998 = vshrl.u32 %v1997, 7
      %v1999 = vsub.s32 0, %v1998
      %v2000 = vrot.slane %v1995, %v1999
      %v2010 = vunpack.c.l.b16 %v1952
      %v2011 = vunpack.c.h.b16 %v1952
      %v2012 = vunpack.c.l.b16 %v1953
      %v2013 = vunpack.c.l.b16 %v1954
      %v2014 = vunpack.c.h.b16 %v1954
      %v2015 = vunpack.c.l.b16 %v1955
      %v2016 = vunpack.c.l.b16 %v1956
      %v2017 = vunpack.c.h.b16 %v1956
      %v2018 = vunpack.c.l.b16 %v1957
      %v2019 = vunpack.c.l.b16 %v1958
      %v2020 = vunpack.c.h.b16 %v1958
      %v2021 = vunpack.c.l.b16 %v1959
      %v2022 = vpack.c.b16 %v2013, %v2010
      %v2023 = vpack.c.b16 %v2014, %v2011
      %v2024 = vpack.c.b16 %v2015, %v2012
      %v2025 = vpack.c.b16 %v2019, %v2016
      %v2026 = vpack.c.b16 %v2020, %v2017
      %v2027 = vpack.c.b16 %v2021, %v2018
      %v2067 = vunpack.c.l.b16 %v1960
      %v2068 = vunpack.c.l.b16 %v1961
      %v2069 = vunpack.c.l.b16 %v1962
      %v2070 = vunpack.c.l.b16 %v1963
      %v2071 = vunpack.c.l.b16 %v1964
      %v2072 = vunpack.c.l.b16 %v1965
      %v2073 = vunpack.c.l.b16 %v1966
      %v2074 = vunpack.c.l.b16 %v1967
      %v2075 = vunpack.c.l.b16 %v1968
      %v2076 = vunpack.c.l.b16 %v1969
      %v2077 = vunpack.c.l.b16 %v1970
      %v2078 = vunpack.c.l.b16 %v1971
      %v2079 = vunpack.c.l.b16 %v1972
      %v2080 = vunpack.c.l.b16 %v1973
      %v2081 = vunpack.c.l.b16 %v1974
      %v2082 = vunpack.c.l.b16 %v1975
      %v2083 = vunpack.c.l.b16 %v1976
      %v2084 = vunpack.c.l.b16 %v1977
      %v2085 = vunpack.c.l.b16 %v1978
      %v2086 = vunpack.c.l.b16 %v1979
      %v2087 = vunpack.c.l.b16 %v1980
      %v2088 = vunpack.c.l.b16 %v1981
      %v2089 = vunpack.c.l.b16 %v1982
      %v2090 = vunpack.c.l.b16 %v1983
      %v2091 = vunpack.c.l.b16 %v1984
      %v2092 = vunpack.c.l.b16 %v1985
      %v2093 = vunpack.c.l.b16 %v1986
      %v2094 = vunpack.c.l.b16 %v1987
      %v2095 = vunpack.c.l.b16 %v1988
      %v2096 = vunpack.c.l.b16 %v1989
      %v2097 = vunpack.c.l.b16 %v1990
      %v2098 = vunpack.c.l.b16 %v1991
      %v2099 = vunpack.c.l.b16 %v1992
      %v2100 = vunpack.c.l.b16 %v1993
      %v2101 = vunpack.c.l.b16 %v1994
      %v2102 = vpack.c.b16 %v2068, %v2067
      %v2103 = vpack.c.b16 %v2070, %v2069
      %v2104 = vpack.c.b16 %v2072, %v2071
      %v2105 = vpack.c.b16 %v2074, %v2073
      %v2106 = vpack.c.b16 %v2076, %v2075
      %v2107 = vpack.c.b16 %v2078, %v2077
      %v2108 = vpack.c.b16 %v2080, %v2079
      %v2109 = vpack.c.b16 %v2082, %v2081
      %v2110 = vpack.c.b16 %v2084, %v2083
      %v2111 = vpack.c.b16 %v2086, %v2085
      %v2112 = vpack.c.b16 %v2088, %v2087
      %v2113 = vpack.c.b16 %v2090, %v2089
      %v2114 = vpack.c.b16 %v2092, %v2091
      %v2115 = vpack.c.b16 %v2094, %v2093
      %v2116 = vpack.c.b16 %v2096, %v2095
      %v2117 = vpack.c.b16 %v2098, %v2097
      %v2118 = vpack.c.b16 %v2100, %v2099
      %v2119 = vpack.c.b16 %v2101, %v2101
      %vm2137 = vcmask 195584
      %v2139 = vsel %vm2137, %v2024, 0
      %v2142 = vsel %vm2137, %v2027, 0
      %vm2144 = vcmask 1043456
      %v2146 = vsel %vm2144, %v2119, 0
      %2148 = vmatprep.subr.bf16.mxu0 0
      %2149 = vmatpush1.bf16.msra.mxu0 %v2109
      %2150 = vmatprep.subr.bf16.mxu0 0
      %2151 = vmatpush1.bf16.msra.mxu0 %v2108
      %2152 = vmatprep.subr.bf16.mxu0 0
      %2153 = vmatpush1.bf16.msra.mxu0 %v2107
      %2154 = vmatprep.subr.bf16.mxu0 0
      %2155 = vmatpush1.bf16.msra.mxu0 %v2106
      %2156 = vmatprep.subr.bf16.mxu0 0
      %2157 = vmatpush1.bf16.msra.mxu0 %v2105
      %2158 = vmatprep.subr.bf16.mxu0 0
      %2159 = vmatpush1.bf16.msra.mxu0 %v2104
      %2160 = vmatprep.subr.bf16.mxu0 0
      %2161 = vmatpush1.bf16.msra.mxu0 %v2103
      %2162 = vmatprep.subr.bf16.mxu0 0
      %2163 = vmatpush1.bf16.msra.mxu0 %v2102
      %2164 = vmatprep.subr.bf16.mxu0 0
      %2165 = vmatpush2.bf16.msra.mxu0 %v2117
      %2166 = vmatprep.subr.bf16.mxu0 0
      %2167 = vmatpush2.bf16.msra.mxu0 %v2116
      %2168 = vmatprep.subr.bf16.mxu0 0
      %2169 = vmatpush2.bf16.msra.mxu0 %v2115
      %2170 = vmatprep.subr.bf16.mxu0 0
      %2171 = vmatpush2.bf16.msra.mxu0 %v2114
      %2172 = vmatprep.subr.bf16.mxu0 0
      %2173 = vmatpush2.bf16.msra.mxu0 %v2113
      %2174 = vmatprep.subr.bf16.mxu0 0
      %2175 = vmatpush2.bf16.msra.mxu0 %v2112
      %2176 = vmatprep.subr.bf16.mxu0 0
      %2177 = vmatpush2.bf16.msra.mxu0 %v2111
      %2178 = vmatprep.subr.bf16.mxu0 0
      %2179 = vmatpush2.bf16.msra.mxu0 %v2110
      %2180 = vmatprep.mubr.bf16.mxu0 %v2023
      %2181 = vmatmul.mubr.bf16.gmra.mxu0 %v2022
      %v2182 = vpop.f32.mrf.mxu0
      %v2183 = vadd.f32 %v2000, %v2182
      %v2184 = vpop.f32.mrf.mxu0
      %v2185 = vpop.f32.mrf.mxu0
      %v2186 = vadd.f32 %v2000, %v2185
      %v2187 = vpop.f32.mrf.mxu0
      %2188 = vmatprep.mubr.bf16.mxu0 %v2026
      %2189 = vmatmul.mubr.bf16.gmra.mxu0 %v2025
      %v2190 = vpop.f32.mrf.mxu0
      %v2191 = vadd.f32 %v2000, %v2190
      %v2192 = vpop.f32.mrf.mxu0
      %v2193 = vpop.f32.mrf.mxu0
      %v2194 = vadd.f32 %v2000, %v2193
      %v2195 = vpop.f32.mrf.mxu0
      %2196 = vdwg.mxu0
      %2197 = vmatprep.subr.bf16.mxu0 0
      %2198 = vmatpush1.bf16.msra.mxu0 0
      %2199 = vmatprep.subr.bf16.mxu0 0
      %2200 = vmatpush1.bf16.msra.mxu0 0
      %2201 = vmatprep.subr.bf16.mxu0 0
      %2202 = vmatpush1.bf16.msra.mxu0 0
      %2203 = vmatprep.subr.bf16.mxu0 0
      %2204 = vmatpush1.bf16.msra.mxu0 0
      %2205 = vmatprep.subr.bf16.mxu0 0
      %2206 = vmatpush1.bf16.msra.mxu0 0
      %2207 = vmatprep.subr.bf16.mxu0 0
      %2208 = vmatpush1.bf16.msra.mxu0 0
      %2209 = vmatprep.subr.bf16.mxu0 0
      %2210 = vmatpush1.bf16.msra.mxu0 %v2146
      %2211 = vmatprep.subr.bf16.mxu0 0
      %2212 = vmatpush1.bf16.msra.mxu0 %v2118
      %2213 = vmatprep.subr.bf16.mxu0 0
      %2214 = vmatpush2.bf16.msra.mxu0 0
      %2215 = vmatprep.subr.bf16.mxu0 0
      %2216 = vmatpush2.bf16.msra.mxu0 0
      %2217 = vmatprep.subr.bf16.mxu0 0
      %2218 = vmatpush2.bf16.msra.mxu0 0
      %2219 = vmatprep.subr.bf16.mxu0 0
      %2220 = vmatpush2.bf16.msra.mxu0 0
      %2221 = vmatprep.subr.bf16.mxu0 0
      %2222 = vmatpush2.bf16.msra.mxu0 0
      %2223 = vmatprep.subr.bf16.mxu0 0
      %2224 = vmatpush2.bf16.msra.mxu0 0
      %2225 = vmatprep.subr.bf16.mxu0 0
      %2226 = vmatpush2.bf16.msra.mxu0 0
      %2227 = vmatprep.subr.bf16.mxu0 0
      %2228 = vmatpush2.bf16.msra.mxu0 0
      %2229 = vmatprep.mubr.bf16.mxu0 0
      %2230 = vmatmul.mubr.bf16.gmra.mxu0 %v2139
      %v2231 = vpop.f32.mrf.mxu0
      %v2232 = vadd.f32 %v2183, %v2231
      %v2233 = vpop.f32.mrf.mxu0
      %v2234 = vpop.f32.mrf.mxu0
      %v2235 = vadd.f32 %v2186, %v2234
      %v2236 = vpop.f32.mrf.mxu0
      %2237 = vmatprep.mubr.bf16.mxu0 0
      %2238 = vmatmul.mubr.bf16.gmra.mxu0 %v2142
      %v2239 = vpop.f32.mrf.mxu0
      %v2240 = vadd.f32 %v2191, %v2239
      %v2241 = vpop.f32.mrf.mxu0
      %v2242 = vpop.f32.mrf.mxu0
      %v2243 = vadd.f32 %v2194, %v2242
      %v2244 = vpop.f32.mrf.mxu0
      %2245 = vdwg.mxu0
      %v2246 = vmul.f32 %v2232, %v2232
      %v2247 = vmul.f32 %v2235, %v2235
      %v2248 = vmul.f32 %v2240, %v2240
      %v2249 = vmul.f32 %v2243, %v2243
      %v2250 = vmul.f32 %v2232, %v2246
      %v2251 = vmul.f32 %v2235, %v2247
      %v2252 = vmul.f32 %v2240, %v2248
      %v2253 = vmul.f32 %v2243, %v2249
      %v2254 = vmul.f32 %v2250, 0.044715
      %v2255 = vmul.f32 %v2251, 0.044715
      %v2256 = vmul.f32 %v2252, 0.044715
      %v2257 = vmul.f32 %v2253, 0.044715
      %v2258 = vadd.f32 %v2232, %v2254
      %v2259 = vadd.f32 %v2235, %v2255
      %v2260 = vadd.f32 %v2240, %v2256
      %v2261 = vadd.f32 %v2243, %v2257
      %v2262 = vmul.f32 %v2258, 0.7978846
      %v2263 = vmul.f32 %v2259, 0.7978846
      %v2264 = vmul.f32 %v2260, 0.7978846
      %v2265 = vmul.f32 %v2261, 0.7978846
      %v2266 = vtanh.pop %v2262
      %v2267 = vtanh.pop %v2263
      %v2268 = vtanh.pop %v2264
      %v2269 = vtanh.pop %v2265
      %v2270 = vadd.f32 %v2266, 1.0
      %v2271 = vadd.f32 %v2267, 1.0
      %v2272 = vadd.f32 %v2268, 1.0
      %v2273 = vadd.f32 %v2269, 1.0
      %v2274 = vmul.f32 %v2270, 0.5
      %v2275 = vmul.f32 %v2271, 0.5
      %v2276 = vmul.f32 %v2272, 0.5
      %v2277 = vmul.f32 %v2273, 0.5
      %v2278 = vmul.f32 %v2232, %v2274
      %v2279 = vmul.f32 %v2235, %v2275
      %v2280 = vmul.f32 %v2240, %v2276
      %v2281 = vmul.f32 %v2243, %v2277
      %v2282 = vpack.c.bf16 %v2279, %v2278
      %v2283 = vpack.c.bf16 %v2281, %v2280
      %v2284 = vld [vmem:[%s5] sm:$0xf]
      %v2285 = vld [vmem:[%s5 + $0x4] sm:$0xf]
      %v2286 = vld [vmem:[%s5 + $0x8] sm:$0xf]
      %v2287 = vld [vmem:[%s5 + $0xc] sm:$0xf]
      %2289 = vset.pattern.permute.xlu0 0
      %2290 = vperm.xlu0 %2289, %v2284
      %v2291 = vpop.permute.xlu0 %2290
      %v2294 = vunpack.c.l.s4 839922192
      %v2295 = vunpack.c.0.s8 %v2294
      %v2296 = vlaneseq
      %v2297 = vshrl.u32 %v2296, 7
      %v2298 = vsub.s32 %v2295, %v2297
      %v2299 = vrot.slane %v2291, %v2298
      %2301 = vset.pattern.permute.xlu0 0
      %2302 = vperm.xlu0 %2301, %v2285
      %v2303 = vpop.permute.xlu0 %2302
      %v2306 = vunpack.c.l.s4 839922192
      %v2307 = vunpack.c.0.s8 %v2306
      %v2308 = vlaneseq
      %v2309 = vshrl.u32 %v2308, 7
      %v2310 = vsub.s32 %v2307, %v2309
      %v2311 = vrot.slane %v2303, %v2310
      %2313 = vset.pattern.permute.xlu0 0
      %2314 = vperm.xlu0 %2313, %v2286
      %v2315 = vpop.permute.xlu0 %2314
      %v2318 = vunpack.c.l.s4 839922192
      %v2319 = vunpack.c.0.s8 %v2318
      %v2320 = vlaneseq
      %v2321 = vshrl.u32 %v2320, 7
      %v2322 = vsub.s32 %v2319, %v2321
      %v2323 = vrot.slane %v2315, %v2322
      %2325 = vset.pattern.permute.xlu0 0
      %2326 = vperm.xlu0 %2325, %v2287
      %v2327 = vpop.permute.xlu0 %2326
      %v2330 = vunpack.c.l.s4 839922192
      %v2331 = vunpack.c.0.s8 %v2330
      %v2332 = vlaneseq
      %v2333 = vshrl.u32 %v2332, 7
      %v2334 = vsub.s32 %v2331, %v2333
      %v2335 = vrot.slane %v2327, %v2334
      %v2340 = vunpack.c.l.b16 %v2299
      %v2341 = vunpack.c.l.b16 %v2311
      %v2342 = vunpack.c.l.b16 %v2323
      %v2343 = vunpack.c.l.b16 %v2335
      %v2344 = vpack.c.b16 %v2341, %v2340
      %v2345 = vpack.c.b16 %v2343, %v2342
      %v2348 = vmul.bf16 %v2282, %v2344
      %v2349 = vmul.bf16 %v2283, %v2345
      %v2352 = vunpack.c.l.b16 %v2348
      %v2353 = vunpack.c.h.b16 %v2348
      %v2354 = vunpack.c.l.b16 %v2349
      %v2355 = vunpack.c.h.b16 %v2349
      %v2356 = vpack.c.b16 %v2352, %v2352
      %v2357 = vpack.c.b16 %v2353, %v2353
      %v2358 = vpack.c.b16 %v2354, %v2354
      %v2359 = vpack.c.b16 %v2355, %v2355
      %2364 = vst.msk [vmem:[#allocation2 + $0x10] sm:$0xf] %vm341, %v2356
      %2365 = vst.msk [vmem:[#allocation2 + $0x14] sm:$0xf] %vm341, %v2357
      %2366 = vst.msk [vmem:[#allocation2 + $0x18] sm:$0xf] %vm341, %v2358
      %2367 = vst.msk [vmem:[#allocation2 + $0x1c] sm:$0xf] %vm341, %v2359
      %v2368 = vld [vmem:[#allocation2 + $0x10] sm:$0xf]
      %v2369 = vld [vmem:[#allocation2 + $0x14] sm:$0xf]
      %v2370 = vld [vmem:[#allocation2 + $0x18] sm:$0xf]
      %v2371 = vld [vmem:[#allocation2 + $0x1c] sm:$0xf]
      %2372 = vst.msk [vmem:[#allocation4] sm:$0xf] %vm341, %v2368
      %2373 = vst.msk [vmem:[#allocation4 + $0x14] sm:$0xf] %vm341, %v2369
      %2374 = vst.msk [vmem:[#allocation4 + $0x28] sm:$0xf] %vm341, %v2370
      %2375 = vst.msk [vmem:[#allocation4 + $0x3c] sm:$0xf] %vm341, %v2371
      %v2376 = vld [vmem:[#allocation2 + $0x8] sm:$0x8]
      %v2377 = vld [vmem:[#allocation2 + $0xc] sm:$0xf]
      %v2378 = vld [vmem:[#allocation2 + $0x10] sm:$0xf]
      %v2379 = vld [vmem:[#allocation2 + $0x14] sm:$0xf]
      %v2380 = vld [vmem:[#allocation2 + $0x18] sm:$0xf]
      %v2382 = vshrl.u32 %v2376, 16
      %v2384 = vrot.slane %v2382, 7
      %v2385 = vrot.slane %v2384, 4
      %v2387 = vshrl.u32 %v2377, 16
      %v2389 = vrot.slane %v2387, 7
      %v2390 = vshll.u32 %v2377, 16
      %v2392 = vor.u32 %v2389, %v2390
      %v2393 = vsel %vm366, %v2385, %v2392
      %v2394 = vrot.slane %v2389, 4
      %v2396 = vshrl.u32 %v2378, 16
      %v2398 = vrot.slane %v2396, 7
      %v2399 = vshll.u32 %v2378, 16
      %v2401 = vor.u32 %v2398, %v2399
      %v2402 = vsel %vm366, %v2394, %v2401
      %v2403 = vrot.slane %v2398, 4
      %v2405 = vshrl.u32 %v2379, 16
      %v2407 = vrot.slane %v2405, 7
      %v2408 = vshll.u32 %v2379, 16
      %v2410 = vor.u32 %v2407, %v2408
      %v2411 = vsel %vm366, %v2403, %v2410
      %v2412 = vrot.slane %v2407, 4
      %v2414 = vshrl.u32 %v2380, 16
      %v2416 = vrot.slane %v2414, 7
      %v2417 = vshll.u32 %v2380, 16
      %v2419 = vor.u32 %v2416, %v2417
      %v2420 = vsel %vm366, %v2412, %v2419
      %2421 = vrot.lane.b32.xlu0 %v2393, 16
      %v2422 = vpop.permute.xlu0 %2421
      %2423 = vrot.lane.b32.xlu0 %v2402, 16
      %v2424 = vpop.permute.xlu0 %2423
      %2425 = vrot.lane.b32.xlu0 %v2411, 16
      %v2426 = vpop.permute.xlu0 %2425
      %2427 = vrot.lane.b32.xlu0 %v2420, 16
      %v2428 = vpop.permute.xlu0 %2427
      %vm2433 = vcmask 257152
      %2434 = vst.msk [vmem:[#allocation4] sm:$0xf] %vm2433, %v2422
      %2435 = vst.msk [vmem:[#allocation4 + $0x14] sm:$0xf] %vm2433, %v2424
      %2436 = vst.msk [vmem:[#allocation4 + $0x28] sm:$0xf] %vm2433, %v2426
      %2437 = vst.msk [vmem:[#allocation4 + $0x3c] sm:$0xf] %vm2433, %v2428
      %v2438 = vld [vmem:[#allocation2 + $0xc] sm:$0xf]
      %v2439 = vld [vmem:[#allocation2 + $0x10] sm:$0xf]
      %v2440 = vld [vmem:[#allocation2 + $0x14] sm:$0xf]
      %v2441 = vld [vmem:[#allocation2 + $0x18] sm:$0xf]
      %2446 = vrot.lane.b32.xlu0 %v2438, 32
      %v2447 = vpop.permute.xlu0 %2446
      %2448 = vrot.lane.b32.xlu0 %v2439, 32
      %v2449 = vpop.permute.xlu0 %2448
      %2450 = vrot.lane.b32.xlu0 %v2440, 32
      %v2451 = vpop.permute.xlu0 %2450
      %2452 = vrot.lane.b32.xlu0 %v2441, 32
      %v2453 = vpop.permute.xlu0 %2452
      %vm2458 = vcmask 388352
      %2459 = vst.msk [vmem:[#allocation4] sm:$0xf] %vm2458, %v2447
      %2460 = vst.msk [vmem:[#allocation4 + $0x14] sm:$0xf] %vm2458, %v2449
      %2461 = vst.msk [vmem:[#allocation4 + $0x28] sm:$0xf] %vm2458, %v2451
      %2462 = vst.msk [vmem:[#allocation4 + $0x3c] sm:$0xf] %vm2458, %v2453
      %v2463 = vld [vmem:[#allocation2 + $0xc] sm:$0xf]
      %v2464 = vld [vmem:[#allocation2 + $0x10] sm:$0xf]
      %v2465 = vld [vmem:[#allocation2 + $0x14] sm:$0xf]
      %v2466 = vld [vmem:[#allocation2 + $0x18] sm:$0xf]
      %v2467 = vld [vmem:[#allocation2 + $0x1c] sm:$0x1]
      %v2469 = vshrl.u32 %v2463, 16
      %v2471 = vrot.slane %v2469, 4
      %v2472 = vshll.u32 %v2463, 16
      %v2474 = vrot.slane %v2472, 5
      %v2475 = vor.u32 %v2471, %v2474
      %v2476 = vrot.slane %v2475, 4
      %v2478 = vshll.u32 %v2464, 16
      %v2480 = vrot.slane %v2478, 5
      %v2481 = vsel %vm456, %v2476, %v2480
      %v2482 = vshrl.u32 %v2464, 16
      %v2484 = vrot.slane %v2482, 4
      %v2485 = vor.u32 %v2484, %v2480
      %v2486 = vrot.slane %v2485, 4
      %v2488 = vshll.u32 %v2465, 16
      %v2490 = vrot.slane %v2488, 5
      %v2491 = vsel %vm456, %v2486, %v2490
      %v2492 = vshrl.u32 %v2465, 16
      %v2494 = vrot.slane %v2492, 4
      %v2495 = vor.u32 %v2494, %v2490
      %v2496 = vrot.slane %v2495, 4
      %v2498 = vshll.u32 %v2466, 16
      %v2500 = vrot.slane %v2498, 5
      %v2501 = vsel %vm456, %v2496, %v2500
      %v2502 = vshrl.u32 %v2466, 16
      %v2504 = vrot.slane %v2502, 4
      %v2505 = vor.u32 %v2504, %v2500
      %v2506 = vrot.slane %v2505, 4
      %v2508 = vshll.u32 %v2467, 16
      %v2510 = vrot.slane %v2508, 5
      %v2511 = vsel %vm456, %v2506, %v2510
      %2512 = vrot.lane.b32.xlu0 %v2481, 48
      %v2513 = vpop.permute.xlu0 %2512
      %2514 = vrot.lane.b32.xlu0 %v2491, 48
      %v2515 = vpop.permute.xlu0 %2514
      %2516 = vrot.lane.b32.xlu0 %v2501, 48
      %v2517 = vpop.permute.xlu0 %2516
      %2518 = vrot.lane.b32.xlu0 %v2511, 48
      %v2519 = vpop.permute.xlu0 %2518
      %vm2524 = vcmask 519552
      %2525 = vst.msk [vmem:[#allocation4] sm:$0xf] %vm2524, %v2513
      %2526 = vst.msk [vmem:[#allocation4 + $0x14] sm:$0xf] %vm2524, %v2515
      %2527 = vst.msk [vmem:[#allocation4 + $0x28] sm:$0xf] %vm2524, %v2517
      %2528 = vst.msk [vmem:[#allocation4 + $0x3c] sm:$0xf] %vm2524, %v2519
      %v2529 = vld [vmem:[#allocation2 + $0xc] sm:$0x8]
      %v2530 = vld [vmem:[#allocation2 + $0x10] sm:$0xf]
      %v2531 = vld [vmem:[#allocation2 + $0x14] sm:$0xf]
      %v2532 = vld [vmem:[#allocation2 + $0x18] sm:$0xf]
      %v2533 = vld [vmem:[#allocation2 + $0x1c] sm:$0xf]
      %v2535 = vshrl.u32 %v2529, 16
      %v2537 = vrot.slane %v2535, 7
      %v2538 = vrot.slane %v2537, 4
      %v2540 = vshrl.u32 %v2530, 16
      %v2542 = vrot.slane %v2540, 7
      %v2543 = vshll.u32 %v2530, 16
      %v2545 = vor.u32 %v2542, %v2543
      %v2546 = vsel %vm366, %v2538, %v2545
      %v2547 = vrot.slane %v2542, 4
      %v2549 = vshrl.u32 %v2531, 16
      %v2551 = vrot.slane %v2549, 7
      %v2552 = vshll.u32 %v2531, 16
      %v2554 = vor.u32 %v2551, %v2552
      %v2555 = vsel %vm366, %v2547, %v2554
      %v2556 = vrot.slane %v2551, 4
      %v2558 = vshrl.u32 %v2532, 16
      %v2560 = vrot.slane %v2558, 7
      %v2561 = vshll.u32 %v2532, 16
      %v2563 = vor.u32 %v2560, %v2561
      %v2564 = vsel %vm366, %v2556, %v2563
      %v2565 = vrot.slane %v2560, 4
      %v2567 = vshrl.u32 %v2533, 16
      %v2569 = vrot.slane %v2567, 7
      %v2570 = vshll.u32 %v2533, 16
      %v2572 = vor.u32 %v2569, %v2570
      %v2573 = vsel %vm366, %v2565, %v2572
      %2574 = vrot.lane.b32.xlu0 %v2546, 64
      %v2575 = vpop.permute.xlu0 %2574
      %2576 = vrot.lane.b32.xlu0 %v2555, 64
      %v2577 = vpop.permute.xlu0 %2576
      %2578 = vrot.lane.b32.xlu0 %v2564, 64
      %v2579 = vpop.permute.xlu0 %2578
      %2580 = vrot.lane.b32.xlu0 %v2573, 64
      %v2581 = vpop.permute.xlu0 %2580
      %vm2586 = vcmask 650752
      %2587 = vst.msk [vmem:[#allocation4] sm:$0xf] %vm2586, %v2575
      %2588 = vst.msk [vmem:[#allocation4 + $0x14] sm:$0xf] %vm2586, %v2577
      %2589 = vst.msk [vmem:[#allocation4 + $0x28] sm:$0xf] %vm2586, %v2579
      %2590 = vst.msk [vmem:[#allocation4 + $0x3c] sm:$0xf] %vm2586, %v2581
      %v2591 = vld [vmem:[#allocation2 + $0x10] sm:$0xf]
      %v2592 = vld [vmem:[#allocation2 + $0x14] sm:$0xf]
      %v2593 = vld [vmem:[#allocation2 + $0x18] sm:$0xf]
      %v2594 = vld [vmem:[#allocation2 + $0x1c] sm:$0xf]
      %2599 = vrot.lane.b32.xlu0 %v2591, 80
      %v2600 = vpop.permute.xlu0 %2599
      %2601 = vrot.lane.b32.xlu0 %v2592, 80
      %v2602 = vpop.permute.xlu0 %2601
      %2603 = vrot.lane.b32.xlu0 %v2593, 80
      %v2604 = vpop.permute.xlu0 %2603
      %2605 = vrot.lane.b32.xlu0 %v2594, 80
      %v2606 = vpop.permute.xlu0 %2605
      %vm2611 = vcmask 781952
      %2612 = vst.msk [vmem:[#allocation4] sm:$0xf] %vm2611, %v2600
      %2613 = vst.msk [vmem:[#allocation4 + $0x14] sm:$0xf] %vm2611, %v2602
      %2614 = vst.msk [vmem:[#allocation4 + $0x28] sm:$0xf] %vm2611, %v2604
      %2615 = vst.msk [vmem:[#allocation4 + $0x3c] sm:$0xf] %vm2611, %v2606
      %v2616 = vld [vmem:[#allocation2 + $0x10] sm:$0xf]
      %v2617 = vld [vmem:[#allocation2 + $0x14] sm:$0xf]
      %v2618 = vld [vmem:[#allocation2 + $0x18] sm:$0xf]
      %v2619 = vld [vmem:[#allocation2 + $0x1c] sm:$0xf]
      %v2620 = vld [vmem:[#allocation2 + $0x20] sm:$0x1]
      %v2622 = vshrl.u32 %v2616, 16
      %v2624 = vrot.slane %v2622, 4
      %v2625 = vshll.u32 %v2616, 16
      %v2627 = vrot.slane %v2625, 5
      %v2628 = vor.u32 %v2624, %v2627
      %v2629 = vrot.slane %v2628, 4
      %v2631 = vshll.u32 %v2617, 16
      %v2633 = vrot.slane %v2631, 5
      %v2634 = vsel %vm456, %v2629, %v2633
      %v2635 = vshrl.u32 %v2617, 16
      %v2637 = vrot.slane %v2635, 4
      %v2638 = vor.u32 %v2637, %v2633
      %v2639 = vrot.slane %v2638, 4
      %v2641 = vshll.u32 %v2618, 16
      %v2643 = vrot.slane %v2641, 5
      %v2644 = vsel %vm456, %v2639, %v2643
      %v2645 = vshrl.u32 %v2618, 16
      %v2647 = vrot.slane %v2645, 4
      %v2648 = vor.u32 %v2647, %v2643
      %v2649 = vrot.slane %v2648, 4
      %v2651 = vshll.u32 %v2619, 16
      %v2653 = vrot.slane %v2651, 5
      %v2654 = vsel %vm456, %v2649, %v2653
      %v2655 = vshrl.u32 %v2619, 16
      %v2657 = vrot.slane %v2655, 4
      %v2658 = vor.u32 %v2657, %v2653
      %v2659 = vrot.slane %v2658, 4
      %v2661 = vshll.u32 %v2620, 16
      %v2663 = vrot.slane %v2661, 5
      %v2664 = vsel %vm456, %v2659, %v2663
      %2665 = vrot.lane.b32.xlu0 %v2634, 96
      %v2666 = vpop.permute.xlu0 %2665
      %2667 = vrot.lane.b32.xlu0 %v2644, 96
      %v2668 = vpop.permute.xlu0 %2667
      %2669 = vrot.lane.b32.xlu0 %v2654, 96
      %v2670 = vpop.permute.xlu0 %2669
      %2671 = vrot.lane.b32.xlu0 %v2664, 96
      %v2672 = vpop.permute.xlu0 %2671
      %vm2677 = vcmask 913152
      %2678 = vst.msk [vmem:[#allocation4] sm:$0xf] %vm2677, %v2666
      %2679 = vst.msk [vmem:[#allocation4 + $0x14] sm:$0xf] %vm2677, %v2668
      %2680 = vst.msk [vmem:[#allocation4 + $0x28] sm:$0xf] %vm2677, %v2670
      %2681 = vst.msk [vmem:[#allocation4 + $0x3c] sm:$0xf] %vm2677, %v2672
      %v2682 = vld [vmem:[#allocation2 + $0x10] sm:$0x8]
      %v2683 = vld [vmem:[#allocation2 + $0x14] sm:$0xf]
      %v2684 = vld [vmem:[#allocation2 + $0x18] sm:$0xf]
      %v2685 = vld [vmem:[#allocation2 + $0x1c] sm:$0xf]
      %v2686 = vld [vmem:[#allocation2 + $0x20] sm:$0xf]
      %v2688 = vshrl.u32 %v2682, 16
      %v2690 = vrot.slane %v2688, 7
      %v2691 = vrot.slane %v2690, 4
      %v2693 = vshrl.u32 %v2683, 16
      %v2695 = vrot.slane %v2693, 7
      %v2696 = vshll.u32 %v2683, 16
      %v2698 = vor.u32 %v2695, %v2696
      %v2699 = vsel %vm366, %v2691, %v2698
      %v2700 = vrot.slane %v2695, 4
      %v2702 = vshrl.u32 %v2684, 16
      %v2704 = vrot.slane %v2702, 7
      %v2705 = vshll.u32 %v2684, 16
      %v2707 = vor.u32 %v2704, %v2705
      %v2708 = vsel %vm366, %v2700, %v2707
      %v2709 = vrot.slane %v2704, 4
      %v2711 = vshrl.u32 %v2685, 16
      %v2713 = vrot.slane %v2711, 7
      %v2714 = vshll.u32 %v2685, 16
      %v2716 = vor.u32 %v2713, %v2714
      %v2717 = vsel %vm366, %v2709, %v2716
      %v2718 = vrot.slane %v2713, 4
      %v2720 = vshrl.u32 %v2686, 16
      %v2722 = vrot.slane %v2720, 7
      %v2723 = vshll.u32 %v2686, 16
      %v2725 = vor.u32 %v2722, %v2723
      %v2726 = vsel %vm366, %v2718, %v2725
      %2727 = vrot.lane.b32.xlu0 %v2699, 112
      %v2728 = vpop.permute.xlu0 %2727
      %2729 = vrot.lane.b32.xlu0 %v2708, 112
      %v2730 = vpop.permute.xlu0 %2729
      %2731 = vrot.lane.b32.xlu0 %v2717, 112
      %v2732 = vpop.permute.xlu0 %2731
      %2733 = vrot.lane.b32.xlu0 %v2726, 112
      %v2734 = vpop.permute.xlu0 %2733
      %vm2739 = vcmask 1044352
      %2740 = vst.msk [vmem:[#allocation4] sm:$0xf] %vm2739, %v2728
      %2741 = vst.msk [vmem:[#allocation4 + $0x14] sm:$0xf] %vm2739, %v2730
      %2742 = vst.msk [vmem:[#allocation4 + $0x28] sm:$0xf] %vm2739, %v2732
      %2743 = vst.msk [vmem:[#allocation4 + $0x3c] sm:$0xf] %vm2739, %v2734
      %v2744 = vld [vmem:[#allocation2 + $0x14] sm:$0xf]
      %v2745 = vld [vmem:[#allocation2 + $0x18] sm:$0xf]
      %v2746 = vld [vmem:[#allocation2 + $0x1c] sm:$0xf]
      %v2747 = vld [vmem:[#allocation2 + $0x20] sm:$0xf]
      %2748 = vst.msk [vmem:[#allocation4 + $0x4] sm:$0xf] %vm341, %v2744
      %2749 = vst.msk [vmem:[#allocation4 + $0x18] sm:$0xf] %vm341, %v2745
      %2750 = vst.msk [vmem:[#allocation4 + $0x2c] sm:$0xf] %vm341, %v2746
      %2751 = vst.msk [vmem:[#allocation4 + $0x40] sm:$0xf] %vm341, %v2747
      %v2752 = vld [vmem:[#allocation2 + $0x14] sm:$0xf]
      %v2753 = vld [vmem:[#allocation2 + $0x18] sm:$0xf]
      %v2754 = vld [vmem:[#allocation2 + $0x1c] sm:$0xf]
      %v2755 = vld [vmem:[#allocation2 + $0x20] sm:$0xf]
      %v2756 = vld [vmem:[#allocation2 + $0x24] sm:$0x1]
      %v2758 = vshrl.u32 %v2752, 16
      %v2760 = vrot.slane %v2758, 4
      %v2761 = vshll.u32 %v2752, 16
      %v2763 = vrot.slane %v2761, 5
      %v2764 = vor.u32 %v2760, %v2763
      %v2765 = vrot.slane %v2764, 4
      %v2767 = vshll.u32 %v2753, 16
      %v2769 = vrot.slane %v2767, 5
      %v2770 = vsel %vm456, %v2765, %v2769
      %v2771 = vshrl.u32 %v2753, 16
      %v2773 = vrot.slane %v2771, 4
      %v2774 = vor.u32 %v2773, %v2769
      %v2775 = vrot.slane %v2774, 4
      %v2777 = vshll.u32 %v2754, 16
      %v2779 = vrot.slane %v2777, 5
      %v2780 = vsel %vm456, %v2775, %v2779
      %v2781 = vshrl.u32 %v2754, 16
      %v2783 = vrot.slane %v2781, 4
      %v2784 = vor.u32 %v2783, %v2779
      %v2785 = vrot.slane %v2784, 4
      %v2787 = vshll.u32 %v2755, 16
      %v2789 = vrot.slane %v2787, 5
      %v2790 = vsel %vm456, %v2785, %v2789
      %v2791 = vshrl.u32 %v2755, 16
      %v2793 = vrot.slane %v2791, 4
      %v2794 = vor.u32 %v2793, %v2789
      %v2795 = vrot.slane %v2794, 4
      %v2797 = vshll.u32 %v2756, 16
      %v2799 = vrot.slane %v2797, 5
      %v2800 = vsel %vm456, %v2795, %v2799
      %2801 = vrot.lane.b32.xlu0 %v2770, 16
      %v2802 = vpop.permute.xlu0 %2801
      %2803 = vrot.lane.b32.xlu0 %v2780, 16
      %v2804 = vpop.permute.xlu0 %2803
      %2805 = vrot.lane.b32.xlu0 %v2790, 16
      %v2806 = vpop.permute.xlu0 %2805
      %2807 = vrot.lane.b32.xlu0 %v2800, 16
      %v2808 = vpop.permute.xlu0 %2807
      %2813 = vst.msk [vmem:[#allocation4 + $0x4] sm:$0xf] %vm2433, %v2802
      %2814 = vst.msk [vmem:[#allocation4 + $0x18] sm:$0xf] %vm2433, %v2804
      %2815 = vst.msk [vmem:[#allocation4 + $0x2c] sm:$0xf] %vm2433, %v2806
      %2816 = vst.msk [vmem:[#allocation4 + $0x40] sm:$0xf] %vm2433, %v2808
      %v2817 = vld [vmem:[#allocation2 + $0x4] sm:$0x8]
      %v2818 = vld [vmem:[#allocation2 + $0x8] sm:$0xf]
      %v2819 = vld [vmem:[#allocation2 + $0xc] sm:$0xf]
      %v2820 = vld [vmem:[#allocation2 + $0x10] sm:$0xf]
      %v2821 = vld [vmem:[#allocation2 + $0x14] sm:$0x7]
      %v2827 = vrot.slane %v2817, 7
      %v2828 = vrot.slane %v2827, 4
      %v2829 = vrot.slane %v2818, 7
      %v2830 = vsel %vm836, %v2828, %v2829
      %v2831 = vrot.slane %v2829, 4
      %v2832 = vrot.slane %v2819, 7
      %v2833 = vsel %vm836, %v2831, %v2832
      %v2834 = vrot.slane %v2832, 4
      %v2835 = vrot.slane %v2820, 7
      %v2836 = vsel %vm836, %v2834, %v2835
      %v2837 = vrot.slane %v2835, 4
      %v2838 = vrot.slane %v2821, 7
      %v2839 = vsel %vm836, %v2837, %v2838
      %2840 = vrot.lane.b32.xlu0 %v2830, 32
      %v2841 = vpop.permute.xlu0 %2840
      %2842 = vrot.lane.b32.xlu0 %v2833, 32
      %v2843 = vpop.permute.xlu0 %2842
      %2844 = vrot.lane.b32.xlu0 %v2836, 32
      %v2845 = vpop.permute.xlu0 %2844
      %2846 = vrot.lane.b32.xlu0 %v2839, 32
      %v2847 = vpop.permute.xlu0 %2846
      %2852 = vst.msk [vmem:[#allocation4 + $0x4] sm:$0xf] %vm2458, %v2841
      %2853 = vst.msk [vmem:[#allocation4 + $0x18] sm:$0xf] %vm2458, %v2843
      %2854 = vst.msk [vmem:[#allocation4 + $0x2c] sm:$0xf] %vm2458, %v2845
      %2855 = vst.msk [vmem:[#allocation4 + $0x40] sm:$0xf] %vm2458, %v2847
      %v2856 = vld [vmem:[#allocation2 + $0x4] sm:$0x8]
      %v2857 = vld [vmem:[#allocation2 + $0x8] sm:$0xf]
      %v2858 = vld [vmem:[#allocation2 + $0xc] sm:$0xf]
      %v2859 = vld [vmem:[#allocation2 + $0x10] sm:$0xf]
      %v2860 = vld [vmem:[#allocation2 + $0x14] sm:$0xf]
      %v2862 = vshrl.u32 %v2856, 16
      %v2864 = vrot.slane %v2862, 7
      %v2865 = vrot.slane %v2864, 4
      %v2867 = vshrl.u32 %v2857, 16
      %v2869 = vrot.slane %v2867, 7
      %v2870 = vshll.u32 %v2857, 16
      %v2872 = vor.u32 %v2869, %v2870
      %v2873 = vsel %vm366, %v2865, %v2872
      %v2874 = vrot.slane %v2869, 4
      %v2876 = vshrl.u32 %v2858, 16
      %v2878 = vrot.slane %v2876, 7
      %v2879 = vshll.u32 %v2858, 16
      %v2881 = vor.u32 %v2878, %v2879
      %v2882 = vsel %vm366, %v2874, %v2881
      %v2883 = vrot.slane %v2878, 4
      %v2885 = vshrl.u32 %v2859, 16
      %v2887 = vrot.slane %v2885, 7
      %v2888 = vshll.u32 %v2859, 16
      %v2890 = vor.u32 %v2887, %v2888
      %v2891 = vsel %vm366, %v2883, %v2890
      %v2892 = vrot.slane %v2887, 4
      %v2894 = vshrl.u32 %v2860, 16
      %v2896 = vrot.slane %v2894, 7
      %v2897 = vshll.u32 %v2860, 16
      %v2899 = vor.u32 %v2896, %v2897
      %v2900 = vsel %vm366, %v2892, %v2899
      %2901 = vrot.lane.b32.xlu0 %v2873, 48
      %v2902 = vpop.permute.xlu0 %2901
      %2903 = vrot.lane.b32.xlu0 %v2882, 48
      %v2904 = vpop.permute.xlu0 %2903
      %2905 = vrot.lane.b32.xlu0 %v2891, 48
      %v2906 = vpop.permute.xlu0 %2905
      %2907 = vrot.lane.b32.xlu0 %v2900, 48
      %v2908 = vpop.permute.xlu0 %2907
      %2913 = vst.msk [vmem:[#allocation4 + $0x4] sm:$0xf] %vm2524, %v2902
      %2914 = vst.msk [vmem:[#allocation4 + $0x18] sm:$0xf] %vm2524, %v2904
      %2915 = vst.msk [vmem:[#allocation4 + $0x2c] sm:$0xf] %vm2524, %v2906
      %2916 = vst.msk [vmem:[#allocation4 + $0x40] sm:$0xf] %vm2524, %v2908
      %v2917 = vld [vmem:[#allocation2 + $0x8] sm:$0xf]
      %v2918 = vld [vmem:[#allocation2 + $0xc] sm:$0xf]
      %v2919 = vld [vmem:[#allocation2 + $0x10] sm:$0xf]
      %v2920 = vld [vmem:[#allocation2 + $0x14] sm:$0xf]
      %2925 = vrot.lane.b32.xlu0 %v2917, 64
      %v2926 = vpop.permute.xlu0 %2925
      %2927 = vrot.lane.b32.xlu0 %v2918, 64
      %v2928 = vpop.permute.xlu0 %2927
      %2929 = vrot.lane.b32.xlu0 %v2919, 64
      %v2930 = vpop.permute.xlu0 %2929
      %2931 = vrot.lane.b32.xlu0 %v2920, 64
      %v2932 = vpop.permute.xlu0 %2931
      %2937 = vst.msk [vmem:[#allocation4 + $0x4] sm:$0xf] %vm2586, %v2926
      %2938 = vst.msk [vmem:[#allocation4 + $0x18] sm:$0xf] %vm2586, %v2928
      %2939 = vst.msk [vmem:[#allocation4 + $0x2c] sm:$0xf] %vm2586, %v2930
      %2940 = vst.msk [vmem:[#allocation4 + $0x40] sm:$0xf] %vm2586, %v2932
      %v2941 = vld [vmem:[#allocation2 + $0x8] sm:$0xf]
      %v2942 = vld [vmem:[#allocation2 + $0xc] sm:$0xf]
      %v2943 = vld [vmem:[#allocation2 + $0x10] sm:$0xf]
      %v2944 = vld [vmem:[#allocation2 + $0x14] sm:$0xf]
      %v2945 = vld [vmem:[#allocation2 + $0x18] sm:$0x1]
      %v2947 = vshrl.u32 %v2941, 16
      %v2949 = vrot.slane %v2947, 4
      %v2950 = vshll.u32 %v2941, 16
      %v2952 = vrot.slane %v2950, 5
      %v2953 = vor.u32 %v2949, %v2952
      %v2954 = vrot.slane %v2953, 4
      %v2956 = vshll.u32 %v2942, 16
      %v2958 = vrot.slane %v2956, 5
      %v2959 = vsel %vm456, %v2954, %v2958
      %v2960 = vshrl.u32 %v2942, 16
      %v2962 = vrot.slane %v2960, 4
      %v2963 = vor.u32 %v2962, %v2958
      %v2964 = vrot.slane %v2963, 4
      %v2966 = vshll.u32 %v2943, 16
      %v2968 = vrot.slane %v2966, 5
      %v2969 = vsel %vm456, %v2964, %v2968
      %v2970 = vshrl.u32 %v2943, 16
      %v2972 = vrot.slane %v2970, 4
      %v2973 = vor.u32 %v2972, %v2968
      %v2974 = vrot.slane %v2973, 4
      %v2976 = vshll.u32 %v2944, 16
      %v2978 = vrot.slane %v2976, 5
      %v2979 = vsel %vm456, %v2974, %v2978
      %v2980 = vshrl.u32 %v2944, 16
      %v2982 = vrot.slane %v2980, 4
      %v2983 = vor.u32 %v2982, %v2978
      %v2984 = vrot.slane %v2983, 4
      %v2986 = vshll.u32 %v2945, 16
      %v2988 = vrot.slane %v2986, 5
      %v2989 = vsel %vm456, %v2984, %v2988
      %2990 = vrot.lane.b32.xlu0 %v2959, 80
      %v2991 = vpop.permute.xlu0 %2990
      %2992 = vrot.lane.b32.xlu0 %v2969, 80
      %v2993 = vpop.permute.xlu0 %2992
      %2994 = vrot.lane.b32.xlu0 %v2979, 80
      %v2995 = vpop.permute.xlu0 %2994
      %2996 = vrot.lane.b32.xlu0 %v2989, 80
      %v2997 = vpop.permute.xlu0 %2996
      %3002 = vst.msk [vmem:[#allocation4 + $0x4] sm:$0xf] %vm2611, %v2991
      %3003 = vst.msk [vmem:[#allocation4 + $0x18] sm:$0xf] %vm2611, %v2993
      %3004 = vst.msk [vmem:[#allocation4 + $0x2c] sm:$0xf] %vm2611, %v2995
      %3005 = vst.msk [vmem:[#allocation4 + $0x40] sm:$0xf] %vm2611, %v2997
      %v3006 = vld [vmem:[#allocation2 + $0x8] sm:$0xe]
      %v3007 = vld [vmem:[#allocation2 + $0xc] sm:$0xf]
      %v3008 = vld [vmem:[#allocation2 + $0x10] sm:$0xf]
      %v3009 = vld [vmem:[#allocation2 + $0x14] sm:$0xf]
      %v3010 = vld [vmem:[#allocation2 + $0x18] sm:$0x1]
      %v3016 = vrot.slane %v3006, 5
      %v3017 = vrot.slane %v3016, 4
      %v3018 = vrot.slane %v3007, 5
      %v3019 = vsel %vm1032, %v3017, %v3018
      %v3020 = vrot.slane %v3018, 4
      %v3021 = vrot.slane %v3008, 5
      %v3022 = vsel %vm1032, %v3020, %v3021
      %v3023 = vrot.slane %v3021, 4
      %v3024 = vrot.slane %v3009, 5
      %v3025 = vsel %vm1032, %v3023, %v3024
      %v3026 = vrot.slane %v3024, 4
      %v3027 = vrot.slane %v3010, 5
      %v3028 = vsel %vm1032, %v3026, %v3027
      %3029 = vrot.lane.b32.xlu0 %v3019, 96
      %v3030 = vpop.permute.xlu0 %3029
      %3031 = vrot.lane.b32.xlu0 %v3022, 96
      %v3032 = vpop.permute.xlu0 %3031
      %3033 = vrot.lane.b32.xlu0 %v3025, 96
      %v3034 = vpop.permute.xlu0 %3033
      %3035 = vrot.lane.b32.xlu0 %v3028, 96
      %v3036 = vpop.permute.xlu0 %3035
      %3041 = vst.msk [vmem:[#allocation4 + $0x4] sm:$0xf] %vm2677, %v3030
      %3042 = vst.msk [vmem:[#allocation4 + $0x18] sm:$0xf] %vm2677, %v3032
      %3043 = vst.msk [vmem:[#allocation4 + $0x2c] sm:$0xf] %vm2677, %v3034
      %3044 = vst.msk [vmem:[#allocation4 + $0x40] sm:$0xf] %vm2677, %v3036
      %v3045 = vld [vmem:[#allocation2 + $0x8] sm:$0x8]
      %v3046 = vld [vmem:[#allocation2 + $0xc] sm:$0xf]
      %v3047 = vld [vmem:[#allocation2 + $0x10] sm:$0xf]
      %v3048 = vld [vmem:[#allocation2 + $0x14] sm:$0xf]
      %v3049 = vld [vmem:[#allocation2 + $0x18] sm:$0x7]
      %v3055 = vrot.slane %v3045, 7
      %v3056 = vrot.slane %v3055, 4
      %v3057 = vrot.slane %v3046, 7
      %v3058 = vsel %vm836, %v3056, %v3057
      %v3059 = vrot.slane %v3057, 4
      %v3060 = vrot.slane %v3047, 7
      %v3061 = vsel %vm836, %v3059, %v3060
      %v3062 = vrot.slane %v3060, 4
      %v3063 = vrot.slane %v3048, 7
      %v3064 = vsel %vm836, %v3062, %v3063
      %v3065 = vrot.slane %v3063, 4
      %v3066 = vrot.slane %v3049, 7
      %v3067 = vsel %vm836, %v3065, %v3066
      %3068 = vrot.lane.b32.xlu0 %v3058, 112
      %v3069 = vpop.permute.xlu0 %3068
      %3070 = vrot.lane.b32.xlu0 %v3061, 112
      %v3071 = vpop.permute.xlu0 %3070
      %3072 = vrot.lane.b32.xlu0 %v3064, 112
      %v3073 = vpop.permute.xlu0 %3072
      %3074 = vrot.lane.b32.xlu0 %v3067, 112
      %v3075 = vpop.permute.xlu0 %3074
      %3080 = vst.msk [vmem:[#allocation4 + $0x4] sm:$0xf] %vm2739, %v3069
      %3081 = vst.msk [vmem:[#allocation4 + $0x18] sm:$0xf] %vm2739, %v3071
      %3082 = vst.msk [vmem:[#allocation4 + $0x2c] sm:$0xf] %vm2739, %v3073
      %3083 = vst.msk [vmem:[#allocation4 + $0x40] sm:$0xf] %vm2739, %v3075
      %v3084 = vld [vmem:[#allocation2 + $0x8] sm:$0x8]
      %v3085 = vld [vmem:[#allocation2 + $0xc] sm:$0xf]
      %v3086 = vld [vmem:[#allocation2 + $0x10] sm:$0xf]
      %v3087 = vld [vmem:[#allocation2 + $0x14] sm:$0xf]
      %v3088 = vld [vmem:[#allocation2 + $0x18] sm:$0xf]
      %v3090 = vshrl.u32 %v3084, 16
      %v3092 = vrot.slane %v3090, 7
      %v3093 = vrot.slane %v3092, 4
      %v3095 = vshrl.u32 %v3085, 16
      %v3097 = vrot.slane %v3095, 7
      %v3098 = vshll.u32 %v3085, 16
      %v3100 = vor.u32 %v3097, %v3098
      %v3101 = vsel %vm366, %v3093, %v3100
      %v3102 = vrot.slane %v3097, 4
      %v3104 = vshrl.u32 %v3086, 16
      %v3106 = vrot.slane %v3104, 7
      %v3107 = vshll.u32 %v3086, 16
      %v3109 = vor.u32 %v3106, %v3107
      %v3110 = vsel %vm366, %v3102, %v3109
      %v3111 = vrot.slane %v3106, 4
      %v3113 = vshrl.u32 %v3087, 16
      %v3115 = vrot.slane %v3113, 7
      %v3116 = vshll.u32 %v3087, 16
      %v3118 = vor.u32 %v3115, %v3116
      %v3119 = vsel %vm366, %v3111, %v3118
      %v3120 = vrot.slane %v3115, 4
      %v3122 = vshrl.u32 %v3088, 16
      %v3124 = vrot.slane %v3122, 7
      %v3125 = vshll.u32 %v3088, 16
      %v3127 = vor.u32 %v3124, %v3125
      %v3128 = vsel %vm366, %v3120, %v3127
      %3133 = vst.msk [vmem:[#allocation4 + $0x8] sm:$0xf] %vm341, %v3101
      %3134 = vst.msk [vmem:[#allocation4 + $0x1c] sm:$0xf] %vm341, %v3110
      %3135 = vst.msk [vmem:[#allocation4 + $0x30] sm:$0xf] %vm341, %v3119
      %3136 = vst.msk [vmem:[#allocation4 + $0x44] sm:$0xf] %vm341, %v3128
      %v3137 = vld [vmem:[#allocation2 + $0xc] sm:$0xf]
      %v3138 = vld [vmem:[#allocation2 + $0x10] sm:$0xf]
      %v3139 = vld [vmem:[#allocation2 + $0x14] sm:$0xf]
      %v3140 = vld [vmem:[#allocation2 + $0x18] sm:$0xf]
      %3145 = vrot.lane.b32.xlu0 %v3137, 16
      %v3146 = vpop.permute.xlu0 %3145
      %3147 = vrot.lane.b32.xlu0 %v3138, 16
      %v3148 = vpop.permute.xlu0 %3147
      %3149 = vrot.lane.b32.xlu0 %v3139, 16
      %v3150 = vpop.permute.xlu0 %3149
      %3151 = vrot.lane.b32.xlu0 %v3140, 16
      %v3152 = vpop.permute.xlu0 %3151
      %3157 = vst.msk [vmem:[#allocation4 + $0x8] sm:$0xf] %vm2433, %v3146
      %3158 = vst.msk [vmem:[#allocation4 + $0x1c] sm:$0xf] %vm2433, %v3148
      %3159 = vst.msk [vmem:[#allocation4 + $0x30] sm:$0xf] %vm2433, %v3150
      %3160 = vst.msk [vmem:[#allocation4 + $0x44] sm:$0xf] %vm2433, %v3152
      %v3161 = vld [vmem:[#allocation2 + $0xc] sm:$0xf]
      %v3162 = vld [vmem:[#allocation2 + $0x10] sm:$0xf]
      %v3163 = vld [vmem:[#allocation2 + $0x14] sm:$0xf]
      %v3164 = vld [vmem:[#allocation2 + $0x18] sm:$0xf]
      %v3165 = vld [vmem:[#allocation2 + $0x1c] sm:$0x1]
      %v3167 = vshrl.u32 %v3161, 16
      %v3169 = vrot.slane %v3167, 4
      %v3170 = vshll.u32 %v3161, 16
      %v3172 = vrot.slane %v3170, 5
      %v3173 = vor.u32 %v3169, %v3172
      %v3174 = vrot.slane %v3173, 4
      %v3176 = vshll.u32 %v3162, 16
      %v3178 = vrot.slane %v3176, 5
      %v3179 = vsel %vm456, %v3174, %v3178
      %v3180 = vshrl.u32 %v3162, 16
      %v3182 = vrot.slane %v3180, 4
      %v3183 = vor.u32 %v3182, %v3178
      %v3184 = vrot.slane %v3183, 4
      %v3186 = vshll.u32 %v3163, 16
      %v3188 = vrot.slane %v3186, 5
      %v3189 = vsel %vm456, %v3184, %v3188
      %v3190 = vshrl.u32 %v3163, 16
      %v3192 = vrot.slane %v3190, 4
      %v3193 = vor.u32 %v3192, %v3188
      %v3194 = vrot.slane %v3193, 4
      %v3196 = vshll.u32 %v3164, 16
      %v3198 = vrot.slane %v3196, 5
      %v3199 = vsel %vm456, %v3194, %v3198
      %v3200 = vshrl.u32 %v3164, 16
      %v3202 = vrot.slane %v3200, 4
      %v3203 = vor.u32 %v3202, %v3198
      %v3204 = vrot.slane %v3203, 4
      %v3206 = vshll.u32 %v3165, 16
      %v3208 = vrot.slane %v3206, 5
      %v3209 = vsel %vm456, %v3204, %v3208
      %3210 = vrot.lane.b32.xlu0 %v3179, 32
      %v3211 = vpop.permute.xlu0 %3210
      %3212 = vrot.lane.b32.xlu0 %v3189, 32
      %v3213 = vpop.permute.xlu0 %3212
      %3214 = vrot.lane.b32.xlu0 %v3199, 32
      %v3215 = vpop.permute.xlu0 %3214
      %3216 = vrot.lane.b32.xlu0 %v3209, 32
      %v3217 = vpop.permute.xlu0 %3216
      %3222 = vst.msk [vmem:[#allocation4 + $0x8] sm:$0xf] %vm2458, %v3211
      %3223 = vst.msk [vmem:[#allocation4 + $0x1c] sm:$0xf] %vm2458, %v3213
      %3224 = vst.msk [vmem:[#allocation4 + $0x30] sm:$0xf] %vm2458, %v3215
      %3225 = vst.msk [vmem:[#allocation4 + $0x44] sm:$0xf] %vm2458, %v3217
      %v3226 = vld [vmem:[#allocation2 + $0xc] sm:$0xe]
      %v3227 = vld [vmem:[#allocation2 + $0x10] sm:$0xf]
      %v3228 = vld [vmem:[#allocation2 + $0x14] sm:$0xf]
      %v3229 = vld [vmem:[#allocation2 + $0x18] sm:$0xf]
      %v3230 = vld [vmem:[#allocation2 + $0x1c] sm:$0x1]
      %v3236 = vrot.slane %v3226, 5
      %v3237 = vrot.slane %v3236, 4
      %v3238 = vrot.slane %v3227, 5
      %v3239 = vsel %vm1032, %v3237, %v3238
      %v3240 = vrot.slane %v3238, 4
      %v3241 = vrot.slane %v3228, 5
      %v3242 = vsel %vm1032, %v3240, %v3241
      %v3243 = vrot.slane %v3241, 4
      %v3244 = vrot.slane %v3229, 5
      %v3245 = vsel %vm1032, %v3243, %v3244
      %v3246 = vrot.slane %v3244, 4
      %v3247 = vrot.slane %v3230, 5
      %v3248 = vsel %vm1032, %v3246, %v3247
      %3249 = vrot.lane.b32.xlu0 %v3239, 48
      %v3250 = vpop.permute.xlu0 %3249
      %3251 = vrot.lane.b32.xlu0 %v3242, 48
      %v3252 = vpop.permute.xlu0 %3251
      %3253 = vrot.lane.b32.xlu0 %v3245, 48
      %v3254 = vpop.permute.xlu0 %3253
      %3255 = vrot.lane.b32.xlu0 %v3248, 48
      %v3256 = vpop.permute.xlu0 %3255
      %3261 = vst.msk [vmem:[#allocation4 + $0x8] sm:$0xf] %vm2524, %v3250
      %3262 = vst.msk [vmem:[#allocation4 + $0x1c] sm:$0xf] %vm2524, %v3252
      %3263 = vst.msk [vmem:[#allocation4 + $0x30] sm:$0xf] %vm2524, %v3254
      %3264 = vst.msk [vmem:[#allocation4 + $0x44] sm:$0xf] %vm2524, %v3256
      %v3265 = vld [vmem:[#allocation2 + $0xc] sm:$0x8]
      %v3266 = vld [vmem:[#allocation2 + $0x10] sm:$0xf]
      %v3267 = vld [vmem:[#allocation2 + $0x14] sm:$0xf]
      %v3268 = vld [vmem:[#allocation2 + $0x18] sm:$0xf]
      %v3269 = vld [vmem:[#allocation2 + $0x1c] sm:$0x7]
      %v3275 = vrot.slane %v3265, 7
      %v3276 = vrot.slane %v3275, 4
      %v3277 = vrot.slane %v3266, 7
      %v3278 = vsel %vm836, %v3276, %v3277
      %v3279 = vrot.slane %v3277, 4
      %v3280 = vrot.slane %v3267, 7
      %v3281 = vsel %vm836, %v3279, %v3280
      %v3282 = vrot.slane %v3280, 4
      %v3283 = vrot.slane %v3268, 7
      %v3284 = vsel %vm836, %v3282, %v3283
      %v3285 = vrot.slane %v3283, 4
      %v3286 = vrot.slane %v3269, 7
      %v3287 = vsel %vm836, %v3285, %v3286
      %3288 = vrot.lane.b32.xlu0 %v3278, 64
      %v3289 = vpop.permute.xlu0 %3288
      %3290 = vrot.lane.b32.xlu0 %v3281, 64
      %v3291 = vpop.permute.xlu0 %3290
      %3292 = vrot.lane.b32.xlu0 %v3284, 64
      %v3293 = vpop.permute.xlu0 %3292
      %3294 = vrot.lane.b32.xlu0 %v3287, 64
      %v3295 = vpop.permute.xlu0 %3294
      %3300 = vst.msk [vmem:[#allocation4 + $0x8] sm:$0xf] %vm2586, %v3289
      %3301 = vst.msk [vmem:[#allocation4 + $0x1c] sm:$0xf] %vm2586, %v3291
      %3302 = vst.msk [vmem:[#allocation4 + $0x30] sm:$0xf] %vm2586, %v3293
      %3303 = vst.msk [vmem:[#allocation4 + $0x44] sm:$0xf] %vm2586, %v3295
      %v3304 = vld [vmem:[#allocation2 + $0xc] sm:$0x8]
      %v3305 = vld [vmem:[#allocation2 + $0x10] sm:$0xf]
      %v3306 = vld [vmem:[#allocation2 + $0x14] sm:$0xf]
      %v3307 = vld [vmem:[#allocation2 + $0x18] sm:$0xf]
      %v3308 = vld [vmem:[#allocation2 + $0x1c] sm:$0xf]
      %v3310 = vshrl.u32 %v3304, 16
      %v3312 = vrot.slane %v3310, 7
      %v3313 = vrot.slane %v3312, 4
      %v3315 = vshrl.u32 %v3305, 16
      %v3317 = vrot.slane %v3315, 7
      %v3318 = vshll.u32 %v3305, 16
      %v3320 = vor.u32 %v3317, %v3318
      %v3321 = vsel %vm366, %v3313, %v3320
      %v3322 = vrot.slane %v3317, 4
      %v3324 = vshrl.u32 %v3306, 16
      %v3326 = vrot.slane %v3324, 7
      %v3327 = vshll.u32 %v3306, 16
      %v3329 = vor.u32 %v3326, %v3327
      %v3330 = vsel %vm366, %v3322, %v3329
      %v3331 = vrot.slane %v3326, 4
      %v3333 = vshrl.u32 %v3307, 16
      %v3335 = vrot.slane %v3333, 7
      %v3336 = vshll.u32 %v3307, 16
      %v3338 = vor.u32 %v3335, %v3336
      %v3339 = vsel %vm366, %v3331, %v3338
      %v3340 = vrot.slane %v3335, 4
      %v3342 = vshrl.u32 %v3308, 16
      %v3344 = vrot.slane %v3342, 7
      %v3345 = vshll.u32 %v3308, 16
      %v3347 = vor.u32 %v3344, %v3345
      %v3348 = vsel %vm366, %v3340, %v3347
      %3349 = vrot.lane.b32.xlu0 %v3321, 80
      %v3350 = vpop.permute.xlu0 %3349
      %3351 = vrot.lane.b32.xlu0 %v3330, 80
      %v3352 = vpop.permute.xlu0 %3351
      %3353 = vrot.lane.b32.xlu0 %v3339, 80
      %v3354 = vpop.permute.xlu0 %3353
      %3355 = vrot.lane.b32.xlu0 %v3348, 80
      %v3356 = vpop.permute.xlu0 %3355
      %3361 = vst.msk [vmem:[#allocation4 + $0x8] sm:$0xf] %vm2611, %v3350
      %3362 = vst.msk [vmem:[#allocation4 + $0x1c] sm:$0xf] %vm2611, %v3352
      %3363 = vst.msk [vmem:[#allocation4 + $0x30] sm:$0xf] %vm2611, %v3354
      %3364 = vst.msk [vmem:[#allocation4 + $0x44] sm:$0xf] %vm2611, %v3356
      %v3365 = vld [vmem:[#allocation2 + $0x10] sm:$0xf]
      %v3366 = vld [vmem:[#allocation2 + $0x14] sm:$0xf]
      %v3367 = vld [vmem:[#allocation2 + $0x18] sm:$0xf]
      %v3368 = vld [vmem:[#allocation2 + $0x1c] sm:$0xf]
      %3373 = vrot.lane.b32.xlu0 %v3365, 96
      %v3374 = vpop.permute.xlu0 %3373
      %3375 = vrot.lane.b32.xlu0 %v3366, 96
      %v3376 = vpop.permute.xlu0 %3375
      %3377 = vrot.lane.b32.xlu0 %v3367, 96
      %v3378 = vpop.permute.xlu0 %3377
      %3379 = vrot.lane.b32.xlu0 %v3368, 96
      %v3380 = vpop.permute.xlu0 %3379
      %3385 = vst.msk [vmem:[#allocation4 + $0x8] sm:$0xf] %vm2677, %v3374
      %3386 = vst.msk [vmem:[#allocation4 + $0x1c] sm:$0xf] %vm2677, %v3376
      %3387 = vst.msk [vmem:[#allocation4 + $0x30] sm:$0xf] %vm2677, %v3378
      %3388 = vst.msk [vmem:[#allocation4 + $0x44] sm:$0xf] %vm2677, %v3380
      %v3389 = vld [vmem:[#allocation2 + $0x10] sm:$0xf]
      %v3390 = vld [vmem:[#allocation2 + $0x14] sm:$0xf]
      %v3391 = vld [vmem:[#allocation2 + $0x18] sm:$0xf]
      %v3392 = vld [vmem:[#allocation2 + $0x1c] sm:$0xf]
      %v3393 = vld [vmem:[#allocation2 + $0x20] sm:$0x1]
      %v3395 = vshrl.u32 %v3389, 16
      %v3397 = vrot.slane %v3395, 4
      %v3398 = vshll.u32 %v3389, 16
      %v3400 = vrot.slane %v3398, 5
      %v3401 = vor.u32 %v3397, %v3400
      %v3402 = vrot.slane %v3401, 4
      %v3404 = vshll.u32 %v3390, 16
      %v3406 = vrot.slane %v3404, 5
      %v3407 = vsel %vm456, %v3402, %v3406
      %v3408 = vshrl.u32 %v3390, 16
      %v3410 = vrot.slane %v3408, 4
      %v3411 = vor.u32 %v3410, %v3406
      %v3412 = vrot.slane %v3411, 4
      %v3414 = vshll.u32 %v3391, 16
      %v3416 = vrot.slane %v3414, 5
      %v3417 = vsel %vm456, %v3412, %v3416
      %v3418 = vshrl.u32 %v3391, 16
      %v3420 = vrot.slane %v3418, 4
      %v3421 = vor.u32 %v3420, %v3416
      %v3422 = vrot.slane %v3421, 4
      %v3424 = vshll.u32 %v3392, 16
      %v3426 = vrot.slane %v3424, 5
      %v3427 = vsel %vm456, %v3422, %v3426
      %v3428 = vshrl.u32 %v3392, 16
      %v3430 = vrot.slane %v3428, 4
      %v3431 = vor.u32 %v3430, %v3426
      %v3432 = vrot.slane %v3431, 4
      %v3434 = vshll.u32 %v3393, 16
      %v3436 = vrot.slane %v3434, 5
      %v3437 = vsel %vm456, %v3432, %v3436
      %3438 = vrot.lane.b32.xlu0 %v3407, 112
      %v3439 = vpop.permute.xlu0 %3438
      %3440 = vrot.lane.b32.xlu0 %v3417, 112
      %v3441 = vpop.permute.xlu0 %3440
      %3442 = vrot.lane.b32.xlu0 %v3427, 112
      %v3443 = vpop.permute.xlu0 %3442
      %3444 = vrot.lane.b32.xlu0 %v3437, 112
      %v3445 = vpop.permute.xlu0 %3444
      %3450 = vst.msk [vmem:[#allocation4 + $0x8] sm:$0xf] %vm2739, %v3439
      %3451 = vst.msk [vmem:[#allocation4 + $0x1c] sm:$0xf] %vm2739, %v3441
      %3452 = vst.msk [vmem:[#allocation4 + $0x30] sm:$0xf] %vm2739, %v3443
      %3453 = vst.msk [vmem:[#allocation4 + $0x44] sm:$0xf] %vm2739, %v3445
      %v3454 = vld [vmem:[#allocation2 + $0x10] sm:$0xe]
      %v3455 = vld [vmem:[#allocation2 + $0x14] sm:$0xf]
      %v3456 = vld [vmem:[#allocation2 + $0x18] sm:$0xf]
      %v3457 = vld [vmem:[#allocation2 + $0x1c] sm:$0xf]
      %v3458 = vld [vmem:[#allocation2 + $0x20] sm:$0x1]
      %v3464 = vrot.slane %v3454, 5
      %v3465 = vrot.slane %v3464, 4
      %v3466 = vrot.slane %v3455, 5
      %v3467 = vsel %vm1032, %v3465, %v3466
      %v3468 = vrot.slane %v3466, 4
      %v3469 = vrot.slane %v3456, 5
      %v3470 = vsel %vm1032, %v3468, %v3469
      %v3471 = vrot.slane %v3469, 4
      %v3472 = vrot.slane %v3457, 5
      %v3473 = vsel %vm1032, %v3471, %v3472
      %v3474 = vrot.slane %v3472, 4
      %v3475 = vrot.slane %v3458, 5
      %v3476 = vsel %vm1032, %v3474, %v3475
      %3481 = vst.msk [vmem:[#allocation4 + $0xc] sm:$0xf] %vm341, %v3467
      %3482 = vst.msk [vmem:[#allocation4 + $0x20] sm:$0xf] %vm341, %v3470
      %3483 = vst.msk [vmem:[#allocation4 + $0x34] sm:$0xf] %vm341, %v3473
      %3484 = vst.msk [vmem:[#allocation4 + $0x48] sm:$0xf] %vm341, %v3476
      %v3485 = vld [vmem:[#allocation2 + $0x10] sm:$0x8]
      %v3486 = vld [vmem:[#allocation2 + $0x14] sm:$0xf]
      %v3487 = vld [vmem:[#allocation2 + $0x18] sm:$0xf]
      %v3488 = vld [vmem:[#allocation2 + $0x1c] sm:$0xf]
      %v3489 = vld [vmem:[#allocation2 + $0x20] sm:$0x7]
      %v3495 = vrot.slane %v3485, 7
      %v3496 = vrot.slane %v3495, 4
      %v3497 = vrot.slane %v3486, 7
      %v3498 = vsel %vm836, %v3496, %v3497
      %v3499 = vrot.slane %v3497, 4
      %v3500 = vrot.slane %v3487, 7
      %v3501 = vsel %vm836, %v3499, %v3500
      %v3502 = vrot.slane %v3500, 4
      %v3503 = vrot.slane %v3488, 7
      %v3504 = vsel %vm836, %v3502, %v3503
      %v3505 = vrot.slane %v3503, 4
      %v3506 = vrot.slane %v3489, 7
      %v3507 = vsel %vm836, %v3505, %v3506
      %3508 = vrot.lane.b32.xlu0 %v3498, 16
      %v3509 = vpop.permute.xlu0 %3508
      %3510 = vrot.lane.b32.xlu0 %v3501, 16
      %v3511 = vpop.permute.xlu0 %3510
      %3512 = vrot.lane.b32.xlu0 %v3504, 16
      %v3513 = vpop.permute.xlu0 %3512
      %3514 = vrot.lane.b32.xlu0 %v3507, 16
      %v3515 = vpop.permute.xlu0 %3514
      %3520 = vst.msk [vmem:[#allocation4 + $0xc] sm:$0xf] %vm2433, %v3509
      %3521 = vst.msk [vmem:[#allocation4 + $0x20] sm:$0xf] %vm2433, %v3511
      %3522 = vst.msk [vmem:[#allocation4 + $0x34] sm:$0xf] %vm2433, %v3513
      %3523 = vst.msk [vmem:[#allocation4 + $0x48] sm:$0xf] %vm2433, %v3515
      %v3524 = vld [vmem:[#allocation2 + $0x10] sm:$0x8]
      %v3525 = vld [vmem:[#allocation2 + $0x14] sm:$0xf]
      %v3526 = vld [vmem:[#allocation2 + $0x18] sm:$0xf]
      %v3527 = vld [vmem:[#allocation2 + $0x1c] sm:$0xf]
      %v3528 = vld [vmem:[#allocation2 + $0x20] sm:$0xf]
      %v3530 = vshrl.u32 %v3524, 16
      %v3532 = vrot.slane %v3530, 7
      %v3533 = vrot.slane %v3532, 4
      %v3535 = vshrl.u32 %v3525, 16
      %v3537 = vrot.slane %v3535, 7
      %v3538 = vshll.u32 %v3525, 16
      %v3540 = vor.u32 %v3537, %v3538
      %v3541 = vsel %vm366, %v3533, %v3540
      %v3542 = vrot.slane %v3537, 4
      %v3544 = vshrl.u32 %v3526, 16
      %v3546 = vrot.slane %v3544, 7
      %v3547 = vshll.u32 %v3526, 16
      %v3549 = vor.u32 %v3546, %v3547
      %v3550 = vsel %vm366, %v3542, %v3549
      %v3551 = vrot.slane %v3546, 4
      %v3553 = vshrl.u32 %v3527, 16
      %v3555 = vrot.slane %v3553, 7
      %v3556 = vshll.u32 %v3527, 16
      %v3558 = vor.u32 %v3555, %v3556
      %v3559 = vsel %vm366, %v3551, %v3558
      %v3560 = vrot.slane %v3555, 4
      %v3562 = vshrl.u32 %v3528, 16
      %v3564 = vrot.slane %v3562, 7
      %v3565 = vshll.u32 %v3528, 16
      %v3567 = vor.u32 %v3564, %v3565
      %v3568 = vsel %vm366, %v3560, %v3567
      %3569 = vrot.lane.b32.xlu0 %v3541, 32
      %v3570 = vpop.permute.xlu0 %3569
      %3571 = vrot.lane.b32.xlu0 %v3550, 32
      %v3572 = vpop.permute.xlu0 %3571
      %3573 = vrot.lane.b32.xlu0 %v3559, 32
      %v3574 = vpop.permute.xlu0 %3573
      %3575 = vrot.lane.b32.xlu0 %v3568, 32
      %v3576 = vpop.permute.xlu0 %3575
      %3581 = vst.msk [vmem:[#allocation4 + $0xc] sm:$0xf] %vm2458, %v3570
      %3582 = vst.msk [vmem:[#allocation4 + $0x20] sm:$0xf] %vm2458, %v3572
      %3583 = vst.msk [vmem:[#allocation4 + $0x34] sm:$0xf] %vm2458, %v3574
      %3584 = vst.msk [vmem:[#allocation4 + $0x48] sm:$0xf] %vm2458, %v3576
      %v3585 = vld [vmem:[#allocation2 + $0x14] sm:$0xf]
      %v3586 = vld [vmem:[#allocation2 + $0x18] sm:$0xf]
      %v3587 = vld [vmem:[#allocation2 + $0x1c] sm:$0xf]
      %v3588 = vld [vmem:[#allocation2 + $0x20] sm:$0xf]
      %3593 = vrot.lane.b32.xlu0 %v3585, 48
      %v3594 = vpop.permute.xlu0 %3593
      %3595 = vrot.lane.b32.xlu0 %v3586, 48
      %v3596 = vpop.permute.xlu0 %3595
      %3597 = vrot.lane.b32.xlu0 %v3587, 48
      %v3598 = vpop.permute.xlu0 %3597
      %3599 = vrot.lane.b32.xlu0 %v3588, 48
      %v3600 = vpop.permute.xlu0 %3599
      %3605 = vst.msk [vmem:[#allocation4 + $0xc] sm:$0xf] %vm2524, %v3594
      %3606 = vst.msk [vmem:[#allocation4 + $0x20] sm:$0xf] %vm2524, %v3596
      %3607 = vst.msk [vmem:[#allocation4 + $0x34] sm:$0xf] %vm2524, %v3598
      %3608 = vst.msk [vmem:[#allocation4 + $0x48] sm:$0xf] %vm2524, %v3600
      %v3609 = vld [vmem:[#allocation2 + $0x14] sm:$0xf]
      %v3610 = vld [vmem:[#allocation2 + $0x18] sm:$0xf]
      %v3611 = vld [vmem:[#allocation2 + $0x1c] sm:$0xf]
      %v3612 = vld [vmem:[#allocation2 + $0x20] sm:$0xf]
      %v3613 = vld [vmem:[#allocation2 + $0x24] sm:$0x1]
      %v3615 = vshrl.u32 %v3609, 16
      %v3617 = vrot.slane %v3615, 4
      %v3618 = vshll.u32 %v3609, 16
      %v3620 = vrot.slane %v3618, 5
      %v3621 = vor.u32 %v3617, %v3620
      %v3622 = vrot.slane %v3621, 4
      %v3624 = vshll.u32 %v3610, 16
      %v3626 = vrot.slane %v3624, 5
      %v3627 = vsel %vm456, %v3622, %v3626
      %v3628 = vshrl.u32 %v3610, 16
      %v3630 = vrot.slane %v3628, 4
      %v3631 = vor.u32 %v3630, %v3626
      %v3632 = vrot.slane %v3631, 4
      %v3634 = vshll.u32 %v3611, 16
      %v3636 = vrot.slane %v3634, 5
      %v3637 = vsel %vm456, %v3632, %v3636
      %v3638 = vshrl.u32 %v3611, 16
      %v3640 = vrot.slane %v3638, 4
      %v3641 = vor.u32 %v3640, %v3636
      %v3642 = vrot.slane %v3641, 4
      %v3644 = vshll.u32 %v3612, 16
      %v3646 = vrot.slane %v3644, 5
      %v3647 = vsel %vm456, %v3642, %v3646
      %v3648 = vshrl.u32 %v3612, 16
      %v3650 = vrot.slane %v3648, 4
      %v3651 = vor.u32 %v3650, %v3646
      %v3652 = vrot.slane %v3651, 4
      %v3654 = vshll.u32 %v3613, 16
      %v3656 = vrot.slane %v3654, 5
      %v3657 = vsel %vm456, %v3652, %v3656
      %3658 = vrot.lane.b32.xlu0 %v3627, 64
      %v3659 = vpop.permute.xlu0 %3658
      %3660 = vrot.lane.b32.xlu0 %v3637, 64
      %v3661 = vpop.permute.xlu0 %3660
      %3662 = vrot.lane.b32.xlu0 %v3647, 64
      %v3663 = vpop.permute.xlu0 %3662
      %3664 = vrot.lane.b32.xlu0 %v3657, 64
      %v3665 = vpop.permute.xlu0 %3664
      %3670 = vst.msk [vmem:[#allocation4 + $0xc] sm:$0xf] %vm2586, %v3659
      %3671 = vst.msk [vmem:[#allocation4 + $0x20] sm:$0xf] %vm2586, %v3661
      %3672 = vst.msk [vmem:[#allocation4 + $0x34] sm:$0xf] %vm2586, %v3663
      %3673 = vst.msk [vmem:[#allocation4 + $0x48] sm:$0xf] %vm2586, %v3665
      %v3674 = vld [vmem:[#allocation2 + $0x14] sm:$0xe]
      %v3675 = vld [vmem:[#allocation2 + $0x18] sm:$0xf]
      %v3676 = vld [vmem:[#allocation2 + $0x1c] sm:$0xf]
      %v3677 = vld [vmem:[#allocation2 + $0x20] sm:$0xf]
      %v3678 = vld [vmem:[#allocation2 + $0x24] sm:$0x1]
      %v3684 = vrot.slane %v3674, 5
      %v3685 = vrot.slane %v3684, 4
      %v3686 = vrot.slane %v3675, 5
      %v3687 = vsel %vm1032, %v3685, %v3686
      %v3688 = vrot.slane %v3686, 4
      %v3689 = vrot.slane %v3676, 5
      %v3690 = vsel %vm1032, %v3688, %v3689
      %v3691 = vrot.slane %v3689, 4
      %v3692 = vrot.slane %v3677, 5
      %v3693 = vsel %vm1032, %v3691, %v3692
      %v3694 = vrot.slane %v3692, 4
      %v3695 = vrot.slane %v3678, 5
      %v3696 = vsel %vm1032, %v3694, %v3695
      %3697 = vrot.lane.b32.xlu0 %v3687, 80
      %v3698 = vpop.permute.xlu0 %3697
      %3699 = vrot.lane.b32.xlu0 %v3690, 80
      %v3700 = vpop.permute.xlu0 %3699
      %3701 = vrot.lane.b32.xlu0 %v3693, 80
      %v3702 = vpop.permute.xlu0 %3701
      %3703 = vrot.lane.b32.xlu0 %v3696, 80
      %v3704 = vpop.permute.xlu0 %3703
      %3709 = vst.msk [vmem:[#allocation4 + $0xc] sm:$0xf] %vm2611, %v3698
      %3710 = vst.msk [vmem:[#allocation4 + $0x20] sm:$0xf] %vm2611, %v3700
      %3711 = vst.msk [vmem:[#allocation4 + $0x34] sm:$0xf] %vm2611, %v3702
      %3712 = vst.msk [vmem:[#allocation4 + $0x48] sm:$0xf] %vm2611, %v3704
      %v3713 = vld [vmem:[#allocation2 + $0x14] sm:$0x8]
      %v3714 = vld [vmem:[#allocation2 + $0x18] sm:$0xf]
      %v3715 = vld [vmem:[#allocation2 + $0x1c] sm:$0xf]
      %v3716 = vld [vmem:[#allocation2 + $0x20] sm:$0xf]
      %v3717 = vld [vmem:[#allocation2 + $0x24] sm:$0x7]
      %v3723 = vrot.slane %v3713, 7
      %v3724 = vrot.slane %v3723, 4
      %v3725 = vrot.slane %v3714, 7
      %v3726 = vsel %vm836, %v3724, %v3725
      %v3727 = vrot.slane %v3725, 4
      %v3728 = vrot.slane %v3715, 7
      %v3729 = vsel %vm836, %v3727, %v3728
      %v3730 = vrot.slane %v3728, 4
      %v3731 = vrot.slane %v3716, 7
      %v3732 = vsel %vm836, %v3730, %v3731
      %v3733 = vrot.slane %v3731, 4
      %v3734 = vrot.slane %v3717, 7
      %v3735 = vsel %vm836, %v3733, %v3734
      %3736 = vrot.lane.b32.xlu0 %v3726, 96
      %v3737 = vpop.permute.xlu0 %3736
      %3738 = vrot.lane.b32.xlu0 %v3729, 96
      %v3739 = vpop.permute.xlu0 %3738
      %3740 = vrot.lane.b32.xlu0 %v3732, 96
      %v3741 = vpop.permute.xlu0 %3740
      %3742 = vrot.lane.b32.xlu0 %v3735, 96
      %v3743 = vpop.permute.xlu0 %3742
      %3748 = vst.msk [vmem:[#allocation4 + $0xc] sm:$0xf] %vm2677, %v3737
      %3749 = vst.msk [vmem:[#allocation4 + $0x20] sm:$0xf] %vm2677, %v3739
      %3750 = vst.msk [vmem:[#allocation4 + $0x34] sm:$0xf] %vm2677, %v3741
      %3751 = vst.msk [vmem:[#allocation4 + $0x48] sm:$0xf] %vm2677, %v3743
      %v3752 = vld [vmem:[#allocation2 + $0x14] sm:$0x8]
      %v3753 = vld [vmem:[#allocation2 + $0x18] sm:$0xf]
      %v3754 = vld [vmem:[#allocation2 + $0x1c] sm:$0xf]
      %v3755 = vld [vmem:[#allocation2 + $0x20] sm:$0xf]
      %v3756 = vld [vmem:[#allocation2 + $0x24] sm:$0xf]
      %v3758 = vshrl.u32 %v3752, 16
      %v3760 = vrot.slane %v3758, 7
      %v3761 = vrot.slane %v3760, 4
      %v3763 = vshrl.u32 %v3753, 16
      %v3765 = vrot.slane %v3763, 7
      %v3766 = vshll.u32 %v3753, 16
      %v3768 = vor.u32 %v3765, %v3766
      %v3769 = vsel %vm366, %v3761, %v3768
      %v3770 = vrot.slane %v3765, 4
      %v3772 = vshrl.u32 %v3754, 16
      %v3774 = vrot.slane %v3772, 7
      %v3775 = vshll.u32 %v3754, 16
      %v3777 = vor.u32 %v3774, %v3775
      %v3778 = vsel %vm366, %v3770, %v3777
      %v3779 = vrot.slane %v3774, 4
      %v3781 = vshrl.u32 %v3755, 16
      %v3783 = vrot.slane %v3781, 7
      %v3784 = vshll.u32 %v3755, 16
      %v3786 = vor.u32 %v3783, %v3784
      %v3787 = vsel %vm366, %v3779, %v3786
      %v3788 = vrot.slane %v3783, 4
      %v3790 = vshrl.u32 %v3756, 16
      %v3792 = vrot.slane %v3790, 7
      %v3793 = vshll.u32 %v3756, 16
      %v3795 = vor.u32 %v3792, %v3793
      %v3796 = vsel %vm366, %v3788, %v3795
      %3797 = vrot.lane.b32.xlu0 %v3769, 112
      %v3798 = vpop.permute.xlu0 %3797
      %3799 = vrot.lane.b32.xlu0 %v3778, 112
      %v3800 = vpop.permute.xlu0 %3799
      %3801 = vrot.lane.b32.xlu0 %v3787, 112
      %v3802 = vpop.permute.xlu0 %3801
      %3803 = vrot.lane.b32.xlu0 %v3796, 112
      %v3804 = vpop.permute.xlu0 %3803
      %3809 = vst.msk [vmem:[#allocation4 + $0xc] sm:$0xf] %vm2739, %v3798
      %3810 = vst.msk [vmem:[#allocation4 + $0x20] sm:$0xf] %vm2739, %v3800
      %3811 = vst.msk [vmem:[#allocation4 + $0x34] sm:$0xf] %vm2739, %v3802
      %3812 = vst.msk [vmem:[#allocation4 + $0x48] sm:$0xf] %vm2739, %v3804
      %v3813 = vld [vmem:[#allocation2 + $0x18] sm:$0xf]
      %v3814 = vld [vmem:[#allocation2 + $0x1c] sm:$0xf]
      %v3815 = vld [vmem:[#allocation2 + $0x20] sm:$0xf]
      %v3816 = vld [vmem:[#allocation2 + $0x24] sm:$0xf]
      %3817 = vst.msk [vmem:[#allocation4 + $0x10] sm:$0xf] %vm341, %v3813
      %3818 = vst.msk [vmem:[#allocation4 + $0x24] sm:$0xf] %vm341, %v3814
      %3819 = vst.msk [vmem:[#allocation4 + $0x38] sm:$0xf] %vm341, %v3815
      %3820 = vst.msk [vmem:[#allocation4 + $0x4c] sm:$0xf] %vm341, %v3816
      %v3821 = vld [vmem:[#allocation2 + $0x18] sm:$0xf]
      %v3822 = vld [vmem:[#allocation2 + $0x1c] sm:$0xf]
      %v3823 = vld [vmem:[#allocation2 + $0x20] sm:$0xf]
      %v3824 = vld [vmem:[#allocation2 + $0x24] sm:$0xf]
      %v3825 = vld [vmem:[#allocation2 + $0x28] sm:$0x1]
      %v3827 = vshrl.u32 %v3821, 16
      %v3829 = vrot.slane %v3827, 4
      %v3830 = vshll.u32 %v3821, 16
      %v3832 = vrot.slane %v3830, 5
      %v3833 = vor.u32 %v3829, %v3832
      %v3834 = vrot.slane %v3833, 4
      %v3836 = vshll.u32 %v3822, 16
      %v3838 = vrot.slane %v3836, 5
      %v3839 = vsel %vm456, %v3834, %v3838
      %v3840 = vshrl.u32 %v3822, 16
      %v3842 = vrot.slane %v3840, 4
      %v3843 = vor.u32 %v3842, %v3838
      %v3844 = vrot.slane %v3843, 4
      %v3846 = vshll.u32 %v3823, 16
      %v3848 = vrot.slane %v3846, 5
      %v3849 = vsel %vm456, %v3844, %v3848
      %v3850 = vshrl.u32 %v3823, 16
      %v3852 = vrot.slane %v3850, 4
      %v3853 = vor.u32 %v3852, %v3848
      %v3854 = vrot.slane %v3853, 4
      %v3856 = vshll.u32 %v3824, 16
      %v3858 = vrot.slane %v3856, 5
      %v3859 = vsel %vm456, %v3854, %v3858
      %v3860 = vshrl.u32 %v3824, 16
      %v3862 = vrot.slane %v3860, 4
      %v3863 = vor.u32 %v3862, %v3858
      %v3864 = vrot.slane %v3863, 4
      %v3866 = vshll.u32 %v3825, 16
      %v3868 = vrot.slane %v3866, 5
      %v3869 = vsel %vm456, %v3864, %v3868
      %3870 = vrot.lane.b32.xlu0 %v3839, 16
      %v3871 = vpop.permute.xlu0 %3870
      %3872 = vrot.lane.b32.xlu0 %v3849, 16
      %v3873 = vpop.permute.xlu0 %3872
      %3874 = vrot.lane.b32.xlu0 %v3859, 16
      %v3875 = vpop.permute.xlu0 %3874
      %3876 = vrot.lane.b32.xlu0 %v3869, 16
      %v3877 = vpop.permute.xlu0 %3876
      %3882 = vst.msk [vmem:[#allocation4 + $0x10] sm:$0xf] %vm2433, %v3871
      %3883 = vst.msk [vmem:[#allocation4 + $0x24] sm:$0xf] %vm2433, %v3873
      %3884 = vst.msk [vmem:[#allocation4 + $0x38] sm:$0xf] %vm2433, %v3875
      %3885 = vst.msk [vmem:[#allocation4 + $0x4c] sm:$0xf] %vm2433, %v3877
      %v3886 = vld [vmem:[#allocation2 + $0x18] sm:$0xe]
      %v3887 = vld [vmem:[#allocation2 + $0x1c] sm:$0xf]
      %v3888 = vld [vmem:[#allocation2 + $0x20] sm:$0xf]
      %v3889 = vld [vmem:[#allocation2 + $0x24] sm:$0xf]
      %v3890 = vld [vmem:[#allocation2 + $0x28] sm:$0x1]
      %v3896 = vrot.slane %v3886, 5
      %v3897 = vrot.slane %v3896, 4
      %v3898 = vrot.slane %v3887, 5
      %v3899 = vsel %vm1032, %v3897, %v3898
      %v3900 = vrot.slane %v3898, 4
      %v3901 = vrot.slane %v3888, 5
      %v3902 = vsel %vm1032, %v3900, %v3901
      %v3903 = vrot.slane %v3901, 4
      %v3904 = vrot.slane %v3889, 5
      %v3905 = vsel %vm1032, %v3903, %v3904
      %v3906 = vrot.slane %v3904, 4
      %v3907 = vrot.slane %v3890, 5
      %v3908 = vsel %vm1032, %v3906, %v3907
      %3909 = vrot.lane.b32.xlu0 %v3899, 32
      %v3910 = vpop.permute.xlu0 %3909
      %3911 = vrot.lane.b32.xlu0 %v3902, 32
      %v3912 = vpop.permute.xlu0 %3911
      %3913 = vrot.lane.b32.xlu0 %v3905, 32
      %v3914 = vpop.permute.xlu0 %3913
      %3915 = vrot.lane.b32.xlu0 %v3908, 32
      %v3916 = vpop.permute.xlu0 %3915
      %3921 = vst.msk [vmem:[#allocation4 + $0x10] sm:$0xf] %vm2458, %v3910
      %3922 = vst.msk [vmem:[#allocation4 + $0x24] sm:$0xf] %vm2458, %v3912
      %3923 = vst.msk [vmem:[#allocation4 + $0x38] sm:$0xf] %vm2458, %v3914
      %3924 = vst.msk [vmem:[#allocation4 + $0x4c] sm:$0xf] %vm2458, %v3916
      %v3925 = vld [vmem:[#allocation4] sm:$0xff]
      %v3926 = vld [vmem:[#allocation4 + $0x8] sm:$0xff]
      %v3927 = vld [vmem:[#allocation4 + $0x10] sm:$0xf]
      %v3928 = vld [vmem:[#allocation4 + $0x14] sm:$0xff]
      %v3929 = vld [vmem:[#allocation4 + $0x1c] sm:$0xff]
      %v3930 = vld [vmem:[#allocation4 + $0x24] sm:$0xf]
      %v3931 = vld [vmem:[#allocation4 + $0x28] sm:$0xff]
      %v3932 = vld [vmem:[#allocation4 + $0x30] sm:$0xff]
      %v3933 = vld [vmem:[#allocation4 + $0x38] sm:$0xf]
      %v3934 = vld [vmem:[#allocation4 + $0x3c] sm:$0xff]
      %v3935 = vld [vmem:[#allocation4 + $0x44] sm:$0xff]
      %v3936 = vld [vmem:[#allocation4 + $0x4c] sm:$0xf]
      %v3937 = vld [vmem:[%s3] sm:$0xf]
      %v3938 = vld [vmem:[%s3 + $0x4] sm:$0xf]
      %v3939 = vld [vmem:[%s3 + $0x8] sm:$0xf]
      %v3940 = vld [vmem:[%s3 + $0xc] sm:$0xf]
      %v3941 = vld [vmem:[%s3 + $0x10] sm:$0xf]
      %v3942 = vld [vmem:[%s3 + $0x14] sm:$0xf]
      %v3943 = vld [vmem:[%s3 + $0x18] sm:$0xf]
      %v3944 = vld [vmem:[%s3 + $0x1c] sm:$0xf]
      %v3945 = vld [vmem:[%s3 + $0x20] sm:$0xf]
      %v3946 = vld [vmem:[%s3 + $0x24] sm:$0xf]
      %v3947 = vld [vmem:[%s3 + $0x28] sm:$0xf]
      %v3948 = vld [vmem:[%s3 + $0x2c] sm:$0xf]
      %v3949 = vld [vmem:[%s3 + $0x30] sm:$0xf]
      %v3950 = vld [vmem:[%s3 + $0x34] sm:$0xf]
      %v3951 = vld [vmem:[%s3 + $0x38] sm:$0xf]
      %v3952 = vld [vmem:[%s3 + $0x3c] sm:$0xf]
      %v3953 = vld [vmem:[%s3 + $0x40] sm:$0xf]
      %v3954 = vld [vmem:[%s3 + $0x44] sm:$0xf]
      %v3955 = vld [vmem:[%s3 + $0x48] sm:$0xf]
      %v3956 = vld [vmem:[%s3 + $0x4c] sm:$0xf]
      %v3957 = vld [vmem:[%s3 + $0x50] sm:$0xf]
      %v3958 = vld [vmem:[%s3 + $0x54] sm:$0xf]
      %v3959 = vld [vmem:[%s3 + $0x58] sm:$0xf]
      %v3960 = vld [vmem:[%s3 + $0x5c] sm:$0xf]
      %v3961 = vld [vmem:[%s3 + $0x60] sm:$0xf]
      %v3962 = vld [vmem:[%s3 + $0x64] sm:$0xf]
      %v3963 = vld [vmem:[%s3 + $0x68] sm:$0xf]
      %v3964 = vld [vmem:[%s3 + $0x6c] sm:$0xf]
      %v3965 = vld [vmem:[%s3 + $0x70] sm:$0xf]
      %v3966 = vld [vmem:[%s3 + $0x74] sm:$0xf]
      %v3967 = vld [vmem:[%s3 + $0x78] sm:$0xf]
      %v3968 = vld [vmem:[%s3 + $0x7c] sm:$0xf]
      %v3969 = vld [vmem:[%s3 + $0x80] sm:$0xf]
      %v3970 = vld [vmem:[%s3 + $0x84] sm:$0xf]
      %v3971 = vld [vmem:[%s3 + $0x88] sm:$0xf]
      %v3972 = vld [vmem:[%s3 + $0x8c] sm:$0xf]
      %v3973 = vld [vmem:[%s3 + $0x90] sm:$0xf]
      %v3974 = vld [vmem:[%s3 + $0x94] sm:$0xf]
      %v3975 = vld [vmem:[%s3 + $0x98] sm:$0xf]
      %v3976 = vld [vmem:[%s3 + $0x9c] sm:$0xf]
      %v3977 = vld [vmem:[%s3 + $0xa0] sm:$0xf]
      %v3978 = vld [vmem:[%s3 + $0xa4] sm:$0xf]
      %v3979 = vld [vmem:[%s3 + $0xa8] sm:$0xf]
      %v3980 = vld [vmem:[%s3 + $0xac] sm:$0xf]
      %v3981 = vld [vmem:[%s3 + $0xb0] sm:$0xf]
      %v3982 = vld [vmem:[%s3 + $0xb4] sm:$0xf]
      %v3983 = vld [vmem:[%s3 + $0xb8] sm:$0xf]
      %v3984 = vld [vmem:[%s3 + $0xbc] sm:$0xf]
      %v3985 = vld [vmem:[%s3 + $0xc0] sm:$0xf]
      %v3986 = vld [vmem:[%s3 + $0xc4] sm:$0xf]
      %v3987 = vld [vmem:[%s3 + $0xc8] sm:$0xf]
      %v3988 = vld [vmem:[%s3 + $0xcc] sm:$0xf]
      %v3989 = vld [vmem:[%s3 + $0xd0] sm:$0xf]
      %v3990 = vld [vmem:[%s3 + $0xd4] sm:$0xf]
      %v3991 = vld [vmem:[%s3 + $0xd8] sm:$0xf]
      %v3992 = vld [vmem:[%s3 + $0xdc] sm:$0xf]
      %v3993 = vld [vmem:[%s3 + $0xe0] sm:$0xf]
      %v3994 = vld [vmem:[%s3 + $0xe4] sm:$0xf]
      %v3995 = vld [vmem:[%s3 + $0xe8] sm:$0xf]
      %v3996 = vld [vmem:[%s3 + $0xec] sm:$0xf]
      %v3997 = vld [vmem:[%s3 + $0xf0] sm:$0xf]
      %v3998 = vld [vmem:[%s3 + $0xf4] sm:$0xf]
      %v3999 = vld [vmem:[%s3 + $0xf8] sm:$0xf]
      %v4000 = vld [vmem:[%s3 + $0xfc] sm:$0xf]
      %v4001 = vld [vmem:[%s3 + $0x100] sm:$0xf]
      %v4002 = vld [vmem:[%s3 + $0x104] sm:$0xf]
      %v4003 = vld [vmem:[%s3 + $0x108] sm:$0xf]
      %v4004 = vld [vmem:[%s3 + $0x10c] sm:$0xf]
      %v4005 = vld [vmem:[%s3 + $0x110] sm:$0xf]
      %v4006 = vld [vmem:[%s3 + $0x114] sm:$0xf]
      %v4007 = vld [vmem:[%s4] sm:$0x1]
      %v4009 = vlaneseq
      %v4010 = vshrl.u32 %v4009, 7
      %v4011 = vsub.s32 0, %v4010
      %v4012 = vrot.slane %v4007, %v4011
      %v4026 = vunpack.c.l.b16 %v3925
      %v4027 = vunpack.c.h.b16 %v3925
      %v4028 = vunpack.c.l.b16 %v3926
      %v4029 = vunpack.c.h.b16 %v3926
      %v4030 = vunpack.c.l.b16 %v3927
      %v4031 = vunpack.c.l.b16 %v3928
      %v4032 = vunpack.c.h.b16 %v3928
      %v4033 = vunpack.c.l.b16 %v3929
      %v4034 = vunpack.c.h.b16 %v3929
      %v4035 = vunpack.c.l.b16 %v3930
      %v4036 = vunpack.c.l.b16 %v3931
      %v4037 = vunpack.c.h.b16 %v3931
      %v4038 = vunpack.c.l.b16 %v3932
      %v4039 = vunpack.c.h.b16 %v3932
      %v4040 = vunpack.c.l.b16 %v3933
      %v4041 = vunpack.c.l.b16 %v3934
      %v4042 = vunpack.c.h.b16 %v3934
      %v4043 = vunpack.c.l.b16 %v3935
      %v4044 = vunpack.c.h.b16 %v3935
      %v4045 = vunpack.c.l.b16 %v3936
      %v4046 = vpack.c.b16 %v4031, %v4026
      %v4047 = vpack.c.b16 %v4032, %v4027
      %v4048 = vpack.c.b16 %v4033, %v4028
      %v4049 = vpack.c.b16 %v4034, %v4029
      %v4050 = vpack.c.b16 %v4035, %v4030
      %v4051 = vpack.c.b16 %v4041, %v4036
      %v4052 = vpack.c.b16 %v4042, %v4037
      %v4053 = vpack.c.b16 %v4043, %v4038
      %v4054 = vpack.c.b16 %v4044, %v4039
      %v4055 = vpack.c.b16 %v4045, %v4040
      %v4134 = vunpack.c.l.b16 %v3937
      %v4135 = vunpack.c.l.b16 %v3938
      %v4136 = vunpack.c.l.b16 %v3939
      %v4137 = vunpack.c.l.b16 %v3940
      %v4138 = vunpack.c.l.b16 %v3941
      %v4139 = vunpack.c.l.b16 %v3942
      %v4140 = vunpack.c.l.b16 %v3943
      %v4141 = vunpack.c.l.b16 %v3944
      %v4142 = vunpack.c.l.b16 %v3945
      %v4143 = vunpack.c.l.b16 %v3946
      %v4144 = vunpack.c.l.b16 %v3947
      %v4145 = vunpack.c.l.b16 %v3948
      %v4146 = vunpack.c.l.b16 %v3949
      %v4147 = vunpack.c.l.b16 %v3950
      %v4148 = vunpack.c.l.b16 %v3951
      %v4149 = vunpack.c.l.b16 %v3952
      %v4150 = vunpack.c.l.b16 %v3953
      %v4151 = vunpack.c.l.b16 %v3954
      %v4152 = vunpack.c.l.b16 %v3955
      %v4153 = vunpack.c.l.b16 %v3956
      %v4154 = vunpack.c.l.b16 %v3957
      %v4155 = vunpack.c.l.b16 %v3958
      %v4156 = vunpack.c.l.b16 %v3959
      %v4157 = vunpack.c.l.b16 %v3960
      %v4158 = vunpack.c.l.b16 %v3961
      %v4159 = vunpack.c.l.b16 %v3962
      %v4160 = vunpack.c.l.b16 %v3963
      %v4161 = vunpack.c.l.b16 %v3964
      %v4162 = vunpack.c.l.b16 %v3965
      %v4163 = vunpack.c.l.b16 %v3966
      %v4164 = vunpack.c.l.b16 %v3967
      %v4165 = vunpack.c.l.b16 %v3968
      %v4166 = vunpack.c.l.b16 %v3969
      %v4167 = vunpack.c.l.b16 %v3970
      %v4168 = vunpack.c.l.b16 %v3971
      %v4169 = vunpack.c.l.b16 %v3972
      %v4170 = vunpack.c.l.b16 %v3973
      %v4171 = vunpack.c.l.b16 %v3974
      %v4172 = vunpack.c.l.b16 %v3975
      %v4173 = vunpack.c.l.b16 %v3976
      %v4174 = vunpack.c.l.b16 %v3977
      %v4175 = vunpack.c.l.b16 %v3978
      %v4176 = vunpack.c.l.b16 %v3979
      %v4177 = vunpack.c.l.b16 %v3980
      %v4178 = vunpack.c.l.b16 %v3981
      %v4179 = vunpack.c.l.b16 %v3982
      %v4180 = vunpack.c.l.b16 %v3983
      %v4181 = vunpack.c.l.b16 %v3984
      %v4182 = vunpack.c.l.b16 %v3985
      %v4183 = vunpack.c.l.b16 %v3986
      %v4184 = vunpack.c.l.b16 %v3987
      %v4185 = vunpack.c.l.b16 %v3988
      %v4186 = vunpack.c.l.b16 %v3989
      %v4187 = vunpack.c.l.b16 %v3990
      %v4188 = vunpack.c.l.b16 %v3991
      %v4189 = vunpack.c.l.b16 %v3992
      %v4190 = vunpack.c.l.b16 %v3993
      %v4191 = vunpack.c.l.b16 %v3994
      %v4192 = vunpack.c.l.b16 %v3995
      %v4193 = vunpack.c.l.b16 %v3996
      %v4194 = vunpack.c.l.b16 %v3997
      %v4195 = vunpack.c.l.b16 %v3998
      %v4196 = vunpack.c.l.b16 %v3999
      %v4197 = vunpack.c.l.b16 %v4000
      %v4198 = vunpack.c.l.b16 %v4001
      %v4199 = vunpack.c.l.b16 %v4002
      %v4200 = vunpack.c.l.b16 %v4003
      %v4201 = vunpack.c.l.b16 %v4004
      %v4202 = vunpack.c.l.b16 %v4005
      %v4203 = vunpack.c.l.b16 %v4006
      %v4204 = vpack.c.b16 %v4135, %v4134
      %v4205 = vpack.c.b16 %v4137, %v4136
      %v4206 = vpack.c.b16 %v4139, %v4138
      %v4207 = vpack.c.b16 %v4141, %v4140
      %v4208 = vpack.c.b16 %v4143, %v4142
      %v4209 = vpack.c.b16 %v4145, %v4144
      %v4210 = vpack.c.b16 %v4147, %v4146
      %v4211 = vpack.c.b16 %v4149, %v4148
      %v4212 = vpack.c.b16 %v4151, %v4150
      %v4213 = vpack.c.b16 %v4153, %v4152
      %v4214 = vpack.c.b16 %v4155, %v4154
      %v4215 = vpack.c.b16 %v4157, %v4156
      %v4216 = vpack.c.b16 %v4159, %v4158
      %v4217 = vpack.c.b16 %v4161, %v4160
      %v4218 = vpack.c.b16 %v4163, %v4162
      %v4219 = vpack.c.b16 %v4165, %v4164
      %v4220 = vpack.c.b16 %v4167, %v4166
      %v4221 = vpack.c.b16 %v4169, %v4168
      %v4222 = vpack.c.b16 %v4171, %v4170
      %v4223 = vpack.c.b16 %v4173, %v4172
      %v4224 = vpack.c.b16 %v4175, %v4174
      %v4225 = vpack.c.b16 %v4177, %v4176
      %v4226 = vpack.c.b16 %v4179, %v4178
      %v4227 = vpack.c.b16 %v4181, %v4180
      %v4228 = vpack.c.b16 %v4183, %v4182
      %v4229 = vpack.c.b16 %v4185, %v4184
      %v4230 = vpack.c.b16 %v4187, %v4186
      %v4231 = vpack.c.b16 %v4189, %v4188
      %v4232 = vpack.c.b16 %v4191, %v4190
      %v4233 = vpack.c.b16 %v4193, %v4192
      %v4234 = vpack.c.b16 %v4195, %v4194
      %v4235 = vpack.c.b16 %v4197, %v4196
      %v4236 = vpack.c.b16 %v4199, %v4198
      %v4237 = vpack.c.b16 %v4201, %v4200
      %v4238 = vpack.c.b16 %v4203, %v4202
      %vm4274 = vcmask 392192
      %v4276 = vsel %vm4274, %v4050, 0
      %v4279 = vsel %vm4274, %v4055, 0
      %4281 = vmatprep.subr.bf16.mxu0 0
      %4282 = vmatpush1.bf16.msra.mxu0 %v4211
      %4283 = vmatprep.subr.bf16.mxu0 0
      %4284 = vmatpush1.bf16.msra.mxu0 %v4210
      %4285 = vmatprep.subr.bf16.mxu0 0
      %4286 = vmatpush1.bf16.msra.mxu0 %v4209
      %4287 = vmatprep.subr.bf16.mxu0 0
      %4288 = vmatpush1.bf16.msra.mxu0 %v4208
      %4289 = vmatprep.subr.bf16.mxu0 0
      %4290 = vmatpush1.bf16.msra.mxu0 %v4207
      %4291 = vmatprep.subr.bf16.mxu0 0
      %4292 = vmatpush1.bf16.msra.mxu0 %v4206
      %4293 = vmatprep.subr.bf16.mxu0 0
      %4294 = vmatpush1.bf16.msra.mxu0 %v4205
      %4295 = vmatprep.subr.bf16.mxu0 0
      %4296 = vmatpush1.bf16.msra.mxu0 %v4204
      %4297 = vmatprep.subr.bf16.mxu0 0
      %4298 = vmatpush2.bf16.msra.mxu0 %v4219
      %4299 = vmatprep.subr.bf16.mxu0 0
      %4300 = vmatpush2.bf16.msra.mxu0 %v4218
      %4301 = vmatprep.subr.bf16.mxu0 0
      %4302 = vmatpush2.bf16.msra.mxu0 %v4217
      %4303 = vmatprep.subr.bf16.mxu0 0
      %4304 = vmatpush2.bf16.msra.mxu0 %v4216
      %4305 = vmatprep.subr.bf16.mxu0 0
      %4306 = vmatpush2.bf16.msra.mxu0 %v4215
      %4307 = vmatprep.subr.bf16.mxu0 0
      %4308 = vmatpush2.bf16.msra.mxu0 %v4214
      %4309 = vmatprep.subr.bf16.mxu0 0
      %4310 = vmatpush2.bf16.msra.mxu0 %v4213
      %4311 = vmatprep.subr.bf16.mxu0 0
      %4312 = vmatpush2.bf16.msra.mxu0 %v4212
      %4313 = vmatprep.mubr.bf16.mxu0 %v4047
      %4314 = vmatmul.mubr.bf16.gmra.mxu0 %v4046
      %v4315 = vpop.f32.mrf.mxu0
      %v4316 = vadd.f32 %v4012, %v4315
      %v4317 = vpop.f32.mrf.mxu0
      %v4318 = vpop.f32.mrf.mxu0
      %v4319 = vadd.f32 %v4012, %v4318
      %v4320 = vpop.f32.mrf.mxu0
      %4321 = vmatprep.mubr.bf16.mxu0 %v4052
      %4322 = vmatmul.mubr.bf16.gmra.mxu0 %v4051
      %v4323 = vpop.f32.mrf.mxu0
      %v4324 = vadd.f32 %v4012, %v4323
      %v4325 = vpop.f32.mrf.mxu0
      %v4326 = vpop.f32.mrf.mxu0
      %v4327 = vadd.f32 %v4012, %v4326
      %v4328 = vpop.f32.mrf.mxu0
      %4329 = vdwg.mxu0
      %4330 = vmatprep.subr.bf16.mxu0 0
      %4331 = vmatpush1.bf16.msra.mxu0 %v4227
      %4332 = vmatprep.subr.bf16.mxu0 0
      %4333 = vmatpush1.bf16.msra.mxu0 %v4226
      %4334 = vmatprep.subr.bf16.mxu0 0
      %4335 = vmatpush1.bf16.msra.mxu0 %v4225
      %4336 = vmatprep.subr.bf16.mxu0 0
      %4337 = vmatpush1.bf16.msra.mxu0 %v4224
      %4338 = vmatprep.subr.bf16.mxu0 0
      %4339 = vmatpush1.bf16.msra.mxu0 %v4223
      %4340 = vmatprep.subr.bf16.mxu0 0
      %4341 = vmatpush1.bf16.msra.mxu0 %v4222
      %4342 = vmatprep.subr.bf16.mxu0 0
      %4343 = vmatpush1.bf16.msra.mxu0 %v4221
      %4344 = vmatprep.subr.bf16.mxu0 0
      %4345 = vmatpush1.bf16.msra.mxu0 %v4220
      %4346 = vmatprep.subr.bf16.mxu0 0
      %4347 = vmatpush2.bf16.msra.mxu0 %v4235
      %4348 = vmatprep.subr.bf16.mxu0 0
      %4349 = vmatpush2.bf16.msra.mxu0 %v4234
      %4350 = vmatprep.subr.bf16.mxu0 0
      %4351 = vmatpush2.bf16.msra.mxu0 %v4233
      %4352 = vmatprep.subr.bf16.mxu0 0
      %4353 = vmatpush2.bf16.msra.mxu0 %v4232
      %4354 = vmatprep.subr.bf16.mxu0 0
      %4355 = vmatpush2.bf16.msra.mxu0 %v4231
      %4356 = vmatprep.subr.bf16.mxu0 0
      %4357 = vmatpush2.bf16.msra.mxu0 %v4230
      %4358 = vmatprep.subr.bf16.mxu0 0
      %4359 = vmatpush2.bf16.msra.mxu0 %v4229
      %4360 = vmatprep.subr.bf16.mxu0 0
      %4361 = vmatpush2.bf16.msra.mxu0 %v4228
      %4362 = vmatprep.mubr.bf16.mxu0 %v4049
      %4363 = vmatmul.mubr.bf16.gmra.mxu0 %v4048
      %v4364 = vpop.f32.mrf.mxu0
      %v4365 = vadd.f32 %v4316, %v4364
      %v4366 = vpop.f32.mrf.mxu0
      %v4367 = vpop.f32.mrf.mxu0
      %v4368 = vadd.f32 %v4319, %v4367
      %v4369 = vpop.f32.mrf.mxu0
      %4370 = vmatprep.mubr.bf16.mxu0 %v4054
      %4371 = vmatmul.mubr.bf16.gmra.mxu0 %v4053
      %v4372 = vpop.f32.mrf.mxu0
      %v4373 = vadd.f32 %v4324, %v4372
      %v4374 = vpop.f32.mrf.mxu0
      %v4375 = vpop.f32.mrf.mxu0
      %v4376 = vadd.f32 %v4327, %v4375
      %v4377 = vpop.f32.mrf.mxu0
      %4378 = vdwg.mxu0
      %4379 = vmatprep.subr.bf16.mxu0 0
      %4380 = vmatpush1.bf16.msra.mxu0 0
      %4381 = vmatprep.subr.bf16.mxu0 0
      %4382 = vmatpush1.bf16.msra.mxu0 0
      %4383 = vmatprep.subr.bf16.mxu0 0
      %4384 = vmatpush1.bf16.msra.mxu0 0
      %4385 = vmatprep.subr.bf16.mxu0 0
      %4386 = vmatpush1.bf16.msra.mxu0 0
      %4387 = vmatprep.subr.bf16.mxu0 0
      %4388 = vmatpush1.bf16.msra.mxu0 0
      %4389 = vmatprep.subr.bf16.mxu0 0
      %4390 = vmatpush1.bf16.msra.mxu0 %v4238
      %4391 = vmatprep.subr.bf16.mxu0 0
      %4392 = vmatpush1.bf16.msra.mxu0 %v4237
      %4393 = vmatprep.subr.bf16.mxu0 0
      %4394 = vmatpush1.bf16.msra.mxu0 %v4236
      %4395 = vmatprep.subr.bf16.mxu0 0
      %4396 = vmatpush2.bf16.msra.mxu0 0
      %4397 = vmatprep.subr.bf16.mxu0 0
      %4398 = vmatpush2.bf16.msra.mxu0 0
      %4399 = vmatprep.subr.bf16.mxu0 0
      %4400 = vmatpush2.bf16.msra.mxu0 0
      %4401 = vmatprep.subr.bf16.mxu0 0
      %4402 = vmatpush2.bf16.msra.mxu0 0
      %4403 = vmatprep.subr.bf16.mxu0 0
      %4404 = vmatpush2.bf16.msra.mxu0 0
      %4405 = vmatprep.subr.bf16.mxu0 0
      %4406 = vmatpush2.bf16.msra.mxu0 0
      %4407 = vmatprep.subr.bf16.mxu0 0
      %4408 = vmatpush2.bf16.msra.mxu0 0
      %4409 = vmatprep.subr.bf16.mxu0 0
      %4410 = vmatpush2.bf16.msra.mxu0 0
      %4411 = vmatprep.mubr.bf16.mxu0 0
      %4412 = vmatmul.mubr.bf16.gmra.mxu0 %v4276
      %v4413 = vpop.f32.mrf.mxu0
      %v4414 = vadd.f32 %v4365, %v4413
      %v4415 = vpop.f32.mrf.mxu0
      %v4416 = vpop.f32.mrf.mxu0
      %v4417 = vadd.f32 %v4368, %v4416
      %v4418 = vpop.f32.mrf.mxu0
      %4419 = vmatprep.mubr.bf16.mxu0 0
      %4420 = vmatmul.mubr.bf16.gmra.mxu0 %v4279
      %v4421 = vpop.f32.mrf.mxu0
      %v4422 = vadd.f32 %v4373, %v4421
      %v4423 = vpop.f32.mrf.mxu0
      %v4424 = vpop.f32.mrf.mxu0
      %v4425 = vadd.f32 %v4376, %v4424
      %v4426 = vpop.f32.mrf.mxu0
      %4427 = vdwg.mxu0
      %vm4428 = vcmask 64512
      %4429 = vst.msk [vmem:[#allocation5] sm:$0xff] %vm4428, %v4414
      %4430 = vst.msk [vmem:[#allocation5 + $0x8] sm:$0xff] %vm4428, %v4417
      %4431 = vst.msk [vmem:[#allocation5 + $0x10] sm:$0xff] %vm4428, %v4422
      %4432 = vst.msk [vmem:[#allocation5 + $0x18] sm:$0xff] %vm4428, %v4425
      %v4433 = vld [vmem:[#allocation5 + $0x2] sm:$0xf]
      %v4434 = vld [vmem:[#allocation5 + $0xa] sm:$0xf]
      %v4435 = vld [vmem:[#allocation5 + $0x12] sm:$0xf]
      %v4436 = vld [vmem:[#allocation5 + $0x1a] sm:$0xf]
      %v4438 = vrot.slane %v4434, 4
      %v4441 = vrot.slane %v4436, 4
      %v4443 = vsel %vm2144, %v4433, %v4438
      %v4444 = vsel %vm2144, %v4435, %v4441
      %v4445 = vld [vmem:[%s334] sm:$0xff]
      %v4446 = vld [vmem:[%s334 + $0x8] sm:$0xff]
      %v4447 = vld [vmem:[%s329] sm:$0x1]
      %v4449 = vlaneseq
      %v4450 = vshrl.u32 %v4449, 7
      %v4451 = vsub.s32 0, %v4450
      %v4452 = vrot.slane %v4447, %v4451
      %4453 = vset.pattern.permute.xlu0 0
      %4454 = vperm.xlu0 %4453, %v4452
      %v4455 = vpop.permute.xlu0 %4454
      %v4457 = vmul.f32 %v4455, %v4443
      %v4458 = vmul.f32 %v4455, %v4444
      %v4459 = vadd.f32 %v4445, %v4457
      %v4460 = vadd.f32 %v4446, %v4458
      %4461 = vst.msk [vmem:[%s339] sm:$0xff] %vm4428, %v4459
      %4462 = vst.msk [vmem:[%s339 + $0x8] sm:$0xff] %vm4428, %v4460
      %p4463 = scmp.lt.s32.totalorder %s19, 1
      %s4464 = scalar_select %p4463, %s19, 1
      %s4465 = smul.addr %s4464, 2
      %s4466 = smul.addr %s4465, 8
      %s4467 = scalar_lea.vmem %s8, %s4466
      // Predicated region
      $region53: #{tpu_custom_call.1} parent=51 // pred_check
        %p4468 = pneg %p220
      $region54: #{tpu_custom_call.1} parent=51 // pred_check_branch
        %4470 = sbr.rel (%p4468) target = $region56
      $region55: #{tpu_custom_call.1} parent=51 // pred_region
        _
      $region56: #{tpu_custom_call.1} parent=51 // pred_fallthru
        _
    $region52: #{tpu_custom_call.1} parent=5 // pred_fallthru
      _
    %p4471 = scmp.le.s32.totalorder 2, %s14
    // Predicated region
    $region57: #{tpu_custom_call.1} parent=5 // pred_check
      %p4472 = pneg %p4471
    $region58: #{tpu_custom_call.1} parent=5 // pred_check_branch
      %4474 = sbr.rel (%p4472) target = $region60
    $region59: #{tpu_custom_call.1} parent=5 // pred_region
      %s4475 = ssub.s32 %s14, 2
      // Predicated region
      $region61: #{tpu_custom_call.1} parent=59 // pred_check
        %p4476 = pneg %p226
      $region62: #{tpu_custom_call.1} parent=59 // pred_check_branch
        %4478 = sbr.rel (%p4476) target = $region64
      $region63: #{tpu_custom_call.1} parent=59 // pred_region
        %p4479 = scmp.lt.s32.totalorder %s20, 1
        %s4480 = scalar_select %p4479, %s20, 1
        %s4481 = smul.addr %s4480, 2
        %s4482 = smul.addr %s4481, 8
        %s4483 = scalar_lea.vmem %s8, %s4482
      $region64: #{tpu_custom_call.1} parent=59 // pred_fallthru
        _
    $region60: #{tpu_custom_call.1} parent=5 // pred_fallthru
      _
  $region6: #{tpu_custom_call.1} parent=0 // loop_footer
    %s18 = sadd.s32 1, %s14
  $region7: #{tpu_custom_call.1} parent=0 // loop_footer_branch
    %13 = sbr.rel target = $region3
  $region8: #{tpu_custom_call.1} parent=0 // loop_exit
    _

</llo_original>
